<compile_context>
chip_gen: v6e
topology: v6e:2x2x1
jax: 0.10.0
libtpu: 0.0.40
codegen_flags: <defaults>
</compile_context>

<pallas_src>
import functools

import numpy as np
import jax
import jax.numpy as jnp
from jax import lax
from jax.experimental import pallas as pl
from jax.experimental.pallas import tpu as pltpu

ZITTER = 1e-6
NOISE_STD = 0.1  # stands in for the externally-defined `sigma_eps_std` global

# Deterministic LMC-style multi-output kernel parameters
# (Q latent RBF components, C output channels):
#   K_{ij}(x, x') = sum_q B[q,i] * B[q,j] * exp(-(x - x')^2 / (2 l_q^2))
_B = np.array([[0.9, 0.7, 0.5],
               [0.6, 0.8, 0.4],
               [0.3, 0.5, 0.9]], dtype=np.float32)   # (Q, C)
_LS = np.array([0.5, 0.7, 1.0], dtype=np.float32)    # (Q,)


# ---------------------------------------------------------------------------
# Pallas kernel 1: fused multi-output kernel matrix construction
#   builds K_cc, K_ct, K_tt for one batch element in a single grid step.
# ---------------------------------------------------------------------------
def _mo_k3_kernel(cxr_ref, cxc_ref, txr_ref, txc_ref,
                  wcc_ref, wct_ref, wtt_ref,
                  kcc_ref, kct_ref, ktt_ref, *, Q, inv_2ls2):
    cxr = cxr_ref[0]   # (CN, 1)  channel-major context points (column)
    cxc = cxc_ref[0]   # (1, CN)  channel-major context points (row)
    txr = txr_ref[0]   # (CT, 1)  channel-major target points (column)
    txc = txc_ref[0]   # (1, CT)  channel-major target points (row)

    # squared distances for the full flattened tiles, computed once each
    d_cc = cxr - cxc
    d_ct = cxr - txc
    d_tt = txr - txc
    d2_cc = d_cc * d_cc
    d2_ct = d_ct * d_ct
    d2_tt = d_tt * d_tt

    kcc = jnp.zeros_like(d2_cc)
    kct = jnp.zeros_like(d2_ct)
    ktt = jnp.zeros_like(d2_tt)
    for q in range(Q):                      # Q full-block exps (EUP), static loop
        inv = inv_2ls2[q]
        kcc = kcc + wcc_ref[q] * jnp.exp(-d2_cc * inv)
        kct = kct + wct_ref[q] * jnp.exp(-d2_ct * inv)
        ktt = ktt + wtt_ref[q] * jnp.exp(-d2_tt * inv)

    kcc_ref[0] = kcc
    kct_ref[0] = kct
    ktt_ref[0] = ktt


def compute_all_K(context_x, target_x):
    """context_x: (nb, nc, C), target_x: (nb, nt, C) ->
       (K_cc (nb, C*nc, C*nc), K_ct (nb, C*nc, C*nt), K_tt (nb, C*nt, C*nt))."""
    nb, nc, C = context_x.shape
    nt = target_x.shape[1]
    CN, CT = C * nc, C * nt
    Q = int(_LS.shape[0])

    # channel-major flattening + row/col layouts (free layout glue in XLA)
    cx = jnp.transpose(context_x, (0, 2, 1)).reshape(nb, CN).astype(jnp.float32)
    tx = jnp.transpose(target_x, (0, 2, 1)).reshape(nb, CT).astype(jnp.float32)
    cxr = cx.reshape(nb, CN, 1)
    cxc = cx.reshape(nb, 1, CN)
    txr = tx.reshape(nb, CT, 1)
    txc = tx.reshape(nb, 1, CT)

    # trace-time LMC mixing weights: W_q[r, c] = B[q, ch(r)] * B[q, ch(c)]
    b_ctx = np.repeat(_B, nc, axis=1)   # (Q, CN)
    b_tgt = np.repeat(_B, nt, axis=1)   # (Q, CT)
    wcc = jnp.asarray(np.einsum('qi,qj->qij', b_ctx, b_ctx), jnp.float32)
    wct = jnp.asarray(np.einsum('qi,qj->qij', b_ctx, b_tgt), jnp.float32)
    wtt = jnp.asarray(np.einsum('qi,qj->qij', b_tgt, b_tgt), jnp.float32)

    inv_2ls2 = tuple(float(1.0 / (2.0 * l * l)) for l in _LS)
    kern = functools.partial(_mo_k3_kernel, Q=Q, inv_2ls2=inv_2ls2)

    # TODO(synk): at large C*n / C*m these whole-matrix-per-batch blocks must be
    # re-tiled (row/col tiles + explicit vmem_limit_bytes) to fit v7x's 64 MiB
    # VMEM and the 16/32 MiB scoped defaults on v5e/v6e; fine at demo sizes.
    return pl.pallas_call(
        kern,
        out_shape=(jax.ShapeDtypeStruct((nb, CN, CN), jnp.float32),
                   jax.ShapeDtypeStruct((nb, CN, CT), jnp.float32),
                   jax.ShapeDtypeStruct((nb, CT, CT), jnp.float32)),
        grid=(nb,),
        in_specs=[pl.BlockSpec((1, CN, 1), lambda b: (b, 0, 0)),
                  pl.BlockSpec((1, 1, CN), lambda b: (b, 0, 0)),
                  pl.BlockSpec((1, CT, 1), lambda b: (b, 0, 0)),
                  pl.BlockSpec((1, 1, CT), lambda b: (b, 0, 0)),
                  pl.BlockSpec((Q, CN, CN), lambda b: (0, 0, 0)),
                  pl.BlockSpec((Q, CN, CT), lambda b: (0, 0, 0)),
                  pl.BlockSpec((Q, CT, CT), lambda b: (0, 0, 0))],
        out_specs=(pl.BlockSpec((1, CN, CN), lambda b: (b, 0, 0)),
                   pl.BlockSpec((1, CN, CT), lambda b: (b, 0, 0)),
                   pl.BlockSpec((1, CT, CT), lambda b: (b, 0, 0))),
        compiler_params=pltpu.CompilerParams(dimension_semantics=("parallel",)),
    )(cxr, cxc, txr, txc, wcc, wct, wtt)


# ---------------------------------------------------------------------------
# Pallas kernel 2: GP posterior (mean, marginal std, full covariance)
# ---------------------------------------------------------------------------
def _gp_post_kernel(a_ref, v_ref, ktt_ref, mean_ref, std_ref, cov_ref):
    A = a_ref[0]      # (CN, CT)
    V = v_ref[0]      # (CN, 1)
    Ktt = ktt_ref[0]  # (CT, CT)
    ct = Ktt.shape[0]

    # mean_f = A^T V as a lane-dense row vector (VPU mul + sublane reduce,
    # no N=1 MXU matmul).
    mean_row = jnp.sum(A * V, axis=0, keepdims=True)       # (1, CT)
    # diag(A^T A) directly from A (independent of the MXU result).
    diag_ata = jnp.sum(A * A, axis=0, keepdims=True)        # (1, CT)

    # full A^T A on the MXU (only consumer is the covariance output)
    AtA = lax.dot_general(A, A, (((0,), (0,)), ((), ())),
                          preferred_element_type=jnp.float32)   # (CT, CT)

    row = lax.broadcasted_iota(jnp.int32, (ct, ct), 0)
    col = lax.broadcasted_iota(jnp.int32, (ct, ct), 1)
    eye = (row == col)

    diag_ktt = jnp.sum(jnp.where(eye, Ktt, 0.0), axis=0, keepdims=True)  # (1, CT)
    var = diag_ktt - diag_ata
    std = jnp.sqrt(jnp.maximum(var, 1e-8)) + NOISE_STD      # matches torch clamp+sqrt+noise

    cov = Ktt - AtA + (NOISE_STD ** 2 + ZITTER) * eye.astype(jnp.float32)

    mean_ref[0] = mean_row
    std_ref[0] = std
    cov_ref[0] = cov


def gp_posterior(A, V, Ktt):
    nb, CN, CT = A.shape
    return pl.pallas_call(
        _gp_post_kernel,
        out_shape=(jax.ShapeDtypeStruct((nb, 1, CT), jnp.float32),
                   jax.ShapeDtypeStruct((nb, 1, CT), jnp.float32),
                   jax.ShapeDtypeStruct((nb, CT, CT), jnp.float32)),
        grid=(nb,),
        in_specs=[pl.BlockSpec((1, CN, CT), lambda b: (b, 0, 0)),
                  pl.BlockSpec((1, CN, 1), lambda b: (b, 0, 0)),
                  pl.BlockSpec((1, CT, CT), lambda b: (b, 0, 0))],
        out_specs=(pl.BlockSpec((1, 1, CT), lambda b: (b, 0, 0)),
                   pl.BlockSpec((1, 1, CT), lambda b: (b, 0, 0)),
                   pl.BlockSpec((1, CT, CT), lambda b: (b, 0, 0))),
        compiler_params=pltpu.CompilerParams(dimension_semantics=("parallel",)),
    )(A, V, Ktt)


# ---------------------------------------------------------------------------
# Forward pass (mirrors GP_Baseline.forward)
# ---------------------------------------------------------------------------
def gp_baseline_forward(context_x, context_y, target_x):
    nb, nc, C = context_x.shape
    nt = target_x.shape[1]
    CN, CT = C * nc, C * nt

    # single fused launch builds all three kernel matrices
    K_cc, K_ct, K_tt = compute_all_K(context_x, target_x)

    # i_c_y = context_y.transpose(0,1).reshape(-1,1)  (channel-major)
    y_vec = jnp.transpose(context_y, (0, 2, 1)).reshape(nb, CN, 1).astype(jnp.float32)

    # TODO(synk): cholesky / triangular_solve have no clean Pallas TPU
    # equivalent; done in plain JAX (lax.linalg). Small jitter on K_cc for
    # numerical stability of the factorization.
    eye_cc = jnp.eye(CN, dtype=jnp.float32)[None]
    L = jnp.linalg.cholesky(K_cc + ZITTER * eye_cc)
    A = lax.linalg.triangular_solve(L, K_ct, left_side=True, lower=True)
    V = lax.linalg.triangular_solve(L, y_vec, left_side=True, lower=True)

    mean_row, std_row, cov2 = gp_posterior(A, V, K_tt)   # (nb,1,CT),(nb,1,CT),(nb,CT,CT)

    # mean_f.view(C, -1).T  /  var_f.view(C, -1).T  (free layout glue)
    pred_mean1 = jnp.transpose(mean_row.reshape(nb, C, nt), (0, 2, 1))   # (nb, nt, C)
    pred_std1 = jnp.transpose(std_row.reshape(nb, C, nt), (0, 2, 1))     # (nb, nt, C)
    pred_mean2 = mean_row.reshape(nb, CT, 1)                             # (nb, C*nt, 1)
    pred_cov2 = cov2                                                     # (nb, C*nt, C*nt)
    return pred_mean1, pred_std1, pred_mean2, pred_cov2


if __name__ == "__main__":
    key = jax.random.PRNGKey(0)
    nb, ncontext, ntarget, C = 2, 8, 8, 3
    k1, k2, k3 = jax.random.split(key, 3)
    context_x = jax.random.uniform(k1, (nb, ncontext, C), minval=-2.0, maxval=2.0)
    context_y = jax.random.normal(k2, (nb, ncontext, C))
    target_x = jax.random.uniform(k3, (nb, ntarget, C), minval=-2.0, maxval=2.0)

    outs = jax.jit(gp_baseline_forward)(context_x, context_y, target_x)
    outs = jax.block_until_ready(outs)
    pm1, ps1, pm2, pc2 = outs

    assert pm1.shape == (nb, ntarget, C)
    assert ps1.shape == (nb, ntarget, C)
    assert pm2.shape == (nb, C * ntarget, 1)
    assert pc2.shape == (nb, C * ntarget, C * ntarget)
    assert bool(jnp.all(jnp.isfinite(pm1)))
    assert bool(jnp.all(jnp.isfinite(ps1)))
    assert bool(jnp.all(jnp.isfinite(pc2)))
    print("KERNEL_OK")
</pallas_src>

<mosaic_0001>
module attributes {stable_mosaic.version = 11 : i64} {
  func.func @_mo_k3_kernel(%arg0: i32, %arg1: memref<1x24x1xf32, #tpu.memory_space<vmem>>, %arg2: memref<1x1x24xf32, #tpu.memory_space<vmem>>, %arg3: memref<1x24x1xf32, #tpu.memory_space<vmem>>, %arg4: memref<1x1x24xf32, #tpu.memory_space<vmem>>, %arg5: memref<3x24x24xf32, #tpu.memory_space<vmem>>, %arg6: memref<3x24x24xf32, #tpu.memory_space<vmem>>, %arg7: memref<3x24x24xf32, #tpu.memory_space<vmem>>, %arg8: memref<1x24x24xf32, #tpu.memory_space<vmem>>, %arg9: memref<1x24x24xf32, #tpu.memory_space<vmem>>, %arg10: memref<1x24x24xf32, #tpu.memory_space<vmem>>) attributes {dimension_semantics = [#tpu.dimension_semantics<parallel>], iteration_bounds = array<i64: 2>, scalar_prefetch = 0 : i64, scratch_operands = 0 : i64, tpu.core_type = #tpu.core_type<tc>, window_params = [{transform_indices = @transform_0, window_bounds = array<i64: 1, 24, 1>}, {transform_indices = @transform_1, window_bounds = array<i64: 1, 1, 24>}, {transform_indices = @transform_2, window_bounds = array<i64: 1, 24, 1>}, {transform_indices = @transform_3, window_bounds = array<i64: 1, 1, 24>}, {pipeline_mode = #tpu.pipeline_mode<synchronous>, transform_indices = @transform_4, window_bounds = array<i64: 3, 24, 24>}, {pipeline_mode = #tpu.pipeline_mode<synchronous>, transform_indices = @transform_5, window_bounds = array<i64: 3, 24, 24>}, {pipeline_mode = #tpu.pipeline_mode<synchronous>, transform_indices = @transform_6, window_bounds = array<i64: 3, 24, 24>}, {transform_indices = @transform_7, window_bounds = array<i64: 1, 24, 24>}, {transform_indices = @transform_8, window_bounds = array<i64: 1, 24, 24>}, {transform_indices = @transform_9, window_bounds = array<i64: 1, 24, 24>}]} {
    %c0 = arith.constant 0 : index
    %c0_0 = arith.constant 0 : index
    %c0_1 = arith.constant 0 : index
    %0 = vector.load %arg1[%c0, %c0_0, %c0_1] : memref<1x24x1xf32, #tpu.memory_space<vmem>>, vector<1x24x1xf32>
    %1 = vector.shape_cast %0 : vector<1x24x1xf32> to vector<24x1xf32>
    %c0_2 = arith.constant 0 : index
    %c0_3 = arith.constant 0 : index
    %c0_4 = arith.constant 0 : index
    %2 = vector.load %arg2[%c0_2, %c0_3, %c0_4] : memref<1x1x24xf32, #tpu.memory_space<vmem>>, vector<1x1x24xf32>
    %3 = vector.shape_cast %2 : vector<1x1x24xf32> to vector<1x24xf32>
    %c0_5 = arith.constant 0 : index
    %c0_6 = arith.constant 0 : index
    %c0_7 = arith.constant 0 : index
    %4 = vector.load %arg3[%c0_5, %c0_6, %c0_7] : memref<1x24x1xf32, #tpu.memory_space<vmem>>, vector<1x24x1xf32>
    %5 = vector.shape_cast %4 : vector<1x24x1xf32> to vector<24x1xf32>
    %c0_8 = arith.constant 0 : index
    %c0_9 = arith.constant 0 : index
    %c0_10 = arith.constant 0 : index
    %6 = vector.load %arg4[%c0_8, %c0_9, %c0_10] : memref<1x1x24xf32, #tpu.memory_space<vmem>>, vector<1x1x24xf32>
    %7 = vector.shape_cast %6 : vector<1x1x24xf32> to vector<1x24xf32>
    %8 = vector.broadcast %1 : vector<24x1xf32> to vector<24x24xf32>
    %9 = vector.broadcast %3 : vector<1x24xf32> to vector<24x24xf32>
    %10 = arith.subf %8, %9 : vector<24x24xf32>
    %11 = vector.broadcast %1 : vector<24x1xf32> to vector<24x24xf32>
    %12 = vector.broadcast %7 : vector<1x24xf32> to vector<24x24xf32>
    %13 = arith.subf %11, %12 : vector<24x24xf32>
    %14 = vector.broadcast %5 : vector<24x1xf32> to vector<24x24xf32>
    %15 = vector.broadcast %7 : vector<1x24xf32> to vector<24x24xf32>
    %16 = arith.subf %14, %15 : vector<24x24xf32>
    %17 = arith.mulf %10, %10 : vector<24x24xf32>
    %18 = arith.mulf %13, %13 : vector<24x24xf32>
    %19 = arith.mulf %16, %16 : vector<24x24xf32>
    %cst = arith.constant 0.000000e+00 : f32
    %20 = vector.broadcast %cst : f32 to vector<24x24xf32>
    %cst_11 = arith.constant 0.000000e+00 : f32
    %21 = vector.broadcast %cst_11 : f32 to vector<24x24xf32>
    %cst_12 = arith.constant 0.000000e+00 : f32
    %22 = vector.broadcast %cst_12 : f32 to vector<24x24xf32>
    %c0_13 = arith.constant 0 : index
    %c0_14 = arith.constant 0 : index
    %c0_15 = arith.constant 0 : index
    %23 = vector.load %arg5[%c0_13, %c0_14, %c0_15] : memref<3x24x24xf32, #tpu.memory_space<vmem>>, vector<1x24x24xf32>
    %24 = vector.shape_cast %23 : vector<1x24x24xf32> to vector<24x24xf32>
    %cst_16 = arith.constant 0.000000e+00 : f32
    %25 = vector.broadcast %cst_16 : f32 to vector<24x24xf32>
    %26 = arith.subf %25, %17 : vector<24x24xf32>
    %cst_17 = arith.constant 2.000000e+00 : f32
    %27 = vector.broadcast %cst_17 : f32 to vector<24x24xf32>
    %28 = arith.mulf %26, %27 : vector<24x24xf32>
    %29 = math.exp %28 : vector<24x24xf32>
    %30 = arith.mulf %24, %29 : vector<24x24xf32>
    %31 = arith.addf %20, %30 : vector<24x24xf32>
    %c0_18 = arith.constant 0 : index
    %c0_19 = arith.constant 0 : index
    %c0_20 = arith.constant 0 : index
    %32 = vector.load %arg6[%c0_18, %c0_19, %c0_20] : memref<3x24x24xf32, #tpu.memory_space<vmem>>, vector<1x24x24xf32>
    %33 = vector.shape_cast %32 : vector<1x24x24xf32> to vector<24x24xf32>
    %cst_21 = arith.constant 0.000000e+00 : f32
    %34 = vector.broadcast %cst_21 : f32 to vector<24x24xf32>
    %35 = arith.subf %34, %18 : vector<24x24xf32>
    %cst_22 = arith.constant 2.000000e+00 : f32
    %36 = vector.broadcast %cst_22 : f32 to vector<24x24xf32>
    %37 = arith.mulf %35, %36 : vector<24x24xf32>
    %38 = math.exp %37 : vector<24x24xf32>
    %39 = arith.mulf %33, %38 : vector<24x24xf32>
    %40 = arith.addf %21, %39 : vector<24x24xf32>
    %c0_23 = arith.constant 0 : index
    %c0_24 = arith.constant 0 : index
    %c0_25 = arith.constant 0 : index
    %41 = vector.load %arg7[%c0_23, %c0_24, %c0_25] : memref<3x24x24xf32, #tpu.memory_space<vmem>>, vector<1x24x24xf32>
    %42 = vector.shape_cast %41 : vector<1x24x24xf32> to vector<24x24xf32>
    %cst_26 = arith.constant 0.000000e+00 : f32
    %43 = vector.broadcast %cst_26 : f32 to vector<24x24xf32>
    %44 = arith.subf %43, %19 : vector<24x24xf32>
    %cst_27 = arith.constant 2.000000e+00 : f32
    %45 = vector.broadcast %cst_27 : f32 to vector<24x24xf32>
    %46 = arith.mulf %44, %45 : vector<24x24xf32>
    %47 = math.exp %46 : vector<24x24xf32>
    %48 = arith.mulf %42, %47 : vector<24x24xf32>
    %49 = arith.addf %22, %48 : vector<24x24xf32>
    %c1 = arith.constant 1 : index
    %c0_28 = arith.constant 0 : index
    %c0_29 = arith.constant 0 : index
    %50 = vector.load %arg5[%c1, %c0_28, %c0_29] : memref<3x24x24xf32, #tpu.memory_space<vmem>>, vector<1x24x24xf32>
    %51 = vector.shape_cast %50 : vector<1x24x24xf32> to vector<24x24xf32>
    %cst_30 = arith.constant 0.000000e+00 : f32
    %52 = vector.broadcast %cst_30 : f32 to vector<24x24xf32>
    %53 = arith.subf %52, %17 : vector<24x24xf32>
    %cst_31 = arith.constant 1.02040815 : f32
    %54 = vector.broadcast %cst_31 : f32 to vector<24x24xf32>
    %55 = arith.mulf %53, %54 : vector<24x24xf32>
    %56 = math.exp %55 : vector<24x24xf32>
    %57 = arith.mulf %51, %56 : vector<24x24xf32>
    %58 = arith.addf %31, %57 : vector<24x24xf32>
    %c1_32 = arith.constant 1 : index
    %c0_33 = arith.constant 0 : index
    %c0_34 = arith.constant 0 : index
    %59 = vector.load %arg6[%c1_32, %c0_33, %c0_34] : memref<3x24x24xf32, #tpu.memory_space<vmem>>, vector<1x24x24xf32>
    %60 = vector.shape_cast %59 : vector<1x24x24xf32> to vector<24x24xf32>
    %cst_35 = arith.constant 0.000000e+00 : f32
    %61 = vector.broadcast %cst_35 : f32 to vector<24x24xf32>
    %62 = arith.subf %61, %18 : vector<24x24xf32>
    %cst_36 = arith.constant 1.02040815 : f32
    %63 = vector.broadcast %cst_36 : f32 to vector<24x24xf32>
    %64 = arith.mulf %62, %63 : vector<24x24xf32>
    %65 = math.exp %64 : vector<24x24xf32>
    %66 = arith.mulf %60, %65 : vector<24x24xf32>
    %67 = arith.addf %40, %66 : vector<24x24xf32>
    %c1_37 = arith.constant 1 : index
    %c0_38 = arith.constant 0 : index
    %c0_39 = arith.constant 0 : index
    %68 = vector.load %arg7[%c1_37, %c0_38, %c0_39] : memref<3x24x24xf32, #tpu.memory_space<vmem>>, vector<1x24x24xf32>
    %69 = vector.shape_cast %68 : vector<1x24x24xf32> to vector<24x24xf32>
    %cst_40 = arith.constant 0.000000e+00 : f32
    %70 = vector.broadcast %cst_40 : f32 to vector<24x24xf32>
    %71 = arith.subf %70, %19 : vector<24x24xf32>
    %cst_41 = arith.constant 1.02040815 : f32
    %72 = vector.broadcast %cst_41 : f32 to vector<24x24xf32>
    %73 = arith.mulf %71, %72 : vector<24x24xf32>
    %74 = math.exp %73 : vector<24x24xf32>
    %75 = arith.mulf %69, %74 : vector<24x24xf32>
    %76 = arith.addf %49, %75 : vector<24x24xf32>
    %c2 = arith.constant 2 : index
    %c0_42 = arith.constant 0 : index
    %c0_43 = arith.constant 0 : index
    %77 = vector.load %arg5[%c2, %c0_42, %c0_43] : memref<3x24x24xf32, #tpu.memory_space<vmem>>, vector<1x24x24xf32>
    %78 = vector.shape_cast %77 : vector<1x24x24xf32> to vector<24x24xf32>
    %cst_44 = arith.constant 0.000000e+00 : f32
    %79 = vector.broadcast %cst_44 : f32 to vector<24x24xf32>
    %80 = arith.subf %79, %17 : vector<24x24xf32>
    %cst_45 = arith.constant 5.000000e-01 : f32
    %81 = vector.broadcast %cst_45 : f32 to vector<24x24xf32>
    %82 = arith.mulf %80, %81 : vector<24x24xf32>
    %83 = math.exp %82 : vector<24x24xf32>
    %84 = arith.mulf %78, %83 : vector<24x24xf32>
    %85 = arith.addf %58, %84 : vector<24x24xf32>
    %c2_46 = arith.constant 2 : index
    %c0_47 = arith.constant 0 : index
    %c0_48 = arith.constant 0 : index
    %86 = vector.load %arg6[%c2_46, %c0_47, %c0_48] : memref<3x24x24xf32, #tpu.memory_space<vmem>>, vector<1x24x24xf32>
    %87 = vector.shape_cast %86 : vector<1x24x24xf32> to vector<24x24xf32>
    %cst_49 = arith.constant 0.000000e+00 : f32
    %88 = vector.broadcast %cst_49 : f32 to vector<24x24xf32>
    %89 = arith.subf %88, %18 : vector<24x24xf32>
    %cst_50 = arith.constant 5.000000e-01 : f32
    %90 = vector.broadcast %cst_50 : f32 to vector<24x24xf32>
    %91 = arith.mulf %89, %90 : vector<24x24xf32>
    %92 = math.exp %91 : vector<24x24xf32>
    %93 = arith.mulf %87, %92 : vector<24x24xf32>
    %94 = arith.addf %67, %93 : vector<24x24xf32>
    %c2_51 = arith.constant 2 : index
    %c0_52 = arith.constant 0 : index
    %c0_53 = arith.constant 0 : index
    %95 = vector.load %arg7[%c2_51, %c0_52, %c0_53] : memref<3x24x24xf32, #tpu.memory_space<vmem>>, vector<1x24x24xf32>
    %96 = vector.shape_cast %95 : vector<1x24x24xf32> to vector<24x24xf32>
    %cst_54 = arith.constant 0.000000e+00 : f32
    %97 = vector.broadcast %cst_54 : f32 to vector<24x24xf32>
    %98 = arith.subf %97, %19 : vector<24x24xf32>
    %cst_55 = arith.constant 5.000000e-01 : f32
    %99 = vector.broadcast %cst_55 : f32 to vector<24x24xf32>
    %100 = arith.mulf %98, %99 : vector<24x24xf32>
    %101 = math.exp %100 : vector<24x24xf32>
    %102 = arith.mulf %96, %101 : vector<24x24xf32>
    %103 = arith.addf %76, %102 : vector<24x24xf32>
    %c0_56 = arith.constant 0 : index
    %c0_57 = arith.constant 0 : index
    %c0_58 = arith.constant 0 : index
    %104 = vector.load %arg8[%c0_56, %c0_57, %c0_58] : memref<1x24x24xf32, #tpu.memory_space<vmem>>, vector<1x24x24xf32>
    %105 = vector.shape_cast %104 : vector<1x24x24xf32> to vector<24x24xf32>
    %106 = vector.shape_cast %85 : vector<24x24xf32> to vector<1x24x24xf32>
    tpu.vector_store %arg8[%c0_56, %c0_57, %c0_58], %106 {strides = array<i32>} : memref<1x24x24xf32, #tpu.memory_space<vmem>>, vector<1x24x24xf32>,
    %c0_59 = arith.constant 0 : index
    %c0_60 = arith.constant 0 : index
    %c0_61 = arith.constant 0 : index
    %107 = vector.load %arg9[%c0_59, %c0_60, %c0_61] : memref<1x24x24xf32, #tpu.memory_space<vmem>>, vector<1x24x24xf32>
    %108 = vector.shape_cast %107 : vector<1x24x24xf32> to vector<24x24xf32>
    %109 = vector.shape_cast %94 : vector<24x24xf32> to vector<1x24x24xf32>
    tpu.vector_store %arg9[%c0_59, %c0_60, %c0_61], %109 {strides = array<i32>} : memref<1x24x24xf32, #tpu.memory_space<vmem>>, vector<1x24x24xf32>,
    %c0_62 = arith.constant 0 : index
    %c0_63 = arith.constant 0 : index
    %c0_64 = arith.constant 0 : index
    %110 = vector.load %arg10[%c0_62, %c0_63, %c0_64] : memref<1x24x24xf32, #tpu.memory_space<vmem>>, vector<1x24x24xf32>
    %111 = vector.shape_cast %110 : vector<1x24x24xf32> to vector<24x24xf32>
    %112 = vector.shape_cast %103 : vector<24x24xf32> to vector<1x24x24xf32>
    tpu.vector_store %arg10[%c0_62, %c0_63, %c0_64], %112 {strides = array<i32>} : memref<1x24x24xf32, #tpu.memory_space<vmem>>, vector<1x24x24xf32>,
    return
  }
  func.func @transform_0(%arg0: i32) -> (i32, i32, i32) {
    %c0_i32 = arith.constant 0 : i32
    %c0_i32_0 = arith.constant 0 : i32
    %c0_i32_1 = arith.constant 0 : i32
    return %arg0, %c0_i32, %c0_i32_0 : i32, i32, i32
  }
  func.func @transform_1(%arg0: i32) -> (i32, i32, i32) {
    %c0_i32 = arith.constant 0 : i32
    %c0_i32_0 = arith.constant 0 : i32
    %c0_i32_1 = arith.constant 0 : i32
    return %arg0, %c0_i32, %c0_i32_0 : i32, i32, i32
  }
  func.func @transform_2(%arg0: i32) -> (i32, i32, i32) {
    %c0_i32 = arith.constant 0 : i32
    %c0_i32_0 = arith.constant 0 : i32
    %c0_i32_1 = arith.constant 0 : i32
    return %arg0, %c0_i32, %c0_i32_0 : i32, i32, i32
  }
  func.func @transform_3(%arg0: i32) -> (i32, i32, i32) {
    %c0_i32 = arith.constant 0 : i32
    %c0_i32_0 = arith.constant 0 : i32
    %c0_i32_1 = arith.constant 0 : i32
    return %arg0, %c0_i32, %c0_i32_0 : i32, i32, i32
  }
  func.func @transform_4(%arg0: i32) -> (i32, i32, i32) {
    %c0_i32 = arith.constant 0 : i32
    %c0_i32_0 = arith.constant 0 : i32
    %c0_i32_1 = arith.constant 0 : i32
    %c0_i32_2 = arith.constant 0 : i32
    return %c0_i32, %c0_i32_0, %c0_i32_1 : i32, i32, i32
  }
  func.func @transform_5(%arg0: i32) -> (i32, i32, i32) {
    %c0_i32 = arith.constant 0 : i32
    %c0_i32_0 = arith.constant 0 : i32
    %c0_i32_1 = arith.constant 0 : i32
    %c0_i32_2 = arith.constant 0 : i32
    return %c0_i32, %c0_i32_0, %c0_i32_1 : i32, i32, i32
  }
  func.func @transform_6(%arg0: i32) -> (i32, i32, i32) {
    %c0_i32 = arith.constant 0 : i32
    %c0_i32_0 = arith.constant 0 : i32
    %c0_i32_1 = arith.constant 0 : i32
    %c0_i32_2 = arith.constant 0 : i32
    return %c0_i32, %c0_i32_0, %c0_i32_1 : i32, i32, i32
  }
  func.func @transform_7(%arg0: i32) -> (i32, i32, i32) {
    %c0_i32 = arith.constant 0 : i32
    %c0_i32_0 = arith.constant 0 : i32
    %c0_i32_1 = arith.constant 0 : i32
    return %arg0, %c0_i32, %c0_i32_0 : i32, i32, i32
  }
  func.func @transform_8(%arg0: i32) -> (i32, i32, i32) {
    %c0_i32 = arith.constant 0 : i32
    %c0_i32_0 = arith.constant 0 : i32
    %c0_i32_1 = arith.constant 0 : i32
    return %arg0, %c0_i32, %c0_i32_0 : i32, i32, i32
  }
  func.func @transform_9(%arg0: i32) -> (i32, i32, i32) {
    %c0_i32 = arith.constant 0 : i32
    %c0_i32_0 = arith.constant 0 : i32
    %c0_i32_1 = arith.constant 0 : i32
    return %arg0, %c0_i32, %c0_i32_0 : i32, i32, i32
  }
}

module attributes {stable_mosaic.version = 11 : i64} {
  func.func @_gp_post_kernel(%arg0: i32, %arg1: memref<1x24x24xf32, #tpu.memory_space<vmem>>, %arg2: memref<1x24x1xf32, #tpu.memory_space<vmem>>, %arg3: memref<1x24x24xf32, #tpu.memory_space<vmem>>, %arg4: memref<1x1x24xf32, #tpu.memory_space<vmem>>, %arg5: memref<1x1x24xf32, #tpu.memory_space<vmem>>, %arg6: memref<1x24x24xf32, #tpu.memory_space<vmem>>) attributes {dimension_semantics = [#tpu.dimension_semantics<parallel>], iteration_bounds = array<i64: 2>, scalar_prefetch = 0 : i64, scratch_operands = 0 : i64, tpu.core_type = #tpu.core_type<tc>, window_params = [{transform_indices = @transform_0, window_bounds = array<i64: 1, 24, 24>}, {transform_indices = @transform_1, window_bounds = array<i64: 1, 24, 1>}, {transform_indices = @transform_2, window_bounds = array<i64: 1, 24, 24>}, {transform_indices = @transform_3, window_bounds = array<i64: 1, 1, 24>}, {transform_indices = @transform_4, window_bounds = array<i64: 1, 1, 24>}, {transform_indices = @transform_5, window_bounds = array<i64: 1, 24, 24>}]} {
    %c0 = arith.constant 0 : index
    %c0_0 = arith.constant 0 : index
    %c0_1 = arith.constant 0 : index
    %0 = vector.load %arg1[%c0, %c0_0, %c0_1] : memref<1x24x24xf32, #tpu.memory_space<vmem>>, vector<1x24x24xf32>
    %1 = vector.shape_cast %0 : vector<1x24x24xf32> to vector<24x24xf32>
    %c0_2 = arith.constant 0 : index
    %c0_3 = arith.constant 0 : index
    %c0_4 = arith.constant 0 : index
    %2 = vector.load %arg2[%c0_2, %c0_3, %c0_4] : memref<1x24x1xf32, #tpu.memory_space<vmem>>, vector<1x24x1xf32>
    %3 = vector.shape_cast %2 : vector<1x24x1xf32> to vector<24x1xf32>
    %c0_5 = arith.constant 0 : index
    %c0_6 = arith.constant 0 : index
    %c0_7 = arith.constant 0 : index
    %4 = vector.load %arg3[%c0_5, %c0_6, %c0_7] : memref<1x24x24xf32, #tpu.memory_space<vmem>>, vector<1x24x24xf32>
    %5 = vector.shape_cast %4 : vector<1x24x24xf32> to vector<24x24xf32>
    %6 = vector.broadcast %3 : vector<24x1xf32> to vector<24x24xf32>
    %7 = arith.mulf %1, %6 : vector<24x24xf32>
    %cst = arith.constant dense<0.000000e+00> : vector<24xf32>
    %8 = vector.multi_reduction <add>, %7, %cst [0] : vector<24x24xf32> to vector<24xf32>
    %9 = vector.shape_cast %8 : vector<24xf32> to vector<1x24xf32>
    %10 = arith.mulf %1, %1 : vector<24x24xf32>
    %cst_8 = arith.constant dense<0.000000e+00> : vector<24xf32>
    %11 = vector.multi_reduction <add>, %10, %cst_8 [0] : vector<24x24xf32> to vector<24xf32>
    %12 = vector.shape_cast %11 : vector<24xf32> to vector<1x24xf32>
    %cst_9 = arith.constant dense<0.000000e+00> : vector<24x24xf32>
    %13 = tpu.matmul %1, %1, %cst_9 {dimension_numbers = #tpu.dot_dimension_numbers<[0], [0], [1], [1], [0, 1, 1, 1], [], []>} : vector<24x24xf32>, vector<24x24xf32>, vector<24x24xf32> -> vector<24x24xf32>
    %14 = tpu.iota {dimensions = array<i32: 0>} : vector<24x24xi32>
    %15 = tpu.iota {dimensions = array<i32: 1>} : vector<24x24xi32>
    %16 = arith.cmpi eq, %14, %15 : vector<24x24xi32>
    %cst_10 = arith.constant 0.000000e+00 : f32
    %17 = vector.broadcast %cst_10 : f32 to vector<24x24xf32>
    %18 = arith.select %16, %5, %17 : vector<24x24xi1>, vector<24x24xf32>
    %cst_11 = arith.constant dense<0.000000e+00> : vector<24xf32>
    %19 = vector.multi_reduction <add>, %18, %cst_11 [0] : vector<24x24xf32> to vector<24xf32>
    %20 = vector.shape_cast %19 : vector<24xf32> to vector<1x24xf32>
    %21 = arith.subf %20, %12 : vector<1x24xf32>
    %cst_12 = arith.constant 9.99999993E-9 : f32
    %22 = vector.broadcast %cst_12 : f32 to vector<1x24xf32>
    %23 = arith.maximumf %21, %22 : vector<1x24xf32>
    %24 = math.sqrt %23 : vector<1x24xf32>
    %cst_13 = arith.constant 1.000000e-01 : f32
    %25 = vector.broadcast %cst_13 : f32 to vector<1x24xf32>
    %26 = arith.addf %24, %25 : vector<1x24xf32>
    %27 = arith.subf %5, %13 : vector<24x24xf32>
    %28 = arith.extui %16 : vector<24x24xi1> to vector<24x24xi32>
    %29 = arith.sitofp %28 : vector<24x24xi32> to vector<24x24xf32>
    %cst_14 = arith.constant 1.000100e-02 : f32
    %30 = vector.broadcast %cst_14 : f32 to vector<24x24xf32>
    %31 = arith.mulf %30, %29 : vector<24x24xf32>
    %32 = arith.addf %27, %31 : vector<24x24xf32>
    %c0_15 = arith.constant 0 : index
    %c0_16 = arith.constant 0 : index
    %c0_17 = arith.constant 0 : index
    %33 = vector.load %arg4[%c0_15, %c0_16, %c0_17] : memref<1x1x24xf32, #tpu.memory_space<vmem>>, vector<1x1x24xf32>
    %34 = vector.shape_cast %33 : vector<1x1x24xf32> to vector<1x24xf32>
    %35 = vector.shape_cast %9 : vector<1x24xf32> to vector<1x1x24xf32>
    tpu.vector_store %arg4[%c0_15, %c0_16, %c0_17], %35 {strides = array<i32>} : memref<1x1x24xf32, #tpu.memory_space<vmem>>, vector<1x1x24xf32>,
    %c0_18 = arith.constant 0 : index
    %c0_19 = arith.constant 0 : index
    %c0_20 = arith.constant 0 : index
    %36 = vector.load %arg5[%c0_18, %c0_19, %c0_20] : memref<1x1x24xf32, #tpu.memory_space<vmem>>, vector<1x1x24xf32>
    %37 = vector.shape_cast %36 : vector<1x1x24xf32> to vector<1x24xf32>
    %38 = vector.shape_cast %26 : vector<1x24xf32> to vector<1x1x24xf32>
    tpu.vector_store %arg5[%c0_18, %c0_19, %c0_20], %38 {strides = array<i32>} : memref<1x1x24xf32, #tpu.memory_space<vmem>>, vector<1x1x24xf32>,
    %c0_21 = arith.constant 0 : index
    %c0_22 = arith.constant 0 : index
    %c0_23 = arith.constant 0 : index
    %39 = vector.load %arg6[%c0_21, %c0_22, %c0_23] : memref<1x24x24xf32, #tpu.memory_space<vmem>>, vector<1x24x24xf32>
    %40 = vector.shape_cast %39 : vector<1x24x24xf32> to vector<24x24xf32>
    %41 = vector.shape_cast %32 : vector<24x24xf32> to vector<1x24x24xf32>
    tpu.vector_store %arg6[%c0_21, %c0_22, %c0_23], %41 {strides = array<i32>} : memref<1x24x24xf32, #tpu.memory_space<vmem>>, vector<1x24x24xf32>,
    return
  }
  func.func @transform_0(%arg0: i32) -> (i32, i32, i32) {
    %c0_i32 = arith.constant 0 : i32
    %c0_i32_0 = arith.constant 0 : i32
    %c0_i32_1 = arith.constant 0 : i32
    return %arg0, %c0_i32, %c0_i32_0 : i32, i32, i32
  }
  func.func @transform_1(%arg0: i32) -> (i32, i32, i32) {
    %c0_i32 = arith.constant 0 : i32
    %c0_i32_0 = arith.constant 0 : i32
    %c0_i32_1 = arith.constant 0 : i32
    return %arg0, %c0_i32, %c0_i32_0 : i32, i32, i32
  }
  func.func @transform_2(%arg0: i32) -> (i32, i32, i32) {
    %c0_i32 = arith.constant 0 : i32
    %c0_i32_0 = arith.constant 0 : i32
    %c0_i32_1 = arith.constant 0 : i32
    return %arg0, %c0_i32, %c0_i32_0 : i32, i32, i32
  }
  func.func @transform_3(%arg0: i32) -> (i32, i32, i32) {
    %c0_i32 = arith.constant 0 : i32
    %c0_i32_0 = arith.constant 0 : i32
    %c0_i32_1 = arith.constant 0 : i32
    return %arg0, %c0_i32, %c0_i32_0 : i32, i32, i32
  }
  func.func @transform_4(%arg0: i32) -> (i32, i32, i32) {
    %c0_i32 = arith.constant 0 : i32
    %c0_i32_0 = arith.constant 0 : i32
    %c0_i32_1 = arith.constant 0 : i32
    return %arg0, %c0_i32, %c0_i32_0 : i32, i32, i32
  }
  func.func @transform_5(%arg0: i32) -> (i32, i32, i32) {
    %c0_i32 = arith.constant 0 : i32
    %c0_i32_0 = arith.constant 0 : i32
    %c0_i32_1 = arith.constant 0 : i32
    return %arg0, %c0_i32, %c0_i32_0 : i32, i32, i32
  }
}

</mosaic_0001>

<llo_original>
// kernel: custom-call.4
$region0: #{custom-call.4}
  %s0 = inlined_call_operand.vmem [shape: f32[2,24,24], index: 0, kind: input, shape index: {}]
  %s1 = inlined_call_operand.vmem [shape: f32[2,24,24], index: 1, kind: output, shape index: {}]
  $region1: #{custom-call.4} parent=0
    #allocation0 [shape = 'u8[24576]{0}', space=vmem, size = 0x6000, scoped, tag = 'operand span for operand 0']
    #allocation1 [shape = 'u8[24576]{0}', space=vmem, size = 0x6000, scoped, tag = 'operand span for operand 1']
    loop: start=0, step=1, limit=4
    $region2: #{custom-call.4} parent=1 // loop_pre_header
      _
    $region3: #{custom-call.4} parent=1 // loop_header
      %s3 = sphi 0, %s7
      %p4 = scmp.ge.s32.totalorder %s3, 4
      %s10 = sphi 0, %s29
      %s11 = sphi 0, %s25
      %s12 = sphi 0, %s21
      %s13 = sphi 0, %s10
      %s14 = sphi 0, %s11
      %s15 = sphi 0, %s12
      %s16 = sphi 0, %s13
      %s17 = sphi 0, %s14
      %s18 = sphi 0, %s15
    $region4: #{custom-call.4} parent=1 // loop_header_branch
      %6 = sbr.rel (%p4) target = $region8
    $region5: #{custom-call.4} parent=1 // loop_body
      %s8 = ssub.s32 %s3, 1
      %s9 = ssub.s32 %s3, 2
      %s19 = sadd.s32 1, %s12
      %p20 = scmp.ge.s32.totalorder %s19, 1
      %s21 = scalar_select %p20, 0, %s19
      %s22 = sadd.s32 1, %s11
      %s23 = scalar_select %p20, %s22, %s11
      %p24 = scmp.ge.s32.totalorder %s23, 1
      %s25 = scalar_select %p24, 0, %s23
      %s26 = sadd.s32 1, %s10
      %s27 = scalar_select %p24, %s26, %s10
      %p28 = scmp.ge.s32.totalorder %s27, 2
      %s29 = scalar_select %p28, 0, %s27
      %p30 = scmp.le.s32.totalorder 1, %s3
      %p31 = scmp.lt.s32.totalorder %s3, 3
      %p32 = pnand %p30, %p31
      %p33 = pneg %p32
      // Predicated region
      $region9: #{custom-call.4} parent=5 // pred_check
        _
      $region10: #{custom-call.4} parent=5 // pred_check_branch
        %35 = sbr.rel (%p32) target = $region12
      $region11: #{custom-call.4} parent=5 // pred_region
        %s36 = ssub.s32 %s3, 1
      $region12: #{custom-call.4} parent=5 // pred_fallthru
        _
      %p37 = scmp.lt.s32.totalorder %s3, 2
      // Predicated region
      $region13: #{custom-call.4} parent=5 // pred_check
        %p38 = pneg %p37
      $region14: #{custom-call.4} parent=5 // pred_check_branch
        %40 = sbr.rel (%p38) target = $region16
      $region15: #{custom-call.4} parent=5 // pred_region
        %s41 = sand.u32 %s3, 1
        %s42 = sand.u32 %s3, 1
        %s43 = smul.addr %s42, 24
        %s44 = scalar_lea.vmem [#allocation0], %s43
        %s45 = sadd.s32 %s12, %s11
        %s46 = smul.addr %s10, 3
        %s47 = sadd.s32 %s45, %s46
        %s48 = smul.addr %s47, 8
        %s49 = scalar_lea.vmem %s0, %s48
        // Predicated region
        $region17: #{custom-call.4} parent=15 // pred_check
          _
        $region18: #{custom-call.4} parent=15 // pred_check_branch
          %51 = sbr.rel (0) target = $region20
        $region19: #{custom-call.4} parent=15 // pred_region
          // Predicated region
          $region21: #{custom-call.4} parent=19 // pred_check
            _
          $region22: #{custom-call.4} parent=19 // pred_check_branch
            %53 = sbr.rel (0) target = $region24
          $region23: #{custom-call.4} parent=19 // pred_region
            // Predicated region
            $region36: #{custom-call.4} parent=23 // pred_check
              _
            $region37: #{custom-call.4} parent=23 // pred_check_branch
              %73 = sbr.rel (0) target = $region39
            $region38: #{custom-call.4} parent=23 // pred_region
              loop: start=0, step=1, limit=1
              $region40: #{custom-call.4} parent=38 // loop_pre_header
                _
              $region41: #{custom-call.4} parent=38 // loop_header
                %s75 = sphi 0, %s79
                %p76 = scmp.ge.s32.totalorder %s75, 1
                %s80 = sphi %s49, %s49
                %s81 = sphi %s44, %s44
              $region42: #{custom-call.4} parent=38 // loop_header_branch
                %78 = sbr.rel (%p76) target = $region46
              $region43: #{custom-call.4} parent=38 // loop_body
                %v82 = vld [vmem:[%s80] sm:$0xff]
                %83 = vst [vmem:[%s81] sm:$0xff] %v82
                %v84 = vld [vmem:[%s80 + $0x8] sm:$0xff]
                %85 = vst [vmem:[%s81 + $0x8] sm:$0xff] %v84
                %v86 = vld [vmem:[%s80 + $0x10] sm:$0xff]
                %87 = vst [vmem:[%s81 + $0x10] sm:$0xff] %v86
              $region44: #{custom-call.4} parent=38 // loop_footer
                %s79 = sadd.s32 1, %s75
              $region45: #{custom-call.4} parent=38 // loop_footer_branch
                %74 = sbr.rel target = $region41
              $region46: #{custom-call.4} parent=38 // loop_exit
                _
            $region39: #{custom-call.4} parent=23 // pred_fallthru
              _
            // Predicated region
            $region47: #{custom-call.4} parent=23 // pred_check
              _
            $region48: #{custom-call.4} parent=23 // pred_check_branch
              %89 = sbr.rel target = $region50
            $region49: #{custom-call.4} parent=23 // pred_region
              _
            $region50: #{custom-call.4} parent=23 // pred_fallthru
              _
          $region24: #{custom-call.4} parent=19 // pred_fallthru
            _
          // Predicated region
          $region25: #{custom-call.4} parent=19 // pred_check
            _
          $region26: #{custom-call.4} parent=19 // pred_check_branch
            %55 = sbr.rel target = $region28
          $region27: #{custom-call.4} parent=19 // pred_region
            %s57 = ssub.s32 256, 1
            loop: start=0, step=1, limit=1
            $region29: #{custom-call.4} parent=27 // loop_pre_header
              _
            $region30: #{custom-call.4} parent=27 // loop_header
              %s59 = sphi 0, %s63
              %p60 = scmp.ge.s32.totalorder %s59, 1
              %s64 = sphi %s49, %s49
              %s65 = sphi %s44, %s44
            $region31: #{custom-call.4} parent=27 // loop_header_branch
              %62 = sbr.rel (%p60) target = $region35
            $region32: #{custom-call.4} parent=27 // loop_body
              %v66 = vld [vmem:[%s64] sm:%s57]
              %67 = vst [vmem:[%s65] sm:%s57] %v66
              %v68 = vld [vmem:[%s64 + $0x8] sm:%s57]
              %69 = vst [vmem:[%s65 + $0x8] sm:%s57] %v68
              %v70 = vld [vmem:[%s64 + $0x10] sm:%s57]
              %71 = vst [vmem:[%s65 + $0x10] sm:%s57] %v70
            $region33: #{custom-call.4} parent=27 // loop_footer
              %s63 = sadd.s32 1, %s59
            $region34: #{custom-call.4} parent=27 // loop_footer_branch
              %58 = sbr.rel target = $region30
            $region35: #{custom-call.4} parent=27 // loop_exit
              _
          $region28: #{custom-call.4} parent=19 // pred_fallthru
            _
        $region20: #{custom-call.4} parent=15 // pred_fallthru
          _
        %90 = vnop
      $region16: #{custom-call.4} parent=5 // pred_fallthru
        _
      %p91 = scmp.le.s32.totalorder 1, %s3
      %p92 = scmp.lt.s32.totalorder %s3, 3
      %p93 = pnand %p91, %p92
      %p94 = pneg %p93
      // Predicated region
      $region51: #{custom-call.4} parent=5 // pred_check
        _
      $region52: #{custom-call.4} parent=5 // pred_check_branch
        %96 = sbr.rel (%p93) target = $region54
      $region53: #{custom-call.4} parent=5 // pred_region
        %s97 = ssub.s32 %s3, 1
        %s98 = sand.u32 %s8, 1
        %s99 = sand.u32 %s8, 1
        %s100 = smul.addr %s99, 24
        %s101 = scalar_lea.vmem [#allocation0], %s100
        %s102 = sand.u32 %s8, 1
        %s103 = sand.u32 %s8, 1
        %s104 = smul.addr %s103, 24
        %s105 = scalar_lea.vmem [#allocation0], %s104
        %s106 = sand.u32 %s8, 1
        %s107 = sand.u32 %s8, 1
        %s108 = smul.addr %s107, 24
        %s109 = scalar_lea.vmem [#allocation1], %s108
        %110 = vst [vmem:[%s109] sm:$0xff] 0.0
        %s111 = scalar_lea.vmem %s109, 8 [#allocation1]
        %112 = vst [vmem:[%s111] sm:$0xff] 0.0
        %s113 = scalar_lea.vmem %s109, 16 [#allocation1]
        %114 = vst [vmem:[%s113] sm:$0xff] 0.0
        %vm115 = vcmask 7168
        %v116 = vld [vmem:[%s109] ss:$0 sm:$0xff]
        %v117 = vld [vmem:[%s101] ss:$0 sm:$0xff]
        %v118 = vmul.f32 %v116, %v116
        %119 = vadd.xlane.f32.xlu0 %v118
        %v120 = vpop.xlane.xlu0 %119
        %v121 = vsub.f32 %v117, %v120
        %v122 = vrsqrt.pop %v121
        %v123 = vld [vmem:[%s101] sm:$0xff]
        %v124 = vld [vmem:[%s109] sm:$0xff]
        %v125 = vmul.f32 %v124, %v116
        %126 = vadd.xlane.f32.xlu0 %v125
        %v127 = vpop.xlane.xlu0 %126
        %v128 = vsub.f32 %v123, %v127
        %v129 = vmul.f32 %v128, %v122
        %v130 = vsel %vm115, %v129, 0.0
        %v131 = vadd.f32 %v124, %v130
        %132 = vst [vmem:[%s109] sm:$0xff] %v131
        %s133 = scalar_lea.vmem %s101, 8 [#allocation0]
        %v134 = vld [vmem:[%s133] sm:$0xff]
        %s135 = scalar_lea.vmem %s109, 8 [#allocation1]
        %v136 = vld [vmem:[%s135] sm:$0xff]
        %v137 = vmul.f32 %v136, %v116
        %138 = vadd.xlane.f32.xlu0 %v137
        %v139 = vpop.xlane.xlu0 %138
        %v140 = vsub.f32 %v134, %v139
        %v141 = vmul.f32 %v140, %v122
        %v142 = vsel %vm115, %v141, 0.0
        %v143 = vadd.f32 %v136, %v142
        %s144 = scalar_lea.vmem %s109, 8 [#allocation1]
        %145 = vst [vmem:[%s144] sm:$0xff] %v143
        %s146 = scalar_lea.vmem %s101, 16 [#allocation0]
        %v147 = vld [vmem:[%s146] sm:$0xff]
        %s148 = scalar_lea.vmem %s109, 16 [#allocation1]
        %v149 = vld [vmem:[%s148] sm:$0xff]
        %v150 = vmul.f32 %v149, %v116
        %151 = vadd.xlane.f32.xlu0 %v150
        %v152 = vpop.xlane.xlu0 %151
        %v153 = vsub.f32 %v147, %v152
        %v154 = vmul.f32 %v153, %v122
        %v155 = vsel %vm115, %v154, 0.0
        %v156 = vadd.f32 %v149, %v155
        %s157 = scalar_lea.vmem %s109, 16 [#allocation1]
        %158 = vst [vmem:[%s157] sm:$0xff] %v156
        %vm159 = vcmask 15368
        %s160 = scalar_lea.vmem %s109, 1 [#allocation1]
        %v161 = vld [vmem:[%s160] ss:$0 sm:$0xff]
        %s162 = scalar_lea.vmem %s101, 1 [#allocation0]
        %v163 = vld [vmem:[%s162] ss:$0 sm:$0xff]
        %v164 = vmul.f32 %v161, %v161
        %165 = vadd.xlane.f32.xlu0 %v164
        %v166 = vpop.xlane.xlu0 %165
        %v167 = vsub.f32 %v163, %v166
        %v168 = vrsqrt.pop %v167
        %v169 = vld [vmem:[%s101] sm:$0xff]
        %v170 = vld [vmem:[%s109] sm:$0xff]
        %v171 = vmul.f32 %v170, %v161
        %172 = vadd.xlane.f32.xlu0 %v171
        %v173 = vpop.xlane.xlu0 %172
        %v174 = vsub.f32 %v169, %v173
        %v175 = vmul.f32 %v174, %v168
        %vm176 = vcmask 1047553
        %vm177 = vmand %vm159, %vm176
        %v178 = vsel %vm177, %v175, 0.0
        %v179 = vadd.f32 %v170, %v178
        %180 = vst [vmem:[%s109] sm:$0xff] %v179
        %s181 = scalar_lea.vmem %s101, 8 [#allocation0]
        %v182 = vld [vmem:[%s181] sm:$0xff]
        %s183 = scalar_lea.vmem %s109, 8 [#allocation1]
        %v184 = vld [vmem:[%s183] sm:$0xff]
        %v185 = vmul.f32 %v184, %v161
        %186 = vadd.xlane.f32.xlu0 %v185
        %v187 = vpop.xlane.xlu0 %186
        %v188 = vsub.f32 %v182, %v187
        %v189 = vmul.f32 %v188, %v168
        %v190 = vsel %vm159, %v189, 0.0
        %v191 = vadd.f32 %v184, %v190
        %s192 = scalar_lea.vmem %s109, 8 [#allocation1]
        %193 = vst [vmem:[%s192] sm:$0xff] %v191
        %s194 = scalar_lea.vmem %s101, 16 [#allocation0]
        %v195 = vld [vmem:[%s194] sm:$0xff]
        %s196 = scalar_lea.vmem %s109, 16 [#allocation1]
        %v197 = vld [vmem:[%s196] sm:$0xff]
        %v198 = vmul.f32 %v197, %v161
        %199 = vadd.xlane.f32.xlu0 %v198
        %v200 = vpop.xlane.xlu0 %199
        %v201 = vsub.f32 %v195, %v200
        %v202 = vmul.f32 %v201, %v168
        %v203 = vsel %vm159, %v202, 0.0
        %v204 = vadd.f32 %v197, %v203
        %s205 = scalar_lea.vmem %s109, 16 [#allocation1]
        %206 = vst [vmem:[%s205] sm:$0xff] %v204
        %vm207 = vcmask 23568
        %s208 = scalar_lea.vmem %s109, 2 [#allocation1]
        %v209 = vld [vmem:[%s208] ss:$0 sm:$0xff]
        %s210 = scalar_lea.vmem %s101, 2 [#allocation0]
        %v211 = vld [vmem:[%s210] ss:$0 sm:$0xff]
        %v212 = vmul.f32 %v209, %v209
        %213 = vadd.xlane.f32.xlu0 %v212
        %v214 = vpop.xlane.xlu0 %213
        %v215 = vsub.f32 %v211, %v214
        %v216 = vrsqrt.pop %v215
        %v217 = vld [vmem:[%s101] sm:$0xff]
        %v218 = vld [vmem:[%s109] sm:$0xff]
        %v219 = vmul.f32 %v218, %v209
        %220 = vadd.xlane.f32.xlu0 %v219
        %v221 = vpop.xlane.xlu0 %220
        %v222 = vsub.f32 %v217, %v221
        %v223 = vmul.f32 %v222, %v216
        %vm224 = vcmask 1047554
        %vm225 = vmand %vm207, %vm224
        %v226 = vsel %vm225, %v223, 0.0
        %v227 = vadd.f32 %v218, %v226
        %228 = vst [vmem:[%s109] sm:$0xff] %v227
        %s229 = scalar_lea.vmem %s101, 8 [#allocation0]
        %v230 = vld [vmem:[%s229] sm:$0xff]
        %s231 = scalar_lea.vmem %s109, 8 [#allocation1]
        %v232 = vld [vmem:[%s231] sm:$0xff]
        %v233 = vmul.f32 %v232, %v209
        %234 = vadd.xlane.f32.xlu0 %v233
        %v235 = vpop.xlane.xlu0 %234
        %v236 = vsub.f32 %v230, %v235
        %v237 = vmul.f32 %v236, %v216
        %v238 = vsel %vm207, %v237, 0.0
        %v239 = vadd.f32 %v232, %v238
        %s240 = scalar_lea.vmem %s109, 8 [#allocation1]
        %241 = vst [vmem:[%s240] sm:$0xff] %v239
        %s242 = scalar_lea.vmem %s101, 16 [#allocation0]
        %v243 = vld [vmem:[%s242] sm:$0xff]
        %s244 = scalar_lea.vmem %s109, 16 [#allocation1]
        %v245 = vld [vmem:[%s244] sm:$0xff]
        %v246 = vmul.f32 %v245, %v209
        %247 = vadd.xlane.f32.xlu0 %v246
        %v248 = vpop.xlane.xlu0 %247
        %v249 = vsub.f32 %v243, %v248
        %v250 = vmul.f32 %v249, %v216
        %v251 = vsel %vm207, %v250, 0.0
        %v252 = vadd.f32 %v245, %v251
        %s253 = scalar_lea.vmem %s109, 16 [#allocation1]
        %254 = vst [vmem:[%s253] sm:$0xff] %v252
        %vm255 = vcmask 31768
        %s256 = scalar_lea.vmem %s109, 3 [#allocation1]
        %v257 = vld [vmem:[%s256] ss:$0 sm:$0xff]
        %s258 = scalar_lea.vmem %s101, 3 [#allocation0]
        %v259 = vld [vmem:[%s258] ss:$0 sm:$0xff]
        %v260 = vmul.f32 %v257, %v257
        %261 = vadd.xlane.f32.xlu0 %v260
        %v262 = vpop.xlane.xlu0 %261
        %v263 = vsub.f32 %v259, %v262
        %v264 = vrsqrt.pop %v263
        %v265 = vld [vmem:[%s101] sm:$0xff]
        %v266 = vld [vmem:[%s109] sm:$0xff]
        %v267 = vmul.f32 %v266, %v257
        %268 = vadd.xlane.f32.xlu0 %v267
        %v269 = vpop.xlane.xlu0 %268
        %v270 = vsub.f32 %v265, %v269
        %v271 = vmul.f32 %v270, %v264
        %vm272 = vcmask 1047555
        %vm273 = vmand %vm255, %vm272
        %v274 = vsel %vm273, %v271, 0.0
        %v275 = vadd.f32 %v266, %v274
        %276 = vst [vmem:[%s109] sm:$0xff] %v275
        %s277 = scalar_lea.vmem %s101, 8 [#allocation0]
        %v278 = vld [vmem:[%s277] sm:$0xff]
        %s279 = scalar_lea.vmem %s109, 8 [#allocation1]
        %v280 = vld [vmem:[%s279] sm:$0xff]
        %v281 = vmul.f32 %v280, %v257
        %282 = vadd.xlane.f32.xlu0 %v281
        %v283 = vpop.xlane.xlu0 %282
        %v284 = vsub.f32 %v278, %v283
        %v285 = vmul.f32 %v284, %v264
        %v286 = vsel %vm255, %v285, 0.0
        %v287 = vadd.f32 %v280, %v286
        %s288 = scalar_lea.vmem %s109, 8 [#allocation1]
        %289 = vst [vmem:[%s288] sm:$0xff] %v287
        %s290 = scalar_lea.vmem %s101, 16 [#allocation0]
        %v291 = vld [vmem:[%s290] sm:$0xff]
        %s292 = scalar_lea.vmem %s109, 16 [#allocation1]
        %v293 = vld [vmem:[%s292] sm:$0xff]
        %v294 = vmul.f32 %v293, %v257
        %295 = vadd.xlane.f32.xlu0 %v294
        %v296 = vpop.xlane.xlu0 %295
        %v297 = vsub.f32 %v291, %v296
        %v298 = vmul.f32 %v297, %v264
        %v299 = vsel %vm255, %v298, 0.0
        %v300 = vadd.f32 %v293, %v299
        %s301 = scalar_lea.vmem %s109, 16 [#allocation1]
        %302 = vst [vmem:[%s301] sm:$0xff] %v300
        %vm303 = vcmask 39968
        %s304 = scalar_lea.vmem %s109, 4 [#allocation1]
        %v305 = vld [vmem:[%s304] ss:$0 sm:$0xff]
        %s306 = scalar_lea.vmem %s101, 4 [#allocation0]
        %v307 = vld [vmem:[%s306] ss:$0 sm:$0xff]
        %v308 = vmul.f32 %v305, %v305
        %309 = vadd.xlane.f32.xlu0 %v308
        %v310 = vpop.xlane.xlu0 %309
        %v311 = vsub.f32 %v307, %v310
        %v312 = vrsqrt.pop %v311
        %v313 = vld [vmem:[%s101] sm:$0xff]
        %v314 = vld [vmem:[%s109] sm:$0xff]
        %v315 = vmul.f32 %v314, %v305
        %316 = vadd.xlane.f32.xlu0 %v315
        %v317 = vpop.xlane.xlu0 %316
        %v318 = vsub.f32 %v313, %v317
        %v319 = vmul.f32 %v318, %v312
        %vm320 = vcmask 1047556
        %vm321 = vmand %vm303, %vm320
        %v322 = vsel %vm321, %v319, 0.0
        %v323 = vadd.f32 %v314, %v322
        %324 = vst [vmem:[%s109] sm:$0xff] %v323
        %s325 = scalar_lea.vmem %s101, 8 [#allocation0]
        %v326 = vld [vmem:[%s325] sm:$0xff]
        %s327 = scalar_lea.vmem %s109, 8 [#allocation1]
        %v328 = vld [vmem:[%s327] sm:$0xff]
        %v329 = vmul.f32 %v328, %v305
        %330 = vadd.xlane.f32.xlu0 %v329
        %v331 = vpop.xlane.xlu0 %330
        %v332 = vsub.f32 %v326, %v331
        %v333 = vmul.f32 %v332, %v312
        %v334 = vsel %vm303, %v333, 0.0
        %v335 = vadd.f32 %v328, %v334
        %s336 = scalar_lea.vmem %s109, 8 [#allocation1]
        %337 = vst [vmem:[%s336] sm:$0xff] %v335
        %s338 = scalar_lea.vmem %s101, 16 [#allocation0]
        %v339 = vld [vmem:[%s338] sm:$0xff]
        %s340 = scalar_lea.vmem %s109, 16 [#allocation1]
        %v341 = vld [vmem:[%s340] sm:$0xff]
        %v342 = vmul.f32 %v341, %v305
        %343 = vadd.xlane.f32.xlu0 %v342
        %v344 = vpop.xlane.xlu0 %343
        %v345 = vsub.f32 %v339, %v344
        %v346 = vmul.f32 %v345, %v312
        %v347 = vsel %vm303, %v346, 0.0
        %v348 = vadd.f32 %v341, %v347
        %s349 = scalar_lea.vmem %s109, 16 [#allocation1]
        %350 = vst [vmem:[%s349] sm:$0xff] %v348
        %vm351 = vcmask 48168
        %s352 = scalar_lea.vmem %s109, 5 [#allocation1]
        %v353 = vld [vmem:[%s352] ss:$0 sm:$0xff]
        %s354 = scalar_lea.vmem %s101, 5 [#allocation0]
        %v355 = vld [vmem:[%s354] ss:$0 sm:$0xff]
        %v356 = vmul.f32 %v353, %v353
        %357 = vadd.xlane.f32.xlu0 %v356
        %v358 = vpop.xlane.xlu0 %357
        %v359 = vsub.f32 %v355, %v358
        %v360 = vrsqrt.pop %v359
        %v361 = vld [vmem:[%s101] sm:$0xff]
        %v362 = vld [vmem:[%s109] sm:$0xff]
        %v363 = vmul.f32 %v362, %v353
        %364 = vadd.xlane.f32.xlu0 %v363
        %v365 = vpop.xlane.xlu0 %364
        %v366 = vsub.f32 %v361, %v365
        %v367 = vmul.f32 %v366, %v360
        %vm368 = vcmask 1047557
        %vm369 = vmand %vm351, %vm368
        %v370 = vsel %vm369, %v367, 0.0
        %v371 = vadd.f32 %v362, %v370
        %372 = vst [vmem:[%s109] sm:$0xff] %v371
        %s373 = scalar_lea.vmem %s101, 8 [#allocation0]
        %v374 = vld [vmem:[%s373] sm:$0xff]
        %s375 = scalar_lea.vmem %s109, 8 [#allocation1]
        %v376 = vld [vmem:[%s375] sm:$0xff]
        %v377 = vmul.f32 %v376, %v353
        %378 = vadd.xlane.f32.xlu0 %v377
        %v379 = vpop.xlane.xlu0 %378
        %v380 = vsub.f32 %v374, %v379
        %v381 = vmul.f32 %v380, %v360
        %v382 = vsel %vm351, %v381, 0.0
        %v383 = vadd.f32 %v376, %v382
        %s384 = scalar_lea.vmem %s109, 8 [#allocation1]
        %385 = vst [vmem:[%s384] sm:$0xff] %v383
        %s386 = scalar_lea.vmem %s101, 16 [#allocation0]
        %v387 = vld [vmem:[%s386] sm:$0xff]
        %s388 = scalar_lea.vmem %s109, 16 [#allocation1]
        %v389 = vld [vmem:[%s388] sm:$0xff]
        %v390 = vmul.f32 %v389, %v353
        %391 = vadd.xlane.f32.xlu0 %v390
        %v392 = vpop.xlane.xlu0 %391
        %v393 = vsub.f32 %v387, %v392
        %v394 = vmul.f32 %v393, %v360
        %v395 = vsel %vm351, %v394, 0.0
        %v396 = vadd.f32 %v389, %v395
        %s397 = scalar_lea.vmem %s109, 16 [#allocation1]
        %398 = vst [vmem:[%s397] sm:$0xff] %v396
        %vm399 = vcmask 56368
        %s400 = scalar_lea.vmem %s109, 6 [#allocation1]
        %v401 = vld [vmem:[%s400] ss:$0 sm:$0xff]
        %s402 = scalar_lea.vmem %s101, 6 [#allocation0]
        %v403 = vld [vmem:[%s402] ss:$0 sm:$0xff]
        %v404 = vmul.f32 %v401, %v401
        %405 = vadd.xlane.f32.xlu0 %v404
        %v406 = vpop.xlane.xlu0 %405
        %v407 = vsub.f32 %v403, %v406
        %v408 = vrsqrt.pop %v407
        %v409 = vld [vmem:[%s101] sm:$0xff]
        %v410 = vld [vmem:[%s109] sm:$0xff]
        %v411 = vmul.f32 %v410, %v401
        %412 = vadd.xlane.f32.xlu0 %v411
        %v413 = vpop.xlane.xlu0 %412
        %v414 = vsub.f32 %v409, %v413
        %v415 = vmul.f32 %v414, %v408
        %vm416 = vcmask 1047558
        %vm417 = vmand %vm399, %vm416
        %v418 = vsel %vm417, %v415, 0.0
        %v419 = vadd.f32 %v410, %v418
        %420 = vst [vmem:[%s109] sm:$0xff] %v419
        %s421 = scalar_lea.vmem %s101, 8 [#allocation0]
        %v422 = vld [vmem:[%s421] sm:$0xff]
        %s423 = scalar_lea.vmem %s109, 8 [#allocation1]
        %v424 = vld [vmem:[%s423] sm:$0xff]
        %v425 = vmul.f32 %v424, %v401
        %426 = vadd.xlane.f32.xlu0 %v425
        %v427 = vpop.xlane.xlu0 %426
        %v428 = vsub.f32 %v422, %v427
        %v429 = vmul.f32 %v428, %v408
        %v430 = vsel %vm399, %v429, 0.0
        %v431 = vadd.f32 %v424, %v430
        %s432 = scalar_lea.vmem %s109, 8 [#allocation1]
        %433 = vst [vmem:[%s432] sm:$0xff] %v431
        %s434 = scalar_lea.vmem %s101, 16 [#allocation0]
        %v435 = vld [vmem:[%s434] sm:$0xff]
        %s436 = scalar_lea.vmem %s109, 16 [#allocation1]
        %v437 = vld [vmem:[%s436] sm:$0xff]
        %v438 = vmul.f32 %v437, %v401
        %439 = vadd.xlane.f32.xlu0 %v438
        %v440 = vpop.xlane.xlu0 %439
        %v441 = vsub.f32 %v435, %v440
        %v442 = vmul.f32 %v441, %v408
        %v443 = vsel %vm399, %v442, 0.0
        %v444 = vadd.f32 %v437, %v443
        %s445 = scalar_lea.vmem %s109, 16 [#allocation1]
        %446 = vst [vmem:[%s445] sm:$0xff] %v444
        %vm447 = vcmask 64568
        %s448 = scalar_lea.vmem %s109, 7 [#allocation1]
        %v449 = vld [vmem:[%s448] ss:$0 sm:$0xff]
        %s450 = scalar_lea.vmem %s101, 7 [#allocation0]
        %v451 = vld [vmem:[%s450] ss:$0 sm:$0xff]
        %v452 = vmul.f32 %v449, %v449
        %453 = vadd.xlane.f32.xlu0 %v452
        %v454 = vpop.xlane.xlu0 %453
        %v455 = vsub.f32 %v451, %v454
        %v456 = vrsqrt.pop %v455
        %v457 = vld [vmem:[%s101] sm:$0xff]
        %v458 = vld [vmem:[%s109] sm:$0xff]
        %v459 = vmul.f32 %v458, %v449
        %460 = vadd.xlane.f32.xlu0 %v459
        %v461 = vpop.xlane.xlu0 %460
        %v462 = vsub.f32 %v457, %v461
        %v463 = vmul.f32 %v462, %v456
        %vm464 = vcmask 1047559
        %vm465 = vmand %vm447, %vm464
        %v466 = vsel %vm465, %v463, 0.0
        %v467 = vadd.f32 %v458, %v466
        %468 = vst [vmem:[%s109] sm:$0xff] %v467
        %s469 = scalar_lea.vmem %s101, 8 [#allocation0]
        %v470 = vld [vmem:[%s469] sm:$0xff]
        %s471 = scalar_lea.vmem %s109, 8 [#allocation1]
        %v472 = vld [vmem:[%s471] sm:$0xff]
        %v473 = vmul.f32 %v472, %v449
        %474 = vadd.xlane.f32.xlu0 %v473
        %v475 = vpop.xlane.xlu0 %474
        %v476 = vsub.f32 %v470, %v475
        %v477 = vmul.f32 %v476, %v456
        %v478 = vsel %vm447, %v477, 0.0
        %v479 = vadd.f32 %v472, %v478
        %s480 = scalar_lea.vmem %s109, 8 [#allocation1]
        %481 = vst [vmem:[%s480] sm:$0xff] %v479
        %s482 = scalar_lea.vmem %s101, 16 [#allocation0]
        %v483 = vld [vmem:[%s482] sm:$0xff]
        %s484 = scalar_lea.vmem %s109, 16 [#allocation1]
        %v485 = vld [vmem:[%s484] sm:$0xff]
        %v486 = vmul.f32 %v485, %v449
        %487 = vadd.xlane.f32.xlu0 %v486
        %v488 = vpop.xlane.xlu0 %487
        %v489 = vsub.f32 %v483, %v488
        %v490 = vmul.f32 %v489, %v456
        %v491 = vsel %vm447, %v490, 0.0
        %v492 = vadd.f32 %v485, %v491
        %s493 = scalar_lea.vmem %s109, 16 [#allocation1]
        %494 = vst [vmem:[%s493] sm:$0xff] %v492
        %vm495 = vcmask 72768
        %s496 = scalar_lea.vmem %s109, 8 [#allocation1]
        %v497 = vld [vmem:[%s496] ss:$0 sm:$0xff]
        %s498 = scalar_lea.vmem %s101, 8 [#allocation0]
        %v499 = vld [vmem:[%s498] ss:$0 sm:$0xff]
        %v500 = vmul.f32 %v497, %v497
        %501 = vadd.xlane.f32.xlu0 %v500
        %v502 = vpop.xlane.xlu0 %501
        %v503 = vsub.f32 %v499, %v502
        %v504 = vrsqrt.pop %v503
        %s505 = scalar_lea.vmem %s101, 8 [#allocation0]
        %v506 = vld [vmem:[%s505] sm:$0xff]
        %s507 = scalar_lea.vmem %s109, 8 [#allocation1]
        %v508 = vld [vmem:[%s507] sm:$0xff]
        %v509 = vmul.f32 %v508, %v497
        %510 = vadd.xlane.f32.xlu0 %v509
        %v511 = vpop.xlane.xlu0 %510
        %v512 = vsub.f32 %v506, %v511
        %v513 = vmul.f32 %v512, %v504
        %v514 = vsel %vm495, %v513, 0.0
        %v515 = vadd.f32 %v508, %v514
        %s516 = scalar_lea.vmem %s109, 8 [#allocation1]
        %517 = vst [vmem:[%s516] sm:$0xff] %v515
        %s518 = scalar_lea.vmem %s101, 16 [#allocation0]
        %v519 = vld [vmem:[%s518] sm:$0xff]
        %s520 = scalar_lea.vmem %s109, 16 [#allocation1]
        %v521 = vld [vmem:[%s520] sm:$0xff]
        %v522 = vmul.f32 %v521, %v497
        %523 = vadd.xlane.f32.xlu0 %v522
        %v524 = vpop.xlane.xlu0 %523
        %v525 = vsub.f32 %v519, %v524
        %v526 = vmul.f32 %v525, %v504
        %v527 = vsel %vm495, %v526, 0.0
        %v528 = vadd.f32 %v521, %v527
        %s529 = scalar_lea.vmem %s109, 16 [#allocation1]
        %530 = vst [vmem:[%s529] sm:$0xff] %v528
        %vm531 = vcmask 80968
        %s532 = scalar_lea.vmem %s109, 9 [#allocation1]
        %v533 = vld [vmem:[%s532] ss:$0 sm:$0xff]
        %s534 = scalar_lea.vmem %s101, 9 [#allocation0]
        %v535 = vld [vmem:[%s534] ss:$0 sm:$0xff]
        %v536 = vmul.f32 %v533, %v533
        %537 = vadd.xlane.f32.xlu0 %v536
        %v538 = vpop.xlane.xlu0 %537
        %v539 = vsub.f32 %v535, %v538
        %v540 = vrsqrt.pop %v539
        %s541 = scalar_lea.vmem %s101, 8 [#allocation0]
        %v542 = vld [vmem:[%s541] sm:$0xff]
        %s543 = scalar_lea.vmem %s109, 8 [#allocation1]
        %v544 = vld [vmem:[%s543] sm:$0xff]
        %v545 = vmul.f32 %v544, %v533
        %546 = vadd.xlane.f32.xlu0 %v545
        %v547 = vpop.xlane.xlu0 %546
        %v548 = vsub.f32 %v542, %v547
        %v549 = vmul.f32 %v548, %v540
        %vm550 = vcmask 1047553
        %vm551 = vmand %vm531, %vm550
        %v552 = vsel %vm551, %v549, 0.0
        %v553 = vadd.f32 %v544, %v552
        %s554 = scalar_lea.vmem %s109, 8 [#allocation1]
        %555 = vst [vmem:[%s554] sm:$0xff] %v553
        %s556 = scalar_lea.vmem %s101, 16 [#allocation0]
        %v557 = vld [vmem:[%s556] sm:$0xff]
        %s558 = scalar_lea.vmem %s109, 16 [#allocation1]
        %v559 = vld [vmem:[%s558] sm:$0xff]
        %v560 = vmul.f32 %v559, %v533
        %561 = vadd.xlane.f32.xlu0 %v560
        %v562 = vpop.xlane.xlu0 %561
        %v563 = vsub.f32 %v557, %v562
        %v564 = vmul.f32 %v563, %v540
        %v565 = vsel %vm531, %v564, 0.0
        %v566 = vadd.f32 %v559, %v565
        %s567 = scalar_lea.vmem %s109, 16 [#allocation1]
        %568 = vst [vmem:[%s567] sm:$0xff] %v566
        %vm569 = vcmask 89168
        %s570 = scalar_lea.vmem %s109, 10 [#allocation1]
        %v571 = vld [vmem:[%s570] ss:$0 sm:$0xff]
        %s572 = scalar_lea.vmem %s101, 10 [#allocation0]
        %v573 = vld [vmem:[%s572] ss:$0 sm:$0xff]
        %v574 = vmul.f32 %v571, %v571
        %575 = vadd.xlane.f32.xlu0 %v574
        %v576 = vpop.xlane.xlu0 %575
        %v577 = vsub.f32 %v573, %v576
        %v578 = vrsqrt.pop %v577
        %s579 = scalar_lea.vmem %s101, 8 [#allocation0]
        %v580 = vld [vmem:[%s579] sm:$0xff]
        %s581 = scalar_lea.vmem %s109, 8 [#allocation1]
        %v582 = vld [vmem:[%s581] sm:$0xff]
        %v583 = vmul.f32 %v582, %v571
        %584 = vadd.xlane.f32.xlu0 %v583
        %v585 = vpop.xlane.xlu0 %584
        %v586 = vsub.f32 %v580, %v585
        %v587 = vmul.f32 %v586, %v578
        %vm588 = vcmask 1047554
        %vm589 = vmand %vm569, %vm588
        %v590 = vsel %vm589, %v587, 0.0
        %v591 = vadd.f32 %v582, %v590
        %s592 = scalar_lea.vmem %s109, 8 [#allocation1]
        %593 = vst [vmem:[%s592] sm:$0xff] %v591
        %s594 = scalar_lea.vmem %s101, 16 [#allocation0]
        %v595 = vld [vmem:[%s594] sm:$0xff]
        %s596 = scalar_lea.vmem %s109, 16 [#allocation1]
        %v597 = vld [vmem:[%s596] sm:$0xff]
        %v598 = vmul.f32 %v597, %v571
        %599 = vadd.xlane.f32.xlu0 %v598
        %v600 = vpop.xlane.xlu0 %599
        %v601 = vsub.f32 %v595, %v600
        %v602 = vmul.f32 %v601, %v578
        %v603 = vsel %vm569, %v602, 0.0
        %v604 = vadd.f32 %v597, %v603
        %s605 = scalar_lea.vmem %s109, 16 [#allocation1]
        %606 = vst [vmem:[%s605] sm:$0xff] %v604
        %vm607 = vcmask 97368
        %s608 = scalar_lea.vmem %s109, 11 [#allocation1]
        %v609 = vld [vmem:[%s608] ss:$0 sm:$0xff]
        %s610 = scalar_lea.vmem %s101, 11 [#allocation0]
        %v611 = vld [vmem:[%s610] ss:$0 sm:$0xff]
        %v612 = vmul.f32 %v609, %v609
        %613 = vadd.xlane.f32.xlu0 %v612
        %v614 = vpop.xlane.xlu0 %613
        %v615 = vsub.f32 %v611, %v614
        %v616 = vrsqrt.pop %v615
        %s617 = scalar_lea.vmem %s101, 8 [#allocation0]
        %v618 = vld [vmem:[%s617] sm:$0xff]
        %s619 = scalar_lea.vmem %s109, 8 [#allocation1]
        %v620 = vld [vmem:[%s619] sm:$0xff]
        %v621 = vmul.f32 %v620, %v609
        %622 = vadd.xlane.f32.xlu0 %v621
        %v623 = vpop.xlane.xlu0 %622
        %v624 = vsub.f32 %v618, %v623
        %v625 = vmul.f32 %v624, %v616
        %vm626 = vcmask 1047555
        %vm627 = vmand %vm607, %vm626
        %v628 = vsel %vm627, %v625, 0.0
        %v629 = vadd.f32 %v620, %v628
        %s630 = scalar_lea.vmem %s109, 8 [#allocation1]
        %631 = vst [vmem:[%s630] sm:$0xff] %v629
        %s632 = scalar_lea.vmem %s101, 16 [#allocation0]
        %v633 = vld [vmem:[%s632] sm:$0xff]
        %s634 = scalar_lea.vmem %s109, 16 [#allocation1]
        %v635 = vld [vmem:[%s634] sm:$0xff]
        %v636 = vmul.f32 %v635, %v609
        %637 = vadd.xlane.f32.xlu0 %v636
        %v638 = vpop.xlane.xlu0 %637
        %v639 = vsub.f32 %v633, %v638
        %v640 = vmul.f32 %v639, %v616
        %v641 = vsel %vm607, %v640, 0.0
        %v642 = vadd.f32 %v635, %v641
        %s643 = scalar_lea.vmem %s109, 16 [#allocation1]
        %644 = vst [vmem:[%s643] sm:$0xff] %v642
        %vm645 = vcmask 105568
        %s646 = scalar_lea.vmem %s109, 12 [#allocation1]
        %v647 = vld [vmem:[%s646] ss:$0 sm:$0xff]
        %s648 = scalar_lea.vmem %s101, 12 [#allocation0]
        %v649 = vld [vmem:[%s648] ss:$0 sm:$0xff]
        %v650 = vmul.f32 %v647, %v647
        %651 = vadd.xlane.f32.xlu0 %v650
        %v652 = vpop.xlane.xlu0 %651
        %v653 = vsub.f32 %v649, %v652
        %v654 = vrsqrt.pop %v653
        %s655 = scalar_lea.vmem %s101, 8 [#allocation0]
        %v656 = vld [vmem:[%s655] sm:$0xff]
        %s657 = scalar_lea.vmem %s109, 8 [#allocation1]
        %v658 = vld [vmem:[%s657] sm:$0xff]
        %v659 = vmul.f32 %v658, %v647
        %660 = vadd.xlane.f32.xlu0 %v659
        %v661 = vpop.xlane.xlu0 %660
        %v662 = vsub.f32 %v656, %v661
        %v663 = vmul.f32 %v662, %v654
        %vm664 = vcmask 1047556
        %vm665 = vmand %vm645, %vm664
        %v666 = vsel %vm665, %v663, 0.0
        %v667 = vadd.f32 %v658, %v666
        %s668 = scalar_lea.vmem %s109, 8 [#allocation1]
        %669 = vst [vmem:[%s668] sm:$0xff] %v667
        %s670 = scalar_lea.vmem %s101, 16 [#allocation0]
        %v671 = vld [vmem:[%s670] sm:$0xff]
        %s672 = scalar_lea.vmem %s109, 16 [#allocation1]
        %v673 = vld [vmem:[%s672] sm:$0xff]
        %v674 = vmul.f32 %v673, %v647
        %675 = vadd.xlane.f32.xlu0 %v674
        %v676 = vpop.xlane.xlu0 %675
        %v677 = vsub.f32 %v671, %v676
        %v678 = vmul.f32 %v677, %v654
        %v679 = vsel %vm645, %v678, 0.0
        %v680 = vadd.f32 %v673, %v679
        %s681 = scalar_lea.vmem %s109, 16 [#allocation1]
        %682 = vst [vmem:[%s681] sm:$0xff] %v680
        %vm683 = vcmask 113768
        %s684 = scalar_lea.vmem %s109, 13 [#allocation1]
        %v685 = vld [vmem:[%s684] ss:$0 sm:$0xff]
        %s686 = scalar_lea.vmem %s101, 13 [#allocation0]
        %v687 = vld [vmem:[%s686] ss:$0 sm:$0xff]
        %v688 = vmul.f32 %v685, %v685
        %689 = vadd.xlane.f32.xlu0 %v688
        %v690 = vpop.xlane.xlu0 %689
        %v691 = vsub.f32 %v687, %v690
        %v692 = vrsqrt.pop %v691
        %s693 = scalar_lea.vmem %s101, 8 [#allocation0]
        %v694 = vld [vmem:[%s693] sm:$0xff]
        %s695 = scalar_lea.vmem %s109, 8 [#allocation1]
        %v696 = vld [vmem:[%s695] sm:$0xff]
        %v697 = vmul.f32 %v696, %v685
        %698 = vadd.xlane.f32.xlu0 %v697
        %v699 = vpop.xlane.xlu0 %698
        %v700 = vsub.f32 %v694, %v699
        %v701 = vmul.f32 %v700, %v692
        %vm702 = vcmask 1047557
        %vm703 = vmand %vm683, %vm702
        %v704 = vsel %vm703, %v701, 0.0
        %v705 = vadd.f32 %v696, %v704
        %s706 = scalar_lea.vmem %s109, 8 [#allocation1]
        %707 = vst [vmem:[%s706] sm:$0xff] %v705
        %s708 = scalar_lea.vmem %s101, 16 [#allocation0]
        %v709 = vld [vmem:[%s708] sm:$0xff]
        %s710 = scalar_lea.vmem %s109, 16 [#allocation1]
        %v711 = vld [vmem:[%s710] sm:$0xff]
        %v712 = vmul.f32 %v711, %v685
        %713 = vadd.xlane.f32.xlu0 %v712
        %v714 = vpop.xlane.xlu0 %713
        %v715 = vsub.f32 %v709, %v714
        %v716 = vmul.f32 %v715, %v692
        %v717 = vsel %vm683, %v716, 0.0
        %v718 = vadd.f32 %v711, %v717
        %s719 = scalar_lea.vmem %s109, 16 [#allocation1]
        %720 = vst [vmem:[%s719] sm:$0xff] %v718
        %vm721 = vcmask 121968
        %s722 = scalar_lea.vmem %s109, 14 [#allocation1]
        %v723 = vld [vmem:[%s722] ss:$0 sm:$0xff]
        %s724 = scalar_lea.vmem %s101, 14 [#allocation0]
        %v725 = vld [vmem:[%s724] ss:$0 sm:$0xff]
        %v726 = vmul.f32 %v723, %v723
        %727 = vadd.xlane.f32.xlu0 %v726
        %v728 = vpop.xlane.xlu0 %727
        %v729 = vsub.f32 %v725, %v728
        %v730 = vrsqrt.pop %v729
        %s731 = scalar_lea.vmem %s101, 8 [#allocation0]
        %v732 = vld [vmem:[%s731] sm:$0xff]
        %s733 = scalar_lea.vmem %s109, 8 [#allocation1]
        %v734 = vld [vmem:[%s733] sm:$0xff]
        %v735 = vmul.f32 %v734, %v723
        %736 = vadd.xlane.f32.xlu0 %v735
        %v737 = vpop.xlane.xlu0 %736
        %v738 = vsub.f32 %v732, %v737
        %v739 = vmul.f32 %v738, %v730
        %vm740 = vcmask 1047558
        %vm741 = vmand %vm721, %vm740
        %v742 = vsel %vm741, %v739, 0.0
        %v743 = vadd.f32 %v734, %v742
        %s744 = scalar_lea.vmem %s109, 8 [#allocation1]
        %745 = vst [vmem:[%s744] sm:$0xff] %v743
        %s746 = scalar_lea.vmem %s101, 16 [#allocation0]
        %v747 = vld [vmem:[%s746] sm:$0xff]
        %s748 = scalar_lea.vmem %s109, 16 [#allocation1]
        %v749 = vld [vmem:[%s748] sm:$0xff]
        %v750 = vmul.f32 %v749, %v723
        %751 = vadd.xlane.f32.xlu0 %v750
        %v752 = vpop.xlane.xlu0 %751
        %v753 = vsub.f32 %v747, %v752
        %v754 = vmul.f32 %v753, %v730
        %v755 = vsel %vm721, %v754, 0.0
        %v756 = vadd.f32 %v749, %v755
        %s757 = scalar_lea.vmem %s109, 16 [#allocation1]
        %758 = vst [vmem:[%s757] sm:$0xff] %v756
        %vm759 = vcmask 130168
        %s760 = scalar_lea.vmem %s109, 15 [#allocation1]
        %v761 = vld [vmem:[%s760] ss:$0 sm:$0xff]
        %s762 = scalar_lea.vmem %s101, 15 [#allocation0]
        %v763 = vld [vmem:[%s762] ss:$0 sm:$0xff]
        %v764 = vmul.f32 %v761, %v761
        %765 = vadd.xlane.f32.xlu0 %v764
        %v766 = vpop.xlane.xlu0 %765
        %v767 = vsub.f32 %v763, %v766
        %v768 = vrsqrt.pop %v767
        %s769 = scalar_lea.vmem %s101, 8 [#allocation0]
        %v770 = vld [vmem:[%s769] sm:$0xff]
        %s771 = scalar_lea.vmem %s109, 8 [#allocation1]
        %v772 = vld [vmem:[%s771] sm:$0xff]
        %v773 = vmul.f32 %v772, %v761
        %774 = vadd.xlane.f32.xlu0 %v773
        %v775 = vpop.xlane.xlu0 %774
        %v776 = vsub.f32 %v770, %v775
        %v777 = vmul.f32 %v776, %v768
        %vm778 = vcmask 1047559
        %vm779 = vmand %vm759, %vm778
        %v780 = vsel %vm779, %v777, 0.0
        %v781 = vadd.f32 %v772, %v780
        %s782 = scalar_lea.vmem %s109, 8 [#allocation1]
        %783 = vst [vmem:[%s782] sm:$0xff] %v781
        %s784 = scalar_lea.vmem %s101, 16 [#allocation0]
        %v785 = vld [vmem:[%s784] sm:$0xff]
        %s786 = scalar_lea.vmem %s109, 16 [#allocation1]
        %v787 = vld [vmem:[%s786] sm:$0xff]
        %v788 = vmul.f32 %v787, %v761
        %789 = vadd.xlane.f32.xlu0 %v788
        %v790 = vpop.xlane.xlu0 %789
        %v791 = vsub.f32 %v785, %v790
        %v792 = vmul.f32 %v791, %v768
        %v793 = vsel %vm759, %v792, 0.0
        %v794 = vadd.f32 %v787, %v793
        %s795 = scalar_lea.vmem %s109, 16 [#allocation1]
        %796 = vst [vmem:[%s795] sm:$0xff] %v794
        %vm797 = vcmask 138368
        %s798 = scalar_lea.vmem %s109, 16 [#allocation1]
        %v799 = vld [vmem:[%s798] ss:$0 sm:$0xff]
        %s800 = scalar_lea.vmem %s101, 16 [#allocation0]
        %v801 = vld [vmem:[%s800] ss:$0 sm:$0xff]
        %v802 = vmul.f32 %v799, %v799
        %803 = vadd.xlane.f32.xlu0 %v802
        %v804 = vpop.xlane.xlu0 %803
        %v805 = vsub.f32 %v801, %v804
        %v806 = vrsqrt.pop %v805
        %s807 = scalar_lea.vmem %s101, 16 [#allocation0]
        %v808 = vld [vmem:[%s807] sm:$0xff]
        %s809 = scalar_lea.vmem %s109, 16 [#allocation1]
        %v810 = vld [vmem:[%s809] sm:$0xff]
        %v811 = vmul.f32 %v810, %v799
        %812 = vadd.xlane.f32.xlu0 %v811
        %v813 = vpop.xlane.xlu0 %812
        %v814 = vsub.f32 %v808, %v813
        %v815 = vmul.f32 %v814, %v806
        %v816 = vsel %vm797, %v815, 0.0
        %v817 = vadd.f32 %v810, %v816
        %s818 = scalar_lea.vmem %s109, 16 [#allocation1]
        %819 = vst [vmem:[%s818] sm:$0xff] %v817
        %vm820 = vcmask 146568
        %s821 = scalar_lea.vmem %s109, 17 [#allocation1]
        %v822 = vld [vmem:[%s821] ss:$0 sm:$0xff]
        %s823 = scalar_lea.vmem %s101, 17 [#allocation0]
        %v824 = vld [vmem:[%s823] ss:$0 sm:$0xff]
        %v825 = vmul.f32 %v822, %v822
        %826 = vadd.xlane.f32.xlu0 %v825
        %v827 = vpop.xlane.xlu0 %826
        %v828 = vsub.f32 %v824, %v827
        %v829 = vrsqrt.pop %v828
        %s830 = scalar_lea.vmem %s101, 16 [#allocation0]
        %v831 = vld [vmem:[%s830] sm:$0xff]
        %s832 = scalar_lea.vmem %s109, 16 [#allocation1]
        %v833 = vld [vmem:[%s832] sm:$0xff]
        %v834 = vmul.f32 %v833, %v822
        %835 = vadd.xlane.f32.xlu0 %v834
        %v836 = vpop.xlane.xlu0 %835
        %v837 = vsub.f32 %v831, %v836
        %v838 = vmul.f32 %v837, %v829
        %vm839 = vcmask 1047553
        %vm840 = vmand %vm820, %vm839
        %v841 = vsel %vm840, %v838, 0.0
        %v842 = vadd.f32 %v833, %v841
        %s843 = scalar_lea.vmem %s109, 16 [#allocation1]
        %844 = vst [vmem:[%s843] sm:$0xff] %v842
        %vm845 = vcmask 154768
        %s846 = scalar_lea.vmem %s109, 18 [#allocation1]
        %v847 = vld [vmem:[%s846] ss:$0 sm:$0xff]
        %s848 = scalar_lea.vmem %s101, 18 [#allocation0]
        %v849 = vld [vmem:[%s848] ss:$0 sm:$0xff]
        %v850 = vmul.f32 %v847, %v847
        %851 = vadd.xlane.f32.xlu0 %v850
        %v852 = vpop.xlane.xlu0 %851
        %v853 = vsub.f32 %v849, %v852
        %v854 = vrsqrt.pop %v853
        %s855 = scalar_lea.vmem %s101, 16 [#allocation0]
        %v856 = vld [vmem:[%s855] sm:$0xff]
        %s857 = scalar_lea.vmem %s109, 16 [#allocation1]
        %v858 = vld [vmem:[%s857] sm:$0xff]
        %v859 = vmul.f32 %v858, %v847
        %860 = vadd.xlane.f32.xlu0 %v859
        %v861 = vpop.xlane.xlu0 %860
        %v862 = vsub.f32 %v856, %v861
        %v863 = vmul.f32 %v862, %v854
        %vm864 = vcmask 1047554
        %vm865 = vmand %vm845, %vm864
        %v866 = vsel %vm865, %v863, 0.0
        %v867 = vadd.f32 %v858, %v866
        %s868 = scalar_lea.vmem %s109, 16 [#allocation1]
        %869 = vst [vmem:[%s868] sm:$0xff] %v867
        %vm870 = vcmask 162968
        %s871 = scalar_lea.vmem %s109, 19 [#allocation1]
        %v872 = vld [vmem:[%s871] ss:$0 sm:$0xff]
        %s873 = scalar_lea.vmem %s101, 19 [#allocation0]
        %v874 = vld [vmem:[%s873] ss:$0 sm:$0xff]
        %v875 = vmul.f32 %v872, %v872
        %876 = vadd.xlane.f32.xlu0 %v875
        %v877 = vpop.xlane.xlu0 %876
        %v878 = vsub.f32 %v874, %v877
        %v879 = vrsqrt.pop %v878
        %s880 = scalar_lea.vmem %s101, 16 [#allocation0]
        %v881 = vld [vmem:[%s880] sm:$0xff]
        %s882 = scalar_lea.vmem %s109, 16 [#allocation1]
        %v883 = vld [vmem:[%s882] sm:$0xff]
        %v884 = vmul.f32 %v883, %v872
        %885 = vadd.xlane.f32.xlu0 %v884
        %v886 = vpop.xlane.xlu0 %885
        %v887 = vsub.f32 %v881, %v886
        %v888 = vmul.f32 %v887, %v879
        %vm889 = vcmask 1047555
        %vm890 = vmand %vm870, %vm889
        %v891 = vsel %vm890, %v888, 0.0
        %v892 = vadd.f32 %v883, %v891
        %s893 = scalar_lea.vmem %s109, 16 [#allocation1]
        %894 = vst [vmem:[%s893] sm:$0xff] %v892
        %vm895 = vcmask 171168
        %s896 = scalar_lea.vmem %s109, 20 [#allocation1]
        %v897 = vld [vmem:[%s896] ss:$0 sm:$0xff]
        %s898 = scalar_lea.vmem %s101, 20 [#allocation0]
        %v899 = vld [vmem:[%s898] ss:$0 sm:$0xff]
        %v900 = vmul.f32 %v897, %v897
        %901 = vadd.xlane.f32.xlu0 %v900
        %v902 = vpop.xlane.xlu0 %901
        %v903 = vsub.f32 %v899, %v902
        %v904 = vrsqrt.pop %v903
        %s905 = scalar_lea.vmem %s101, 16 [#allocation0]
        %v906 = vld [vmem:[%s905] sm:$0xff]
        %s907 = scalar_lea.vmem %s109, 16 [#allocation1]
        %v908 = vld [vmem:[%s907] sm:$0xff]
        %v909 = vmul.f32 %v908, %v897
        %910 = vadd.xlane.f32.xlu0 %v909
        %v911 = vpop.xlane.xlu0 %910
        %v912 = vsub.f32 %v906, %v911
        %v913 = vmul.f32 %v912, %v904
        %vm914 = vcmask 1047556
        %vm915 = vmand %vm895, %vm914
        %v916 = vsel %vm915, %v913, 0.0
        %v917 = vadd.f32 %v908, %v916
        %s918 = scalar_lea.vmem %s109, 16 [#allocation1]
        %919 = vst [vmem:[%s918] sm:$0xff] %v917
        %vm920 = vcmask 179368
        %s921 = scalar_lea.vmem %s109, 21 [#allocation1]
        %v922 = vld [vmem:[%s921] ss:$0 sm:$0xff]
        %s923 = scalar_lea.vmem %s101, 21 [#allocation0]
        %v924 = vld [vmem:[%s923] ss:$0 sm:$0xff]
        %v925 = vmul.f32 %v922, %v922
        %926 = vadd.xlane.f32.xlu0 %v925
        %v927 = vpop.xlane.xlu0 %926
        %v928 = vsub.f32 %v924, %v927
        %v929 = vrsqrt.pop %v928
        %s930 = scalar_lea.vmem %s101, 16 [#allocation0]
        %v931 = vld [vmem:[%s930] sm:$0xff]
        %s932 = scalar_lea.vmem %s109, 16 [#allocation1]
        %v933 = vld [vmem:[%s932] sm:$0xff]
        %v934 = vmul.f32 %v933, %v922
        %935 = vadd.xlane.f32.xlu0 %v934
        %v936 = vpop.xlane.xlu0 %935
        %v937 = vsub.f32 %v931, %v936
        %v938 = vmul.f32 %v937, %v929
        %vm939 = vcmask 1047557
        %vm940 = vmand %vm920, %vm939
        %v941 = vsel %vm940, %v938, 0.0
        %v942 = vadd.f32 %v933, %v941
        %s943 = scalar_lea.vmem %s109, 16 [#allocation1]
        %944 = vst [vmem:[%s943] sm:$0xff] %v942
        %vm945 = vcmask 187568
        %s946 = scalar_lea.vmem %s109, 22 [#allocation1]
        %v947 = vld [vmem:[%s946] ss:$0 sm:$0xff]
        %s948 = scalar_lea.vmem %s101, 22 [#allocation0]
        %v949 = vld [vmem:[%s948] ss:$0 sm:$0xff]
        %v950 = vmul.f32 %v947, %v947
        %951 = vadd.xlane.f32.xlu0 %v950
        %v952 = vpop.xlane.xlu0 %951
        %v953 = vsub.f32 %v949, %v952
        %v954 = vrsqrt.pop %v953
        %s955 = scalar_lea.vmem %s101, 16 [#allocation0]
        %v956 = vld [vmem:[%s955] sm:$0xff]
        %s957 = scalar_lea.vmem %s109, 16 [#allocation1]
        %v958 = vld [vmem:[%s957] sm:$0xff]
        %v959 = vmul.f32 %v958, %v947
        %960 = vadd.xlane.f32.xlu0 %v959
        %v961 = vpop.xlane.xlu0 %960
        %v962 = vsub.f32 %v956, %v961
        %v963 = vmul.f32 %v962, %v954
        %vm964 = vcmask 1047558
        %vm965 = vmand %vm945, %vm964
        %v966 = vsel %vm965, %v963, 0.0
        %v967 = vadd.f32 %v958, %v966
        %s968 = scalar_lea.vmem %s109, 16 [#allocation1]
        %969 = vst [vmem:[%s968] sm:$0xff] %v967
        %vm970 = vcmask 195768
        %s971 = scalar_lea.vmem %s109, 23 [#allocation1]
        %v972 = vld [vmem:[%s971] ss:$0 sm:$0xff]
        %s973 = scalar_lea.vmem %s101, 23 [#allocation0]
        %v974 = vld [vmem:[%s973] ss:$0 sm:$0xff]
        %v975 = vmul.f32 %v972, %v972
        %976 = vadd.xlane.f32.xlu0 %v975
        %v977 = vpop.xlane.xlu0 %976
        %v978 = vsub.f32 %v974, %v977
        %v979 = vrsqrt.pop %v978
        %s980 = scalar_lea.vmem %s101, 16 [#allocation0]
        %v981 = vld [vmem:[%s980] sm:$0xff]
        %s982 = scalar_lea.vmem %s109, 16 [#allocation1]
        %v983 = vld [vmem:[%s982] sm:$0xff]
        %v984 = vmul.f32 %v983, %v972
        %985 = vadd.xlane.f32.xlu0 %v984
        %v986 = vpop.xlane.xlu0 %985
        %v987 = vsub.f32 %v981, %v986
        %v988 = vmul.f32 %v987, %v979
        %vm989 = vcmask 1047559
        %vm990 = vmand %vm970, %vm989
        %v991 = vsel %vm990, %v988, 0.0
        %v992 = vadd.f32 %v983, %v991
        %s993 = scalar_lea.vmem %s109, 16 [#allocation1]
        %994 = vst [vmem:[%s993] sm:$0xff] %v992
        %s995 = sand.u32 %s8, 1
        %s996 = sand.u32 %s8, 1
        %s997 = smul.addr %s996, 24
        %s998 = scalar_lea.vmem [#allocation1], %s997
        %s999 = sadd.s32 %s15, %s14
        %s1000 = smul.addr %s13, 3
        %s1001 = sadd.s32 %s999, %s1000
        %s1002 = smul.addr %s1001, 8
        %s1003 = scalar_lea.vmem %s1, %s1002
        // Predicated region
        $region55: #{custom-call.4} parent=53 // pred_check
          _
        $region56: #{custom-call.4} parent=53 // pred_check_branch
          %1005 = sbr.rel (0) target = $region58
        $region57: #{custom-call.4} parent=53 // pred_region
          // Predicated region
          $region59: #{custom-call.4} parent=57 // pred_check
            _
          $region60: #{custom-call.4} parent=57 // pred_check_branch
            %1007 = sbr.rel (0) target = $region62
          $region61: #{custom-call.4} parent=57 // pred_region
            // Predicated region
            $region74: #{custom-call.4} parent=61 // pred_check
              _
            $region75: #{custom-call.4} parent=61 // pred_check_branch
              %1027 = sbr.rel (0) target = $region77
            $region76: #{custom-call.4} parent=61 // pred_region
              loop: start=0, step=1, limit=1
              $region78: #{custom-call.4} parent=76 // loop_pre_header
                _
              $region79: #{custom-call.4} parent=76 // loop_header
                %s1029 = sphi 0, %s1033
                %p1030 = scmp.ge.s32.totalorder %s1029, 1
                %s1034 = sphi %s998, %s998
                %s1035 = sphi %s1003, %s1003
              $region80: #{custom-call.4} parent=76 // loop_header_branch
                %1032 = sbr.rel (%p1030) target = $region84
              $region81: #{custom-call.4} parent=76 // loop_body
                %v1036 = vld [vmem:[%s1034] sm:$0xff]
                %1037 = vst [vmem:[%s1035] sm:$0xff] %v1036
                %v1038 = vld [vmem:[%s1034 + $0x8] sm:$0xff]
                %1039 = vst [vmem:[%s1035 + $0x8] sm:$0xff] %v1038
                %v1040 = vld [vmem:[%s1034 + $0x10] sm:$0xff]
                %1041 = vst [vmem:[%s1035 + $0x10] sm:$0xff] %v1040
              $region82: #{custom-call.4} parent=76 // loop_footer
                %s1033 = sadd.s32 1, %s1029
              $region83: #{custom-call.4} parent=76 // loop_footer_branch
                %1028 = sbr.rel target = $region79
              $region84: #{custom-call.4} parent=76 // loop_exit
                _
            $region77: #{custom-call.4} parent=61 // pred_fallthru
              _
            // Predicated region
            $region85: #{custom-call.4} parent=61 // pred_check
              _
            $region86: #{custom-call.4} parent=61 // pred_check_branch
              %1043 = sbr.rel target = $region88
            $region87: #{custom-call.4} parent=61 // pred_region
              _
            $region88: #{custom-call.4} parent=61 // pred_fallthru
              _
          $region62: #{custom-call.4} parent=57 // pred_fallthru
            _
          // Predicated region
          $region63: #{custom-call.4} parent=57 // pred_check
            _
          $region64: #{custom-call.4} parent=57 // pred_check_branch
            %1009 = sbr.rel target = $region66
          $region65: #{custom-call.4} parent=57 // pred_region
            %s1011 = ssub.s32 256, 1
            loop: start=0, step=1, limit=1
            $region67: #{custom-call.4} parent=65 // loop_pre_header
              _
            $region68: #{custom-call.4} parent=65 // loop_header
              %s1013 = sphi 0, %s1017
              %p1014 = scmp.ge.s32.totalorder %s1013, 1
              %s1018 = sphi %s998, %s998
              %s1019 = sphi %s1003, %s1003
            $region69: #{custom-call.4} parent=65 // loop_header_branch
              %1016 = sbr.rel (%p1014) target = $region73
            $region70: #{custom-call.4} parent=65 // loop_body
              %v1020 = vld [vmem:[%s1018] sm:%s1011]
              %1021 = vst [vmem:[%s1019] sm:%s1011] %v1020
              %v1022 = vld [vmem:[%s1018 + $0x8] sm:%s1011]
              %1023 = vst [vmem:[%s1019 + $0x8] sm:%s1011] %v1022
              %v1024 = vld [vmem:[%s1018 + $0x10] sm:%s1011]
              %1025 = vst [vmem:[%s1019 + $0x10] sm:%s1011] %v1024
            $region71: #{custom-call.4} parent=65 // loop_footer
              %s1017 = sadd.s32 1, %s1013
            $region72: #{custom-call.4} parent=65 // loop_footer_branch
              %1012 = sbr.rel target = $region68
            $region73: #{custom-call.4} parent=65 // loop_exit
              _
          $region66: #{custom-call.4} parent=57 // pred_fallthru
            _
        $region58: #{custom-call.4} parent=53 // pred_fallthru
          _
        %1044 = vnop
      $region54: #{custom-call.4} parent=5 // pred_fallthru
        _
      %p1045 = scmp.le.s32.totalorder 2, %s3
      // Predicated region
      $region89: #{custom-call.4} parent=5 // pred_check
        %p1046 = pneg %p1045
      $region90: #{custom-call.4} parent=5 // pred_check_branch
        %1048 = sbr.rel (%p1046) target = $region92
      $region91: #{custom-call.4} parent=5 // pred_region
        %s1049 = ssub.s32 %s3, 2
        %s1050 = sand.u32 %s9, 1
        %s1051 = sand.u32 %s9, 1
        %s1052 = smul.addr %s1051, 24
        %s1053 = scalar_lea.vmem [#allocation1], %s1052
      $region92: #{custom-call.4} parent=5 // pred_fallthru
        _
    $region6: #{custom-call.4} parent=1 // loop_footer
      %s7 = sadd.s32 1, %s3
    $region7: #{custom-call.4} parent=1 // loop_footer_branch
      %2 = sbr.rel target = $region3
    $region8: #{custom-call.4} parent=1 // loop_exit
      _

// kernel: custom-call.5
$region0: #{custom-call.5}
  %s0 = inlined_call_operand.vmem [shape: f32[2,1,24,24], index: 0, kind: input, shape index: {}]
  %s1 = inlined_call_operand.vmem [shape: f32[2,1,24,24], index: 1, kind: output, shape index: {}]
  $region1: #{custom-call.5} parent=0
    #allocation0 [shape = 'u8[24576]{0}', space=vmem, size = 0x6000, scoped, tag = 'operand span for operand 0']
    #allocation1 [shape = 'u8[24576]{0}', space=vmem, size = 0x6000, scoped, tag = 'operand span for operand 1']
    loop: start=0, step=1, limit=4
    $region2: #{custom-call.5} parent=1 // loop_pre_header
      _
    $region3: #{custom-call.5} parent=1 // loop_header
      %s3 = sphi 0, %s7
      %p4 = scmp.ge.s32.totalorder %s3, 4
      %s10 = sphi 0, %s36
      %s11 = sphi 0, %s32
      %s12 = sphi 0, %s28
      %s13 = sphi 0, %s24
      %s14 = sphi 0, %s10
      %s15 = sphi 0, %s11
      %s16 = sphi 0, %s12
      %s17 = sphi 0, %s13
      %s18 = sphi 0, %s14
      %s19 = sphi 0, %s15
      %s20 = sphi 0, %s16
      %s21 = sphi 0, %s17
    $region4: #{custom-call.5} parent=1 // loop_header_branch
      %6 = sbr.rel (%p4) target = $region8
    $region5: #{custom-call.5} parent=1 // loop_body
      %s8 = ssub.s32 %s3, 1
      %s9 = ssub.s32 %s3, 2
      %s22 = sadd.s32 1, %s13
      %p23 = scmp.ge.s32.totalorder %s22, 1
      %s24 = scalar_select %p23, 0, %s22
      %s25 = sadd.s32 1, %s12
      %s26 = scalar_select %p23, %s25, %s12
      %p27 = scmp.ge.s32.totalorder %s26, 1
      %s28 = scalar_select %p27, 0, %s26
      %s29 = sadd.s32 1, %s11
      %s30 = scalar_select %p27, %s29, %s11
      %p31 = scmp.ge.s32.totalorder %s30, 1
      %s32 = scalar_select %p31, 0, %s30
      %s33 = sadd.s32 1, %s10
      %s34 = scalar_select %p31, %s33, %s10
      %p35 = scmp.ge.s32.totalorder %s34, 2
      %s36 = scalar_select %p35, 0, %s34
      %p37 = scmp.le.s32.totalorder 1, %s3
      %p38 = scmp.lt.s32.totalorder %s3, 3
      %p39 = pnand %p37, %p38
      %p40 = pneg %p39
      // Predicated region
      $region9: #{custom-call.5} parent=5 // pred_check
        _
      $region10: #{custom-call.5} parent=5 // pred_check_branch
        %42 = sbr.rel (%p39) target = $region12
      $region11: #{custom-call.5} parent=5 // pred_region
        %s43 = ssub.s32 %s3, 1
      $region12: #{custom-call.5} parent=5 // pred_fallthru
        _
      %p44 = scmp.lt.s32.totalorder %s3, 2
      // Predicated region
      $region13: #{custom-call.5} parent=5 // pred_check
        %p45 = pneg %p44
      $region14: #{custom-call.5} parent=5 // pred_check_branch
        %47 = sbr.rel (%p45) target = $region16
      $region15: #{custom-call.5} parent=5 // pred_region
        %s48 = sand.u32 %s3, 1
        %s49 = sand.u32 %s3, 1
        %s50 = smul.addr %s49, 24
        %s51 = scalar_lea.vmem [#allocation0], %s50
        %s52 = sadd.s32 %s13, %s12
        %s53 = smul.addr %s11, 3
        %s54 = sadd.s32 %s52, %s53
        %s55 = smul.addr %s10, 3
        %s56 = sadd.s32 %s54, %s55
        %s57 = smul.addr %s56, 8
        %s58 = scalar_lea.vmem %s0, %s57
        // Predicated region
        $region17: #{custom-call.5} parent=15 // pred_check
          _
        $region18: #{custom-call.5} parent=15 // pred_check_branch
          %60 = sbr.rel (0) target = $region20
        $region19: #{custom-call.5} parent=15 // pred_region
          // Predicated region
          $region21: #{custom-call.5} parent=19 // pred_check
            _
          $region22: #{custom-call.5} parent=19 // pred_check_branch
            %62 = sbr.rel (0) target = $region24
          $region23: #{custom-call.5} parent=19 // pred_region
            // Predicated region
            $region36: #{custom-call.5} parent=23 // pred_check
              _
            $region37: #{custom-call.5} parent=23 // pred_check_branch
              %82 = sbr.rel (0) target = $region39
            $region38: #{custom-call.5} parent=23 // pred_region
              loop: start=0, step=1, limit=1
              $region40: #{custom-call.5} parent=38 // loop_pre_header
                _
              $region41: #{custom-call.5} parent=38 // loop_header
                %s84 = sphi 0, %s88
                %p85 = scmp.ge.s32.totalorder %s84, 1
                %s89 = sphi %s58, %s58
                %s90 = sphi %s51, %s51
              $region42: #{custom-call.5} parent=38 // loop_header_branch
                %87 = sbr.rel (%p85) target = $region46
              $region43: #{custom-call.5} parent=38 // loop_body
                %v91 = vld [vmem:[%s89] sm:$0xff]
                %92 = vst [vmem:[%s90] sm:$0xff] %v91
                %v93 = vld [vmem:[%s89 + $0x8] sm:$0xff]
                %94 = vst [vmem:[%s90 + $0x8] sm:$0xff] %v93
                %v95 = vld [vmem:[%s89 + $0x10] sm:$0xff]
                %96 = vst [vmem:[%s90 + $0x10] sm:$0xff] %v95
              $region44: #{custom-call.5} parent=38 // loop_footer
                %s88 = sadd.s32 1, %s84
              $region45: #{custom-call.5} parent=38 // loop_footer_branch
                %83 = sbr.rel target = $region41
              $region46: #{custom-call.5} parent=38 // loop_exit
                _
            $region39: #{custom-call.5} parent=23 // pred_fallthru
              _
            // Predicated region
            $region47: #{custom-call.5} parent=23 // pred_check
              _
            $region48: #{custom-call.5} parent=23 // pred_check_branch
              %98 = sbr.rel target = $region50
            $region49: #{custom-call.5} parent=23 // pred_region
              _
            $region50: #{custom-call.5} parent=23 // pred_fallthru
              _
          $region24: #{custom-call.5} parent=19 // pred_fallthru
            _
          // Predicated region
          $region25: #{custom-call.5} parent=19 // pred_check
            _
          $region26: #{custom-call.5} parent=19 // pred_check_branch
            %64 = sbr.rel target = $region28
          $region27: #{custom-call.5} parent=19 // pred_region
            %s66 = ssub.s32 256, 1
            loop: start=0, step=1, limit=1
            $region29: #{custom-call.5} parent=27 // loop_pre_header
              _
            $region30: #{custom-call.5} parent=27 // loop_header
              %s68 = sphi 0, %s72
              %p69 = scmp.ge.s32.totalorder %s68, 1
              %s73 = sphi %s58, %s58
              %s74 = sphi %s51, %s51
            $region31: #{custom-call.5} parent=27 // loop_header_branch
              %71 = sbr.rel (%p69) target = $region35
            $region32: #{custom-call.5} parent=27 // loop_body
              %v75 = vld [vmem:[%s73] sm:%s66]
              %76 = vst [vmem:[%s74] sm:%s66] %v75
              %v77 = vld [vmem:[%s73 + $0x8] sm:%s66]
              %78 = vst [vmem:[%s74 + $0x8] sm:%s66] %v77
              %v79 = vld [vmem:[%s73 + $0x10] sm:%s66]
              %80 = vst [vmem:[%s74 + $0x10] sm:%s66] %v79
            $region33: #{custom-call.5} parent=27 // loop_footer
              %s72 = sadd.s32 1, %s68
            $region34: #{custom-call.5} parent=27 // loop_footer_branch
              %67 = sbr.rel target = $region30
            $region35: #{custom-call.5} parent=27 // loop_exit
              _
          $region28: #{custom-call.5} parent=19 // pred_fallthru
            _
        $region20: #{custom-call.5} parent=15 // pred_fallthru
          _
        %99 = vnop
      $region16: #{custom-call.5} parent=5 // pred_fallthru
        _
      %p100 = scmp.le.s32.totalorder 1, %s3
      %p101 = scmp.lt.s32.totalorder %s3, 3
      %p102 = pnand %p100, %p101
      %p103 = pneg %p102
      // Predicated region
      $region51: #{custom-call.5} parent=5 // pred_check
        _
      $region52: #{custom-call.5} parent=5 // pred_check_branch
        %105 = sbr.rel (%p102) target = $region54
      $region53: #{custom-call.5} parent=5 // pred_region
        #allocation2 [shape = 'f32[24,24]{1,0}', space=vmem, size = 0x3000, scoped, tag = 'rescaled input a']
        %s106 = ssub.s32 %s3, 1
        %s107 = sand.u32 %s8, 1
        %s108 = sand.u32 %s8, 1
        %s109 = smul.addr %s108, 24
        %s110 = scalar_lea.vmem [#allocation0], %s109
        %s111 = sand.u32 %s8, 1
        %s112 = sand.u32 %s8, 1
        %s113 = smul.addr %s112, 24
        %s114 = scalar_lea.vmem [#allocation0], %s113
        %s115 = sand.u32 %s8, 1
        %s116 = sand.u32 %s8, 1
        %s117 = smul.addr %s116, 24
        %s118 = scalar_lea.vmem [#allocation1], %s117
        %v119 = vlaneseq
        %v120 = vand.u32 %v119, 127
        %vm121 = vcmp.lt.s32.totalorder %v120, 24
        %v122 = vlaneseq
        %v123 = vshrl.u32 %v122, 7
        %vm125 = vcmp.eq.s32.totalorder %v123, %v120
        %v126 = vld [vmem:[%s110] sm:$0xff]
        %v127 = vsel %vm125, %v126, 0.0
        %128 = vadd.xlane.f32.xlu0 %v127
        %v129 = vpop.xlane.xlu0 %128
        %vm130 = vcmp.ge.s32.totalorder %v123, %v120
        %vm131 = vmand %vm130, %vm121
        %v132 = vsel %vm131, %v126, 0.0
        %v133 = vrcp.pop %v129
        %v134 = vmul.f32 %v132, %v133
        %135 = vst [vmem:[#allocation2] sm:$0xff] %v134
        %s136 = scalar_lea.vmem %s110, 8 [#allocation0]
        %s137 = scalar_lea.vmem [#allocation2], 8
        %v138 = vlaneseq
        %v139 = vshrl.u32 %v138, 7
        %v140 = vadd.s32 %v139, 8
        %vm141 = vcmp.eq.s32.totalorder %v140, %v120
        %v142 = vld [vmem:[%s136] sm:$0xff]
        %v143 = vsel %vm141, %v142, 0.0
        %144 = vadd.xlane.f32.xlu0 %v143
        %v145 = vpop.xlane.xlu0 %144
        %vm146 = vcmp.ge.s32.totalorder %v140, %v120
        %vm147 = vmand %vm146, %vm121
        %v148 = vsel %vm147, %v142, 0.0
        %v149 = vrcp.pop %v145
        %v150 = vmul.f32 %v148, %v149
        %151 = vst [vmem:[%s137] sm:$0xff] %v150
        %s152 = scalar_lea.vmem %s110, 16 [#allocation0]
        %s153 = scalar_lea.vmem [#allocation2], 16
        %v154 = vlaneseq
        %v155 = vshrl.u32 %v154, 7
        %v156 = vadd.s32 %v155, 16
        %vm157 = vcmp.eq.s32.totalorder %v156, %v120
        %v158 = vld [vmem:[%s152] sm:$0xff]
        %v159 = vsel %vm157, %v158, 0.0
        %160 = vadd.xlane.f32.xlu0 %v159
        %v161 = vpop.xlane.xlu0 %160
        %vm162 = vcmp.ge.s32.totalorder %v156, %v120
        %vm163 = vmand %vm162, %vm121
        %v164 = vsel %vm163, %v158, 0.0
        %v165 = vrcp.pop %v161
        %v166 = vmul.f32 %v164, %v165
        %167 = vst [vmem:[%s153] sm:$0xff] %v166
        %v168 = vlaneseq
        %v169 = vand.u32 %v168, 127
        %v170 = vlaneseq
        %v171 = vshrl.u32 %v170, 7
        %vm173 = vcmp.eq.s32.totalorder %v169, %v171
        %v174 = vlaneseq
        %v175 = vand.u32 %v174, 127
        %vm176 = vcmp.eq.s32.totalorder %v175, 0
        %v177 = vsel %vm176, 1.0, -1.0
        %v178 = vsel %vm173, %v177, 0.0
        %v179 = vlaneseq
        %v180 = vand.u32 %v179, 127
        %v181 = vlaneseq
        %v182 = vshrl.u32 %v181, 7
        %v183 = vadd.s32 %v182, 8
        %vm184 = vcmp.eq.s32.totalorder %v180, %v183
        %v185 = vsel %vm184, -1.0, 0.0
        %v186 = vlaneseq
        %v187 = vand.u32 %v186, 127
        %v188 = vlaneseq
        %v189 = vshrl.u32 %v188, 7
        %v190 = vadd.s32 %v189, 16
        %vm191 = vcmp.eq.s32.totalorder %v187, %v190
        %v192 = vsel %vm191, -1.0, 0.0
        %s193 = scalar_lea.vmem [#allocation2], 1
        %v194 = vld [vmem:[%s193] ss:$0 sm:$0xff]
        %v195 = vxor.u32 %v194, 2147483648
        %v196 = vlaneseq
        %v197 = vand.u32 %v196, 127
        %vm198 = vcmp.eq.s32.totalorder %v197, 1
        %v199 = vmul.f32 %v195, %v178
        %200 = vadd.xlane.f32.xlu0 %v199
        %v201 = vpop.xlane.xlu0 %200
        %v202 = vsel %vm198, %v201, %v178
        %s203 = scalar_lea.vmem [#allocation2], 2
        %v204 = vld [vmem:[%s203] ss:$0 sm:$0xff]
        %v205 = vxor.u32 %v204, 2147483648
        %v206 = vlaneseq
        %v207 = vand.u32 %v206, 127
        %vm208 = vcmp.eq.s32.totalorder %v207, 2
        %v209 = vmul.f32 %v205, %v202
        %210 = vadd.xlane.f32.xlu0 %v209
        %v211 = vpop.xlane.xlu0 %210
        %v212 = vsel %vm208, %v211, %v202
        %s213 = scalar_lea.vmem [#allocation2], 3
        %v214 = vld [vmem:[%s213] ss:$0 sm:$0xff]
        %v215 = vxor.u32 %v214, 2147483648
        %v216 = vlaneseq
        %v217 = vand.u32 %v216, 127
        %vm218 = vcmp.eq.s32.totalorder %v217, 3
        %v219 = vmul.f32 %v215, %v212
        %220 = vadd.xlane.f32.xlu0 %v219
        %v221 = vpop.xlane.xlu0 %220
        %v222 = vsel %vm218, %v221, %v212
        %s223 = scalar_lea.vmem [#allocation2], 4
        %v224 = vld [vmem:[%s223] ss:$0 sm:$0xff]
        %v225 = vxor.u32 %v224, 2147483648
        %v226 = vlaneseq
        %v227 = vand.u32 %v226, 127
        %vm228 = vcmp.eq.s32.totalorder %v227, 4
        %v229 = vmul.f32 %v225, %v222
        %230 = vadd.xlane.f32.xlu0 %v229
        %v231 = vpop.xlane.xlu0 %230
        %v232 = vsel %vm228, %v231, %v222
        %s233 = scalar_lea.vmem [#allocation2], 5
        %v234 = vld [vmem:[%s233] ss:$0 sm:$0xff]
        %v235 = vxor.u32 %v234, 2147483648
        %v236 = vlaneseq
        %v237 = vand.u32 %v236, 127
        %vm238 = vcmp.eq.s32.totalorder %v237, 5
        %v239 = vmul.f32 %v235, %v232
        %240 = vadd.xlane.f32.xlu0 %v239
        %v241 = vpop.xlane.xlu0 %240
        %v242 = vsel %vm238, %v241, %v232
        %s243 = scalar_lea.vmem [#allocation2], 6
        %v244 = vld [vmem:[%s243] ss:$0 sm:$0xff]
        %v245 = vxor.u32 %v244, 2147483648
        %v246 = vlaneseq
        %v247 = vand.u32 %v246, 127
        %vm248 = vcmp.eq.s32.totalorder %v247, 6
        %v249 = vmul.f32 %v245, %v242
        %250 = vadd.xlane.f32.xlu0 %v249
        %v251 = vpop.xlane.xlu0 %250
        %v252 = vsel %vm248, %v251, %v242
        %s253 = scalar_lea.vmem [#allocation2], 7
        %v254 = vld [vmem:[%s253] ss:$0 sm:$0xff]
        %v255 = vxor.u32 %v254, 2147483648
        %v256 = vlaneseq
        %v257 = vand.u32 %v256, 127
        %vm258 = vcmp.eq.s32.totalorder %v257, 7
        %v259 = vmul.f32 %v255, %v252
        %260 = vadd.xlane.f32.xlu0 %v259
        %v261 = vpop.xlane.xlu0 %260
        %v262 = vsel %vm258, %v261, %v252
        %s263 = scalar_lea.vmem [#allocation2], 8
        %v264 = vld [vmem:[%s263] ss:$0 sm:$0xff]
        %v265 = vxor.u32 %v264, 2147483648
        %v266 = vlaneseq
        %v267 = vand.u32 %v266, 127
        %vm268 = vcmp.eq.s32.totalorder %v267, 8
        %v269 = vmul.f32 %v265, %v262
        %270 = vadd.xlane.f32.xlu0 %v269
        %v271 = vpop.xlane.xlu0 %270
        %v272 = vsel %vm268, %v271, %v262
        %v273 = vmul.f32 %v265, %v185
        %274 = vadd.xlane.f32.xlu0 %v273
        %v275 = vpop.xlane.xlu0 %274
        %v276 = vsel %vm268, %v275, %v185
        %s277 = scalar_lea.vmem [#allocation2], 9
        %v278 = vld [vmem:[%s277] ss:$0 sm:$0xff]
        %v279 = vxor.u32 %v278, 2147483648
        %v280 = vlaneseq
        %v281 = vand.u32 %v280, 127
        %vm282 = vcmp.eq.s32.totalorder %v281, 9
        %v283 = vmul.f32 %v279, %v272
        %284 = vadd.xlane.f32.xlu0 %v283
        %v285 = vpop.xlane.xlu0 %284
        %v286 = vsel %vm282, %v285, %v272
        %v287 = vmul.f32 %v279, %v276
        %288 = vadd.xlane.f32.xlu0 %v287
        %v289 = vpop.xlane.xlu0 %288
        %v290 = vsel %vm282, %v289, %v276
        %s291 = scalar_lea.vmem [#allocation2], 10
        %v292 = vld [vmem:[%s291] ss:$0 sm:$0xff]
        %v293 = vxor.u32 %v292, 2147483648
        %v294 = vlaneseq
        %v295 = vand.u32 %v294, 127
        %vm296 = vcmp.eq.s32.totalorder %v295, 10
        %v297 = vmul.f32 %v293, %v286
        %298 = vadd.xlane.f32.xlu0 %v297
        %v299 = vpop.xlane.xlu0 %298
        %v300 = vsel %vm296, %v299, %v286
        %v301 = vmul.f32 %v293, %v290
        %302 = vadd.xlane.f32.xlu0 %v301
        %v303 = vpop.xlane.xlu0 %302
        %v304 = vsel %vm296, %v303, %v290
        %s305 = scalar_lea.vmem [#allocation2], 11
        %v306 = vld [vmem:[%s305] ss:$0 sm:$0xff]
        %v307 = vxor.u32 %v306, 2147483648
        %v308 = vlaneseq
        %v309 = vand.u32 %v308, 127
        %vm310 = vcmp.eq.s32.totalorder %v309, 11
        %v311 = vmul.f32 %v307, %v300
        %312 = vadd.xlane.f32.xlu0 %v311
        %v313 = vpop.xlane.xlu0 %312
        %v314 = vsel %vm310, %v313, %v300
        %v315 = vmul.f32 %v307, %v304
        %316 = vadd.xlane.f32.xlu0 %v315
        %v317 = vpop.xlane.xlu0 %316
        %v318 = vsel %vm310, %v317, %v304
        %s319 = scalar_lea.vmem [#allocation2], 12
        %v320 = vld [vmem:[%s319] ss:$0 sm:$0xff]
        %v321 = vxor.u32 %v320, 2147483648
        %v322 = vlaneseq
        %v323 = vand.u32 %v322, 127
        %vm324 = vcmp.eq.s32.totalorder %v323, 12
        %v325 = vmul.f32 %v321, %v314
        %326 = vadd.xlane.f32.xlu0 %v325
        %v327 = vpop.xlane.xlu0 %326
        %v328 = vsel %vm324, %v327, %v314
        %v329 = vmul.f32 %v321, %v318
        %330 = vadd.xlane.f32.xlu0 %v329
        %v331 = vpop.xlane.xlu0 %330
        %v332 = vsel %vm324, %v331, %v318
        %s333 = scalar_lea.vmem [#allocation2], 13
        %v334 = vld [vmem:[%s333] ss:$0 sm:$0xff]
        %v335 = vxor.u32 %v334, 2147483648
        %v336 = vlaneseq
        %v337 = vand.u32 %v336, 127
        %vm338 = vcmp.eq.s32.totalorder %v337, 13
        %v339 = vmul.f32 %v335, %v328
        %340 = vadd.xlane.f32.xlu0 %v339
        %v341 = vpop.xlane.xlu0 %340
        %v342 = vsel %vm338, %v341, %v328
        %v343 = vmul.f32 %v335, %v332
        %344 = vadd.xlane.f32.xlu0 %v343
        %v345 = vpop.xlane.xlu0 %344
        %v346 = vsel %vm338, %v345, %v332
        %s347 = scalar_lea.vmem [#allocation2], 14
        %v348 = vld [vmem:[%s347] ss:$0 sm:$0xff]
        %v349 = vxor.u32 %v348, 2147483648
        %v350 = vlaneseq
        %v351 = vand.u32 %v350, 127
        %vm352 = vcmp.eq.s32.totalorder %v351, 14
        %v353 = vmul.f32 %v349, %v342
        %354 = vadd.xlane.f32.xlu0 %v353
        %v355 = vpop.xlane.xlu0 %354
        %v356 = vsel %vm352, %v355, %v342
        %v357 = vmul.f32 %v349, %v346
        %358 = vadd.xlane.f32.xlu0 %v357
        %v359 = vpop.xlane.xlu0 %358
        %v360 = vsel %vm352, %v359, %v346
        %s361 = scalar_lea.vmem [#allocation2], 15
        %v362 = vld [vmem:[%s361] ss:$0 sm:$0xff]
        %v363 = vxor.u32 %v362, 2147483648
        %v364 = vlaneseq
        %v365 = vand.u32 %v364, 127
        %vm366 = vcmp.eq.s32.totalorder %v365, 15
        %v367 = vmul.f32 %v363, %v356
        %368 = vadd.xlane.f32.xlu0 %v367
        %v369 = vpop.xlane.xlu0 %368
        %v370 = vsel %vm366, %v369, %v356
        %v371 = vmul.f32 %v363, %v360
        %372 = vadd.xlane.f32.xlu0 %v371
        %v373 = vpop.xlane.xlu0 %372
        %v374 = vsel %vm366, %v373, %v360
        %s375 = scalar_lea.vmem [#allocation2], 16
        %v376 = vld [vmem:[%s375] ss:$0 sm:$0xff]
        %v377 = vxor.u32 %v376, 2147483648
        %v378 = vlaneseq
        %v379 = vand.u32 %v378, 127
        %vm380 = vcmp.eq.s32.totalorder %v379, 16
        %v381 = vmul.f32 %v377, %v370
        %382 = vadd.xlane.f32.xlu0 %v381
        %v383 = vpop.xlane.xlu0 %382
        %v384 = vsel %vm380, %v383, %v370
        %v385 = vmul.f32 %v377, %v374
        %386 = vadd.xlane.f32.xlu0 %v385
        %v387 = vpop.xlane.xlu0 %386
        %v388 = vsel %vm380, %v387, %v374
        %v389 = vmul.f32 %v377, %v192
        %390 = vadd.xlane.f32.xlu0 %v389
        %v391 = vpop.xlane.xlu0 %390
        %v392 = vsel %vm380, %v391, %v192
        %s393 = scalar_lea.vmem [#allocation2], 17
        %v394 = vld [vmem:[%s393] ss:$0 sm:$0xff]
        %v395 = vxor.u32 %v394, 2147483648
        %v396 = vlaneseq
        %v397 = vand.u32 %v396, 127
        %vm398 = vcmp.eq.s32.totalorder %v397, 17
        %v399 = vmul.f32 %v395, %v384
        %400 = vadd.xlane.f32.xlu0 %v399
        %v401 = vpop.xlane.xlu0 %400
        %v402 = vsel %vm398, %v401, %v384
        %v403 = vmul.f32 %v395, %v388
        %404 = vadd.xlane.f32.xlu0 %v403
        %v405 = vpop.xlane.xlu0 %404
        %v406 = vsel %vm398, %v405, %v388
        %v407 = vmul.f32 %v395, %v392
        %408 = vadd.xlane.f32.xlu0 %v407
        %v409 = vpop.xlane.xlu0 %408
        %v410 = vsel %vm398, %v409, %v392
        %s411 = scalar_lea.vmem [#allocation2], 18
        %v412 = vld [vmem:[%s411] ss:$0 sm:$0xff]
        %v413 = vxor.u32 %v412, 2147483648
        %v414 = vlaneseq
        %v415 = vand.u32 %v414, 127
        %vm416 = vcmp.eq.s32.totalorder %v415, 18
        %v417 = vmul.f32 %v413, %v402
        %418 = vadd.xlane.f32.xlu0 %v417
        %v419 = vpop.xlane.xlu0 %418
        %v420 = vsel %vm416, %v419, %v402
        %v421 = vmul.f32 %v413, %v406
        %422 = vadd.xlane.f32.xlu0 %v421
        %v423 = vpop.xlane.xlu0 %422
        %v424 = vsel %vm416, %v423, %v406
        %v425 = vmul.f32 %v413, %v410
        %426 = vadd.xlane.f32.xlu0 %v425
        %v427 = vpop.xlane.xlu0 %426
        %v428 = vsel %vm416, %v427, %v410
        %s429 = scalar_lea.vmem [#allocation2], 19
        %v430 = vld [vmem:[%s429] ss:$0 sm:$0xff]
        %v431 = vxor.u32 %v430, 2147483648
        %v432 = vlaneseq
        %v433 = vand.u32 %v432, 127
        %vm434 = vcmp.eq.s32.totalorder %v433, 19
        %v435 = vmul.f32 %v431, %v420
        %436 = vadd.xlane.f32.xlu0 %v435
        %v437 = vpop.xlane.xlu0 %436
        %v438 = vsel %vm434, %v437, %v420
        %v439 = vmul.f32 %v431, %v424
        %440 = vadd.xlane.f32.xlu0 %v439
        %v441 = vpop.xlane.xlu0 %440
        %v442 = vsel %vm434, %v441, %v424
        %v443 = vmul.f32 %v431, %v428
        %444 = vadd.xlane.f32.xlu0 %v443
        %v445 = vpop.xlane.xlu0 %444
        %v446 = vsel %vm434, %v445, %v428
        %s447 = scalar_lea.vmem [#allocation2], 20
        %v448 = vld [vmem:[%s447] ss:$0 sm:$0xff]
        %v449 = vxor.u32 %v448, 2147483648
        %v450 = vlaneseq
        %v451 = vand.u32 %v450, 127
        %vm452 = vcmp.eq.s32.totalorder %v451, 20
        %v453 = vmul.f32 %v449, %v438
        %454 = vadd.xlane.f32.xlu0 %v453
        %v455 = vpop.xlane.xlu0 %454
        %v456 = vsel %vm452, %v455, %v438
        %v457 = vmul.f32 %v449, %v442
        %458 = vadd.xlane.f32.xlu0 %v457
        %v459 = vpop.xlane.xlu0 %458
        %v460 = vsel %vm452, %v459, %v442
        %v461 = vmul.f32 %v449, %v446
        %462 = vadd.xlane.f32.xlu0 %v461
        %v463 = vpop.xlane.xlu0 %462
        %v464 = vsel %vm452, %v463, %v446
        %s465 = scalar_lea.vmem [#allocation2], 21
        %v466 = vld [vmem:[%s465] ss:$0 sm:$0xff]
        %v467 = vxor.u32 %v466, 2147483648
        %v468 = vlaneseq
        %v469 = vand.u32 %v468, 127
        %vm470 = vcmp.eq.s32.totalorder %v469, 21
        %v471 = vmul.f32 %v467, %v456
        %472 = vadd.xlane.f32.xlu0 %v471
        %v473 = vpop.xlane.xlu0 %472
        %v474 = vsel %vm470, %v473, %v456
        %v475 = vmul.f32 %v467, %v460
        %476 = vadd.xlane.f32.xlu0 %v475
        %v477 = vpop.xlane.xlu0 %476
        %v478 = vsel %vm470, %v477, %v460
        %v479 = vmul.f32 %v467, %v464
        %480 = vadd.xlane.f32.xlu0 %v479
        %v481 = vpop.xlane.xlu0 %480
        %v482 = vsel %vm470, %v481, %v464
        %s483 = scalar_lea.vmem [#allocation2], 22
        %v484 = vld [vmem:[%s483] ss:$0 sm:$0xff]
        %v485 = vxor.u32 %v484, 2147483648
        %v486 = vlaneseq
        %v487 = vand.u32 %v486, 127
        %vm488 = vcmp.eq.s32.totalorder %v487, 22
        %v489 = vmul.f32 %v485, %v474
        %490 = vadd.xlane.f32.xlu0 %v489
        %v491 = vpop.xlane.xlu0 %490
        %v492 = vsel %vm488, %v491, %v474
        %v493 = vmul.f32 %v485, %v478
        %494 = vadd.xlane.f32.xlu0 %v493
        %v495 = vpop.xlane.xlu0 %494
        %v496 = vsel %vm488, %v495, %v478
        %v497 = vmul.f32 %v485, %v482
        %498 = vadd.xlane.f32.xlu0 %v497
        %v499 = vpop.xlane.xlu0 %498
        %v500 = vsel %vm488, %v499, %v482
        %s501 = scalar_lea.vmem [#allocation2], 23
        %v502 = vld [vmem:[%s501] ss:$0 sm:$0xff]
        %v503 = vxor.u32 %v502, 2147483648
        %v504 = vlaneseq
        %v505 = vand.u32 %v504, 127
        %vm506 = vcmp.eq.s32.totalorder %v505, 23
        %v507 = vmul.f32 %v503, %v492
        %508 = vadd.xlane.f32.xlu0 %v507
        %v509 = vpop.xlane.xlu0 %508
        %v510 = vsel %vm506, %v509, %v492
        %v511 = vmul.f32 %v503, %v496
        %512 = vadd.xlane.f32.xlu0 %v511
        %v513 = vpop.xlane.xlu0 %512
        %v514 = vsel %vm506, %v513, %v496
        %v515 = vmul.f32 %v503, %v500
        %516 = vadd.xlane.f32.xlu0 %v515
        %v517 = vpop.xlane.xlu0 %516
        %v518 = vsel %vm506, %v517, %v500
        %v519 = vrcp.pop %v129
        %v520 = vmul.f32 %v510, %v519
        %vm521 = vweird.f32 %v129
        %v522 = vsel %vm521, %v510, %v520
        %523 = vst [vmem:[%s118] sm:$0xff] %v522
        %v524 = vrcp.pop %v145
        %v525 = vmul.f32 %v514, %v524
        %vm526 = vweird.f32 %v145
        %v527 = vsel %vm526, %v514, %v525
        %s528 = scalar_lea.vmem %s118, 8 [#allocation1]
        %529 = vst [vmem:[%s528] sm:$0xff] %v527
        %v530 = vrcp.pop %v161
        %v531 = vmul.f32 %v518, %v530
        %vm532 = vweird.f32 %v161
        %v533 = vsel %vm532, %v518, %v531
        %s534 = scalar_lea.vmem %s118, 16 [#allocation1]
        %535 = vst [vmem:[%s534] sm:$0xff] %v533
        %s536 = sand.u32 %s8, 1
        %s537 = sand.u32 %s8, 1
        %s538 = smul.addr %s537, 24
        %s539 = scalar_lea.vmem [#allocation1], %s538
        %s540 = sadd.s32 %s17, %s16
        %s541 = smul.addr %s15, 3
        %s542 = sadd.s32 %s540, %s541
        %s543 = smul.addr %s14, 3
        %s544 = sadd.s32 %s542, %s543
        %s545 = smul.addr %s544, 8
        %s546 = scalar_lea.vmem %s1, %s545
        // Predicated region
        $region55: #{custom-call.5} parent=53 // pred_check
          _
        $region56: #{custom-call.5} parent=53 // pred_check_branch
          %548 = sbr.rel (0) target = $region58
        $region57: #{custom-call.5} parent=53 // pred_region
          // Predicated region
          $region59: #{custom-call.5} parent=57 // pred_check
            _
          $region60: #{custom-call.5} parent=57 // pred_check_branch
            %550 = sbr.rel (0) target = $region62
          $region61: #{custom-call.5} parent=57 // pred_region
            // Predicated region
            $region74: #{custom-call.5} parent=61 // pred_check
              _
            $region75: #{custom-call.5} parent=61 // pred_check_branch
              %570 = sbr.rel (0) target = $region77
            $region76: #{custom-call.5} parent=61 // pred_region
              loop: start=0, step=1, limit=1
              $region78: #{custom-call.5} parent=76 // loop_pre_header
                _
              $region79: #{custom-call.5} parent=76 // loop_header
                %s572 = sphi 0, %s576
                %p573 = scmp.ge.s32.totalorder %s572, 1
                %s577 = sphi %s539, %s539
                %s578 = sphi %s546, %s546
              $region80: #{custom-call.5} parent=76 // loop_header_branch
                %575 = sbr.rel (%p573) target = $region84
              $region81: #{custom-call.5} parent=76 // loop_body
                %v579 = vld [vmem:[%s577] sm:$0xff]
                %580 = vst [vmem:[%s578] sm:$0xff] %v579
                %v581 = vld [vmem:[%s577 + $0x8] sm:$0xff]
                %582 = vst [vmem:[%s578 + $0x8] sm:$0xff] %v581
                %v583 = vld [vmem:[%s577 + $0x10] sm:$0xff]
                %584 = vst [vmem:[%s578 + $0x10] sm:$0xff] %v583
              $region82: #{custom-call.5} parent=76 // loop_footer
                %s576 = sadd.s32 1, %s572
              $region83: #{custom-call.5} parent=76 // loop_footer_branch
                %571 = sbr.rel target = $region79
              $region84: #{custom-call.5} parent=76 // loop_exit
                _
            $region77: #{custom-call.5} parent=61 // pred_fallthru
              _
            // Predicated region
            $region85: #{custom-call.5} parent=61 // pred_check
              _
            $region86: #{custom-call.5} parent=61 // pred_check_branch
              %586 = sbr.rel target = $region88
            $region87: #{custom-call.5} parent=61 // pred_region
              _
            $region88: #{custom-call.5} parent=61 // pred_fallthru
              _
          $region62: #{custom-call.5} parent=57 // pred_fallthru
            _
          // Predicated region
          $region63: #{custom-call.5} parent=57 // pred_check
            _
          $region64: #{custom-call.5} parent=57 // pred_check_branch
            %552 = sbr.rel target = $region66
          $region65: #{custom-call.5} parent=57 // pred_region
            %s554 = ssub.s32 256, 1
            loop: start=0, step=1, limit=1
            $region67: #{custom-call.5} parent=65 // loop_pre_header
              _
            $region68: #{custom-call.5} parent=65 // loop_header
              %s556 = sphi 0, %s560
              %p557 = scmp.ge.s32.totalorder %s556, 1
              %s561 = sphi %s539, %s539
              %s562 = sphi %s546, %s546
            $region69: #{custom-call.5} parent=65 // loop_header_branch
              %559 = sbr.rel (%p557) target = $region73
            $region70: #{custom-call.5} parent=65 // loop_body
              %v563 = vld [vmem:[%s561] sm:%s554]
              %564 = vst [vmem:[%s562] sm:%s554] %v563
              %v565 = vld [vmem:[%s561 + $0x8] sm:%s554]
              %566 = vst [vmem:[%s562 + $0x8] sm:%s554] %v565
              %v567 = vld [vmem:[%s561 + $0x10] sm:%s554]
              %568 = vst [vmem:[%s562 + $0x10] sm:%s554] %v567
            $region71: #{custom-call.5} parent=65 // loop_footer
              %s560 = sadd.s32 1, %s556
            $region72: #{custom-call.5} parent=65 // loop_footer_branch
              %555 = sbr.rel target = $region68
            $region73: #{custom-call.5} parent=65 // loop_exit
              _
          $region66: #{custom-call.5} parent=57 // pred_fallthru
            _
        $region58: #{custom-call.5} parent=53 // pred_fallthru
          _
        %587 = vnop
      $region54: #{custom-call.5} parent=5 // pred_fallthru
        _
      %p588 = scmp.le.s32.totalorder 2, %s3
      // Predicated region
      $region89: #{custom-call.5} parent=5 // pred_check
        %p589 = pneg %p588
      $region90: #{custom-call.5} parent=5 // pred_check_branch
        %591 = sbr.rel (%p589) target = $region92
      $region91: #{custom-call.5} parent=5 // pred_region
        %s592 = ssub.s32 %s3, 2
        %s593 = sand.u32 %s9, 1
        %s594 = sand.u32 %s9, 1
        %s595 = smul.addr %s594, 24
        %s596 = scalar_lea.vmem [#allocation1], %s595
      $region92: #{custom-call.5} parent=5 // pred_fallthru
        _
    $region6: #{custom-call.5} parent=1 // loop_footer
      %s7 = sadd.s32 1, %s3
    $region7: #{custom-call.5} parent=1 // loop_footer_branch
      %2 = sbr.rel target = $region3
    $region8: #{custom-call.5} parent=1 // loop_exit
      _

// kernel: gp_baseline_forward.2
$region0: #{gp_baseline_forward.2}
  #allocation0 [shape = 'u32[]', space=smem, size = 0x4, offset = 0x4, fixed_abs, tag = 'smem constant byte address 0x4 - core index']
  #allocation1 [shape = 'u32[144,128]{1,0:T(1,128)}', space=vmem, size = 0x12000, scoped, tag = 'internal scratch']
  %s0 = inlined_call_operand.vmem [shape: f32[2,24,1], index: 0, kind: input, shape index: {}]
  %s1 = inlined_call_operand.vmem [shape: f32[2,1,24], index: 1, kind: input, shape index: {}]
  %s2 = inlined_call_operand.vmem [shape: f32[2,24,1], index: 2, kind: input, shape index: {}]
  %s3 = inlined_call_operand.vmem [shape: f32[2,1,24], index: 3, kind: input, shape index: {}]
  %s4 = inlined_call_operand.vmem [shape: f32[3,24,24], index: 4, kind: input, shape index: {}, may-alias: {4,5,6}]
  %s5 = inlined_call_operand.vmem [shape: f32[3,24,24], index: 5, kind: input, shape index: {}, may-alias: {4,5,6}]
  %s6 = inlined_call_operand.vmem [shape: f32[3,24,24], index: 6, kind: input, shape index: {}, may-alias: {4,5,6}]
  %s7 = inlined_call_operand.vmem [shape: f32[2,24,24], index: 7, kind: output, shape index: {0}]
  %s8 = inlined_call_operand.vmem [shape: f32[2,24,24], index: 8, kind: output, shape index: {1}]
  %s9 = inlined_call_operand.vmem [shape: f32[2,24,24], index: 9, kind: output, shape index: {2}]
  %10 = xla_tuple %s7, %s8, %s9
  %s11 = sld [smem:[#allocation0]]
  $region77: #{gp_baseline_forward.2} parent=0
    _
  %s13 = ssub.s32 1, %s11
  %s14 = scalar_select 0, %s13, %s11
  loop: start=0, step=1, limit=4
  $region2: #{gp_baseline_forward.2} parent=0 // loop_pre_header
    _
  $region3: #{gp_baseline_forward.2} parent=0 // loop_header
    %s16 = sphi 0, %s20
    %p17 = scmp.ge.s32.totalorder %s16, 4
    %s26 = sphi 0, %s28
    %s29 = sphi 0, %s26
    %s30 = sphi 0, %s29
    %s46 = sphi 0, %s30
    %s52 = sphi 0, %s54
    %s55 = sphi 0, %s52
    %s56 = sphi 0, %s55
    %s72 = sphi 0, %s56
    %s78 = sphi 0, %s80
    %s81 = sphi 0, %s78
    %s82 = sphi 0, %s81
    %s98 = sphi 0, %s82
    %s104 = sphi 0, %s106
    %s107 = sphi 0, %s104
    %s108 = sphi 0, %s107
    %s124 = sphi 0, %s108
    %s128 = sphi 0, %s128
    %s130 = sphi 0, %s128
    %s131 = sphi 0, %s130
    %s145 = sphi 0, %s131
    %s149 = sphi 0, %s149
    %s151 = sphi 0, %s149
    %s152 = sphi 0, %s151
    %s166 = sphi 0, %s152
    %s170 = sphi 0, %s170
    %s172 = sphi 0, %s170
    %s173 = sphi 0, %s172
    %s187 = sphi 0, %s173
    %s193 = sphi 0, %s195
    %s196 = sphi 0, %s193
    %s197 = sphi 0, %s196
    %s213 = sphi 0, %s197
    %s219 = sphi 0, %s221
    %s222 = sphi 0, %s219
    %s223 = sphi 0, %s222
    %s239 = sphi 0, %s223
    %s245 = sphi 0, %s247
    %s248 = sphi 0, %s245
    %s249 = sphi 0, %s248
    %s265 = sphi 0, %s249
  $region4: #{gp_baseline_forward.2} parent=0 // loop_header_branch
    %19 = sbr.rel (%p17) target = $region8
  $region5: #{gp_baseline_forward.2} parent=0 // loop_body
    %s21 = ssub.s32 %s16, 1
    %s22 = ssub.s32 %s16, 2
    %s23 = sadd.s32 %s16, 1
    %s24 = ssub.s32 %s16, %s23
    %p25 = scmp.eq.s32.totalorder %s24, 0
    %s27 = sadd.s32 %s26, 1
    %s28 = scalar_select %p25, %s26, %s27
    %p31 = pneg %p25
    %p32 = scmp.eq.s32.totalorder %s16, 1
    %p33 = por %p31, %p32
    %p34 = scmp.ne.s32.totalorder %s26, %s29
    %p35 = scmp.eq.s32.totalorder %s16, 0
    %p36 = por %p34, %p35
    %p37 = scmp.ne.s32.totalorder %s26, %s29
    %p38 = scmp.eq.s32.totalorder %s21, 1
    %p39 = por %p37, %p38
    %p40 = scmp.ne.s32.totalorder %s29, %s30
    %p41 = scmp.eq.s32.totalorder %s21, 0
    %p42 = por %p40, %p41
    %p43 = scmp.ne.s32.totalorder %s29, %s30
    %p44 = scmp.eq.s32.totalorder %s22, 1
    %p45 = por %p43, %p44
    %p47 = scmp.ne.s32.totalorder %s30, %s46
    %p48 = scmp.eq.s32.totalorder %s22, 0
    %p49 = por %p47, %p48
    %s50 = ssub.s32 %s16, %s23
    %p51 = scmp.eq.s32.totalorder %s50, 0
    %s53 = sadd.s32 %s52, 1
    %s54 = scalar_select %p51, %s52, %s53
    %p57 = pneg %p51
    %p58 = scmp.eq.s32.totalorder %s16, 1
    %p59 = por %p57, %p58
    %p60 = scmp.ne.s32.totalorder %s52, %s55
    %p61 = scmp.eq.s32.totalorder %s16, 0
    %p62 = por %p60, %p61
    %p63 = scmp.ne.s32.totalorder %s52, %s55
    %p64 = scmp.eq.s32.totalorder %s21, 1
    %p65 = por %p63, %p64
    %p66 = scmp.ne.s32.totalorder %s55, %s56
    %p67 = scmp.eq.s32.totalorder %s21, 0
    %p68 = por %p66, %p67
    %p69 = scmp.ne.s32.totalorder %s55, %s56
    %p70 = scmp.eq.s32.totalorder %s22, 1
    %p71 = por %p69, %p70
    %p73 = scmp.ne.s32.totalorder %s56, %s72
    %p74 = scmp.eq.s32.totalorder %s22, 0
    %p75 = por %p73, %p74
    %s76 = ssub.s32 %s16, %s23
    %p77 = scmp.eq.s32.totalorder %s76, 0
    %s79 = sadd.s32 %s78, 1
    %s80 = scalar_select %p77, %s78, %s79
    %p83 = pneg %p77
    %p84 = scmp.eq.s32.totalorder %s16, 1
    %p85 = por %p83, %p84
    %p86 = scmp.ne.s32.totalorder %s78, %s81
    %p87 = scmp.eq.s32.totalorder %s16, 0
    %p88 = por %p86, %p87
    %p89 = scmp.ne.s32.totalorder %s78, %s81
    %p90 = scmp.eq.s32.totalorder %s21, 1
    %p91 = por %p89, %p90
    %p92 = scmp.ne.s32.totalorder %s81, %s82
    %p93 = scmp.eq.s32.totalorder %s21, 0
    %p94 = por %p92, %p93
    %p95 = scmp.ne.s32.totalorder %s81, %s82
    %p96 = scmp.eq.s32.totalorder %s22, 1
    %p97 = por %p95, %p96
    %p99 = scmp.ne.s32.totalorder %s82, %s98
    %p100 = scmp.eq.s32.totalorder %s22, 0
    %p101 = por %p99, %p100
    %s102 = ssub.s32 %s16, %s23
    %p103 = scmp.eq.s32.totalorder %s102, 0
    %s105 = sadd.s32 %s104, 1
    %s106 = scalar_select %p103, %s104, %s105
    %p109 = pneg %p103
    %p110 = scmp.eq.s32.totalorder %s16, 1
    %p111 = por %p109, %p110
    %p112 = scmp.ne.s32.totalorder %s104, %s107
    %p113 = scmp.eq.s32.totalorder %s16, 0
    %p114 = por %p112, %p113
    %p115 = scmp.ne.s32.totalorder %s104, %s107
    %p116 = scmp.eq.s32.totalorder %s21, 1
    %p117 = por %p115, %p116
    %p118 = scmp.ne.s32.totalorder %s107, %s108
    %p119 = scmp.eq.s32.totalorder %s21, 0
    %p120 = por %p118, %p119
    %p121 = scmp.ne.s32.totalorder %s107, %s108
    %p122 = scmp.eq.s32.totalorder %s22, 1
    %p123 = por %p121, %p122
    %p125 = scmp.ne.s32.totalorder %s108, %s124
    %p126 = scmp.eq.s32.totalorder %s22, 0
    %p127 = por %p125, %p126
    %s129 = sadd.s32 %s128, 1
    %p132 = scmp.eq.s32.totalorder %s16, 1
    %p133 = scmp.ne.s32.totalorder %s128, %s130
    %p134 = scmp.eq.s32.totalorder %s16, 0
    %p135 = por %p133, %p134
    %p136 = scmp.ne.s32.totalorder %s128, %s130
    %p137 = scmp.eq.s32.totalorder %s21, 1
    %p138 = por %p136, %p137
    %p139 = scmp.ne.s32.totalorder %s130, %s131
    %p140 = scmp.eq.s32.totalorder %s21, 0
    %p141 = por %p139, %p140
    %p142 = scmp.ne.s32.totalorder %s130, %s131
    %p143 = scmp.eq.s32.totalorder %s22, 1
    %p144 = por %p142, %p143
    %p146 = scmp.ne.s32.totalorder %s131, %s145
    %p147 = scmp.eq.s32.totalorder %s22, 0
    %p148 = por %p146, %p147
    %s150 = sadd.s32 %s149, 1
    %p153 = scmp.eq.s32.totalorder %s16, 1
    %p154 = scmp.ne.s32.totalorder %s149, %s151
    %p155 = scmp.eq.s32.totalorder %s16, 0
    %p156 = por %p154, %p155
    %p157 = scmp.ne.s32.totalorder %s149, %s151
    %p158 = scmp.eq.s32.totalorder %s21, 1
    %p159 = por %p157, %p158
    %p160 = scmp.ne.s32.totalorder %s151, %s152
    %p161 = scmp.eq.s32.totalorder %s21, 0
    %p162 = por %p160, %p161
    %p163 = scmp.ne.s32.totalorder %s151, %s152
    %p164 = scmp.eq.s32.totalorder %s22, 1
    %p165 = por %p163, %p164
    %p167 = scmp.ne.s32.totalorder %s152, %s166
    %p168 = scmp.eq.s32.totalorder %s22, 0
    %p169 = por %p167, %p168
    %s171 = sadd.s32 %s170, 1
    %p174 = scmp.eq.s32.totalorder %s16, 1
    %p175 = scmp.ne.s32.totalorder %s170, %s172
    %p176 = scmp.eq.s32.totalorder %s16, 0
    %p177 = por %p175, %p176
    %p178 = scmp.ne.s32.totalorder %s170, %s172
    %p179 = scmp.eq.s32.totalorder %s21, 1
    %p180 = por %p178, %p179
    %p181 = scmp.ne.s32.totalorder %s172, %s173
    %p182 = scmp.eq.s32.totalorder %s21, 0
    %p183 = por %p181, %p182
    %p184 = scmp.ne.s32.totalorder %s172, %s173
    %p185 = scmp.eq.s32.totalorder %s22, 1
    %p186 = por %p184, %p185
    %p188 = scmp.ne.s32.totalorder %s173, %s187
    %p189 = scmp.eq.s32.totalorder %s22, 0
    %p190 = por %p188, %p189
    %s191 = ssub.s32 %s16, %s23
    %p192 = scmp.eq.s32.totalorder %s191, 0
    %s194 = sadd.s32 %s193, 1
    %s195 = scalar_select %p192, %s193, %s194
    %p198 = pneg %p192
    %p199 = scmp.eq.s32.totalorder %s16, 1
    %p200 = por %p198, %p199
    %p201 = scmp.ne.s32.totalorder %s193, %s196
    %p202 = scmp.eq.s32.totalorder %s16, 0
    %p203 = por %p201, %p202
    %p204 = scmp.ne.s32.totalorder %s193, %s196
    %p205 = scmp.eq.s32.totalorder %s21, 1
    %p206 = por %p204, %p205
    %p207 = scmp.ne.s32.totalorder %s196, %s197
    %p208 = scmp.eq.s32.totalorder %s21, 0
    %p209 = por %p207, %p208
    %p210 = scmp.ne.s32.totalorder %s196, %s197
    %p211 = scmp.eq.s32.totalorder %s22, 1
    %p212 = por %p210, %p211
    %p214 = scmp.ne.s32.totalorder %s197, %s213
    %p215 = scmp.eq.s32.totalorder %s22, 0
    %p216 = por %p214, %p215
    %s217 = ssub.s32 %s16, %s23
    %p218 = scmp.eq.s32.totalorder %s217, 0
    %s220 = sadd.s32 %s219, 1
    %s221 = scalar_select %p218, %s219, %s220
    %p224 = pneg %p218
    %p225 = scmp.eq.s32.totalorder %s16, 1
    %p226 = por %p224, %p225
    %p227 = scmp.ne.s32.totalorder %s219, %s222
    %p228 = scmp.eq.s32.totalorder %s16, 0
    %p229 = por %p227, %p228
    %p230 = scmp.ne.s32.totalorder %s219, %s222
    %p231 = scmp.eq.s32.totalorder %s21, 1
    %p232 = por %p230, %p231
    %p233 = scmp.ne.s32.totalorder %s222, %s223
    %p234 = scmp.eq.s32.totalorder %s21, 0
    %p235 = por %p233, %p234
    %p236 = scmp.ne.s32.totalorder %s222, %s223
    %p237 = scmp.eq.s32.totalorder %s22, 1
    %p238 = por %p236, %p237
    %p240 = scmp.ne.s32.totalorder %s223, %s239
    %p241 = scmp.eq.s32.totalorder %s22, 0
    %p242 = por %p240, %p241
    %s243 = ssub.s32 %s16, %s23
    %p244 = scmp.eq.s32.totalorder %s243, 0
    %s246 = sadd.s32 %s245, 1
    %s247 = scalar_select %p244, %s245, %s246
    %p250 = pneg %p244
    %p251 = scmp.eq.s32.totalorder %s16, 1
    %p252 = por %p250, %p251
    %p253 = scmp.ne.s32.totalorder %s245, %s248
    %p254 = scmp.eq.s32.totalorder %s16, 0
    %p255 = por %p253, %p254
    %p256 = scmp.ne.s32.totalorder %s245, %s248
    %p257 = scmp.eq.s32.totalorder %s21, 1
    %p258 = por %p256, %p257
    %p259 = scmp.ne.s32.totalorder %s248, %s249
    %p260 = scmp.eq.s32.totalorder %s21, 0
    %p261 = por %p259, %p260
    %p262 = scmp.ne.s32.totalorder %s248, %s249
    %p263 = scmp.eq.s32.totalorder %s22, 1
    %p264 = por %p262, %p263
    %p266 = scmp.ne.s32.totalorder %s249, %s265
    %p267 = scmp.eq.s32.totalorder %s22, 0
    %p268 = por %p266, %p267
    %p269 = scmp.le.s32.totalorder 1, %s16
    %p270 = scmp.lt.s32.totalorder %s16, 3
    %p271 = pnand %p269, %p270
    %p272 = pneg %p271
    // Predicated region
    $region9: #{gp_baseline_forward.2} parent=5 // pred_check
      _
    $region10: #{gp_baseline_forward.2} parent=5 // pred_check_branch
      %274 = sbr.rel (%p271) target = $region12
    $region11: #{gp_baseline_forward.2} parent=5 // pred_region
      %s275 = ssub.s32 %s16, 1
      // Predicated region
      $region13: #{gp_baseline_forward.2} parent=11 // pred_check
        %p276 = pneg %p141
      $region14: #{gp_baseline_forward.2} parent=11 // pred_check_branch
        %278 = sbr.rel (%p276) target = $region16
      $region15: #{gp_baseline_forward.2} parent=11 // pred_region
        _
      $region16: #{gp_baseline_forward.2} parent=11 // pred_fallthru
        _
      // Predicated region
      $region17: #{gp_baseline_forward.2} parent=11 // pred_check
        %p279 = pneg %p162
      $region18: #{gp_baseline_forward.2} parent=11 // pred_check_branch
        %281 = sbr.rel (%p279) target = $region20
      $region19: #{gp_baseline_forward.2} parent=11 // pred_region
        _
      $region20: #{gp_baseline_forward.2} parent=11 // pred_fallthru
        _
      // Predicated region
      $region21: #{gp_baseline_forward.2} parent=11 // pred_check
        %p282 = pneg %p183
      $region22: #{gp_baseline_forward.2} parent=11 // pred_check_branch
        %284 = sbr.rel (%p282) target = $region24
      $region23: #{gp_baseline_forward.2} parent=11 // pred_region
        _
      $region24: #{gp_baseline_forward.2} parent=11 // pred_fallthru
        _
    $region12: #{gp_baseline_forward.2} parent=5 // pred_fallthru
      _
    %p285 = scmp.lt.s32.totalorder %s16, 2
    // Predicated region
    $region25: #{gp_baseline_forward.2} parent=5 // pred_check
      %p286 = pneg %p285
    $region26: #{gp_baseline_forward.2} parent=5 // pred_check_branch
      %288 = sbr.rel (%p286) target = $region28
    $region27: #{gp_baseline_forward.2} parent=5 // pred_region
      // Predicated region
      $region29: #{gp_baseline_forward.2} parent=27 // pred_check
        %p289 = pneg %p36
      $region30: #{gp_baseline_forward.2} parent=27 // pred_check_branch
        %291 = sbr.rel (%p289) target = $region32
      $region31: #{gp_baseline_forward.2} parent=27 // pred_region
        %p292 = scmp.lt.s32.totalorder %s16, 1
        %s293 = scalar_select %p292, %s16, 1
        %s294 = smul.addr %s293, 3
        %s295 = smul.addr %s294, 8
        %s296 = scalar_lea.vmem %s0, %s295
      $region32: #{gp_baseline_forward.2} parent=27 // pred_fallthru
        _
      // Predicated region
      $region33: #{gp_baseline_forward.2} parent=27 // pred_check
        %p297 = pneg %p62
      $region34: #{gp_baseline_forward.2} parent=27 // pred_check_branch
        %299 = sbr.rel (%p297) target = $region36
      $region35: #{gp_baseline_forward.2} parent=27 // pred_region
        %p300 = scmp.lt.s32.totalorder %s16, 1
        %s301 = scalar_select %p300, %s16, 1
        %s302 = scalar_lea.vmem %s1, %s301
      $region36: #{gp_baseline_forward.2} parent=27 // pred_fallthru
        _
      // Predicated region
      $region37: #{gp_baseline_forward.2} parent=27 // pred_check
        %p303 = pneg %p88
      $region38: #{gp_baseline_forward.2} parent=27 // pred_check_branch
        %305 = sbr.rel (%p303) target = $region40
      $region39: #{gp_baseline_forward.2} parent=27 // pred_region
        %p306 = scmp.lt.s32.totalorder %s16, 1
        %s307 = scalar_select %p306, %s16, 1
        %s308 = smul.addr %s307, 3
        %s309 = smul.addr %s308, 8
        %s310 = scalar_lea.vmem %s2, %s309
      $region40: #{gp_baseline_forward.2} parent=27 // pred_fallthru
        _
      // Predicated region
      $region41: #{gp_baseline_forward.2} parent=27 // pred_check
        %p311 = pneg %p114
      $region42: #{gp_baseline_forward.2} parent=27 // pred_check_branch
        %313 = sbr.rel (%p311) target = $region44
      $region43: #{gp_baseline_forward.2} parent=27 // pred_region
        %p314 = scmp.lt.s32.totalorder %s16, 1
        %s315 = scalar_select %p314, %s16, 1
        %s316 = scalar_lea.vmem %s3, %s315
      $region44: #{gp_baseline_forward.2} parent=27 // pred_fallthru
        _
    $region28: #{gp_baseline_forward.2} parent=5 // pred_fallthru
      _
    %p317 = scmp.le.s32.totalorder 1, %s16
    %p318 = scmp.lt.s32.totalorder %s16, 3
    %p319 = pnand %p317, %p318
    %p320 = pneg %p319
    // Predicated region
    $region45: #{gp_baseline_forward.2} parent=5 // pred_check
      _
    $region46: #{gp_baseline_forward.2} parent=5 // pred_check_branch
      %322 = sbr.rel (%p319) target = $region48
    $region47: #{gp_baseline_forward.2} parent=5 // pred_region
      %s323 = ssub.s32 %s16, 1
      %p324 = scmp.lt.s32.totalorder %s21, 1
      %s325 = scalar_select %p324, %s21, 1
      %s326 = smul.addr %s325, 3
      %s327 = smul.addr %s326, 8
      %s328 = scalar_lea.vmem %s0, %s327
      %p329 = pneg %p42
      %p330 = pneg %p39
      %p331 = scmp.lt.s32.totalorder %s21, 1
      %s332 = scalar_select %p331, %s21, 1
      %s333 = scalar_lea.vmem %s1, %s332
      %p334 = pneg %p68
      %p335 = pneg %p65
      %p336 = scmp.lt.s32.totalorder %s21, 1
      %s337 = scalar_select %p336, %s21, 1
      %s338 = smul.addr %s337, 3
      %s339 = smul.addr %s338, 8
      %s340 = scalar_lea.vmem %s2, %s339
      %p341 = pneg %p94
      %p342 = pneg %p91
      %p343 = scmp.lt.s32.totalorder %s21, 1
      %s344 = scalar_select %p343, %s21, 1
      %s345 = scalar_lea.vmem %s3, %s344
      %p346 = pneg %p120
      %p347 = pneg %p117
      %p348 = pneg %p141
      %p349 = pneg %p138
      %p350 = pneg %p162
      %p351 = pneg %p159
      %p352 = pneg %p183
      %p353 = pneg %p180
      %p354 = pneg %p209
      %p355 = pneg %p206
      %p356 = scmp.lt.s32.totalorder %s21, 1
      %s357 = scalar_select %p356, %s21, 1
      %s358 = smul.addr %s357, 3
      %s359 = smul.addr %s358, 8
      %s360 = scalar_lea.vmem %s7, %s359
      %p361 = pneg %p235
      %p362 = pneg %p232
      %p363 = scmp.lt.s32.totalorder %s21, 1
      %s364 = scalar_select %p363, %s21, 1
      %s365 = smul.addr %s364, 3
      %s366 = smul.addr %s365, 8
      %s367 = scalar_lea.vmem %s8, %s366
      %p368 = pneg %p261
      %p369 = pneg %p258
      %p370 = scmp.lt.s32.totalorder %s21, 1
      %s371 = scalar_select %p370, %s21, 1
      %s372 = smul.addr %s371, 3
      %s373 = smul.addr %s372, 8
      %s374 = scalar_lea.vmem %s9, %s373
      %p375 = scmp.lt.s32.totalorder %s21, 1
      %s376 = scalar_select %p375, %s21, 1
      %s377 = smul.addr %s376, 3
      %s378 = smul.addr %s377, 8
      %s379 = scalar_lea.vmem %s0, %s378
      %p380 = scmp.lt.s32.totalorder %s21, 1
      %s381 = scalar_select %p380, %s21, 1
      %s382 = scalar_lea.vmem %s1, %s381
      %p383 = scmp.lt.s32.totalorder %s21, 1
      %s384 = scalar_select %p383, %s21, 1
      %s385 = smul.addr %s384, 3
      %s386 = smul.addr %s385, 8
      %s387 = scalar_lea.vmem %s2, %s386
      %p388 = scmp.lt.s32.totalorder %s21, 1
      %s389 = scalar_select %p388, %s21, 1
      %s390 = scalar_lea.vmem %s3, %s389
      %p391 = scmp.lt.s32.totalorder %s21, 1
      %s392 = scalar_select %p391, %s21, 1
      %s393 = smul.addr %s392, 3
      %s394 = smul.addr %s393, 8
      %s395 = scalar_lea.vmem %s7, %s394
      %p396 = scmp.lt.s32.totalorder %s21, 1
      %s397 = scalar_select %p396, %s21, 1
      %s398 = smul.addr %s397, 3
      %s399 = smul.addr %s398, 8
      %s400 = scalar_lea.vmem %s8, %s399
      %p401 = scmp.lt.s32.totalorder %s21, 1
      %s402 = scalar_select %p401, %s21, 1
      %s403 = smul.addr %s402, 3
      %s404 = smul.addr %s403, 8
      %s405 = scalar_lea.vmem %s9, %s404
      %v406 = vld [vmem:[%s379] sm:$0xff]
      %v407 = vld [vmem:[%s379 + $0x8] sm:$0xff]
      %v408 = vld [vmem:[%s379 + $0x10] sm:$0xff]
      %v409 = vld [vmem:[%s382] sm:$0x1]
      %v410 = vld [vmem:[%s387] sm:$0xff]
      %v411 = vld [vmem:[%s387 + $0x8] sm:$0xff]
      %v412 = vld [vmem:[%s387 + $0x10] sm:$0xff]
      %v413 = vld [vmem:[%s390] sm:$0x1]
      %415 = vset.pattern.permute.xlu0 0
      %416 = vperm.xlu0 %415, %v406
      %v417 = vpop.permute.xlu0 %416
      %420 = vset.pattern.permute.xlu0 0
      %421 = vperm.xlu0 %420, %v407
      %v422 = vpop.permute.xlu0 %421
      %425 = vset.pattern.permute.xlu0 0
      %426 = vperm.xlu0 %425, %v408
      %v427 = vpop.permute.xlu0 %426
      %v430 = vlaneseq
      %v431 = vshrl.u32 %v430, 7
      %v432 = vsub.s32 0, %v431
      %v433 = vrot.slane %v409, %v432
      %v435 = vsub.f32 %v417, %v433
      %v436 = vsub.f32 %v422, %v433
      %v437 = vsub.f32 %v427, %v433
      %v439 = vlaneseq
      %v440 = vshrl.u32 %v439, 7
      %v441 = vsub.s32 0, %v440
      %v442 = vrot.slane %v413, %v441
      %v444 = vsub.f32 %v417, %v442
      %v445 = vsub.f32 %v422, %v442
      %v446 = vsub.f32 %v427, %v442
      %448 = vset.pattern.permute.xlu0 0
      %449 = vperm.xlu0 %448, %v410
      %v450 = vpop.permute.xlu0 %449
      %453 = vset.pattern.permute.xlu0 0
      %454 = vperm.xlu0 %453, %v411
      %v455 = vpop.permute.xlu0 %454
      %458 = vset.pattern.permute.xlu0 0
      %459 = vperm.xlu0 %458, %v412
      %v460 = vpop.permute.xlu0 %459
      %v462 = vsub.f32 %v450, %v442
      %v463 = vsub.f32 %v455, %v442
      %v464 = vsub.f32 %v460, %v442
      %v465 = vmul.f32 %v435, %v435
      %v466 = vmul.f32 %v436, %v436
      %v467 = vmul.f32 %v437, %v437
      %v468 = vmul.f32 %v444, %v444
      %v469 = vmul.f32 %v445, %v445
      %v470 = vmul.f32 %v446, %v446
      %v471 = vmul.f32 %v462, %v462
      %v472 = vmul.f32 %v463, %v463
      %v473 = vmul.f32 %v464, %v464
      %v474 = vld [vmem:[%s4] sm:$0xff]
      %v475 = vld [vmem:[%s4 + $0x8] sm:$0xff]
      %v476 = vld [vmem:[%s4 + $0x10] sm:$0xff]
      %v477 = vsub.f32 0.0, %v465
      %v478 = vsub.f32 0.0, %v466
      %v479 = vsub.f32 0.0, %v467
      %v480 = vmul.f32 %v477, 2.0
      %v481 = vmul.f32 %v478, 2.0
      %v482 = vmul.f32 %v479, 2.0
      %v483 = vmul.f32 %v480, 1.442695
      %v484 = vpow.pop %v483
      %v485 = vmul.f32 %v481, 1.442695
      %v486 = vpow.pop %v485
      %v487 = vmul.f32 %v482, 1.442695
      %v488 = vpow.pop %v487
      %v489 = vmul.f32 %v474, %v484
      %v490 = vmul.f32 %v475, %v486
      %v491 = vmul.f32 %v476, %v488
      %v492 = vadd.f32 %v489, 0.0
      %v493 = vadd.f32 %v490, 0.0
      %v494 = vadd.f32 %v491, 0.0
      %v495 = vld [vmem:[%s5] sm:$0xff]
      %v496 = vld [vmem:[%s5 + $0x8] sm:$0xff]
      %v497 = vld [vmem:[%s5 + $0x10] sm:$0xff]
      %v498 = vsub.f32 0.0, %v468
      %v499 = vsub.f32 0.0, %v469
      %v500 = vsub.f32 0.0, %v470
      %v501 = vmul.f32 %v498, 2.0
      %v502 = vmul.f32 %v499, 2.0
      %v503 = vmul.f32 %v500, 2.0
      %v504 = vmul.f32 %v501, 1.442695
      %v505 = vpow.pop %v504
      %v506 = vmul.f32 %v502, 1.442695
      %v507 = vpow.pop %v506
      %v508 = vmul.f32 %v503, 1.442695
      %v509 = vpow.pop %v508
      %v510 = vmul.f32 %v495, %v505
      %v511 = vmul.f32 %v496, %v507
      %v512 = vmul.f32 %v497, %v509
      %v513 = vadd.f32 %v510, 0.0
      %v514 = vadd.f32 %v511, 0.0
      %v515 = vadd.f32 %v512, 0.0
      %v516 = vld [vmem:[%s6] sm:$0xff]
      %v517 = vld [vmem:[%s6 + $0x8] sm:$0xff]
      %v518 = vld [vmem:[%s6 + $0x10] sm:$0xff]
      %v519 = vsub.f32 0.0, %v471
      %v520 = vsub.f32 0.0, %v472
      %v521 = vsub.f32 0.0, %v473
      %v522 = vmul.f32 %v519, 2.0
      %v523 = vmul.f32 %v520, 2.0
      %v524 = vmul.f32 %v521, 2.0
      %v525 = vmul.f32 %v522, 1.442695
      %v526 = vpow.pop %v525
      %v527 = vmul.f32 %v523, 1.442695
      %v528 = vpow.pop %v527
      %v529 = vmul.f32 %v524, 1.442695
      %v530 = vpow.pop %v529
      %v531 = vmul.f32 %v516, %v526
      %v532 = vmul.f32 %v517, %v528
      %v533 = vmul.f32 %v518, %v530
      %v534 = vadd.f32 %v531, 0.0
      %v535 = vadd.f32 %v532, 0.0
      %v536 = vadd.f32 %v533, 0.0
      %s537 = scalar_lea.vmem %s4, 24
      %v538 = vld [vmem:[%s537] sm:$0xff]
      %v539 = vld [vmem:[%s537 + $0x8] sm:$0xff]
      %v540 = vld [vmem:[%s537 + $0x10] sm:$0xff]
      %v541 = vmul.f32 %v477, 1.0204082
      %v542 = vmul.f32 %v478, 1.0204082
      %v543 = vmul.f32 %v479, 1.0204082
      %v544 = vmul.f32 %v541, 1.442695
      %v545 = vpow.pop %v544
      %v546 = vmul.f32 %v542, 1.442695
      %v547 = vpow.pop %v546
      %v548 = vmul.f32 %v543, 1.442695
      %v549 = vpow.pop %v548
      %v550 = vmul.f32 %v538, %v545
      %v551 = vmul.f32 %v539, %v547
      %v552 = vmul.f32 %v540, %v549
      %v553 = vadd.f32 %v492, %v550
      %v554 = vadd.f32 %v493, %v551
      %v555 = vadd.f32 %v494, %v552
      %s556 = scalar_lea.vmem %s5, 24
      %v557 = vld [vmem:[%s556] sm:$0xff]
      %v558 = vld [vmem:[%s556 + $0x8] sm:$0xff]
      %v559 = vld [vmem:[%s556 + $0x10] sm:$0xff]
      %v560 = vmul.f32 %v498, 1.0204082
      %v561 = vmul.f32 %v499, 1.0204082
      %v562 = vmul.f32 %v500, 1.0204082
      %v563 = vmul.f32 %v560, 1.442695
      %v564 = vpow.pop %v563
      %v565 = vmul.f32 %v561, 1.442695
      %v566 = vpow.pop %v565
      %v567 = vmul.f32 %v562, 1.442695
      %v568 = vpow.pop %v567
      %v569 = vmul.f32 %v557, %v564
      %v570 = vmul.f32 %v558, %v566
      %v571 = vmul.f32 %v559, %v568
      %v572 = vadd.f32 %v513, %v569
      %v573 = vadd.f32 %v514, %v570
      %v574 = vadd.f32 %v515, %v571
      %s575 = scalar_lea.vmem %s6, 24
      %v576 = vld [vmem:[%s575] sm:$0xff]
      %v577 = vld [vmem:[%s575 + $0x8] sm:$0xff]
      %v578 = vld [vmem:[%s575 + $0x10] sm:$0xff]
      %v579 = vmul.f32 %v519, 1.0204082
      %v580 = vmul.f32 %v520, 1.0204082
      %v581 = vmul.f32 %v521, 1.0204082
      %v582 = vmul.f32 %v579, 1.442695
      %v583 = vpow.pop %v582
      %v584 = vmul.f32 %v580, 1.442695
      %v585 = vpow.pop %v584
      %v586 = vmul.f32 %v581, 1.442695
      %v587 = vpow.pop %v586
      %v588 = vmul.f32 %v576, %v583
      %v589 = vmul.f32 %v577, %v585
      %v590 = vmul.f32 %v578, %v587
      %v591 = vadd.f32 %v534, %v588
      %v592 = vadd.f32 %v535, %v589
      %v593 = vadd.f32 %v536, %v590
      %s594 = scalar_lea.vmem %s4, 48
      %v595 = vld [vmem:[%s594] sm:$0xff]
      %v596 = vld [vmem:[%s594 + $0x8] sm:$0xff]
      %v597 = vld [vmem:[%s594 + $0x10] sm:$0xff]
      %v598 = vmul.f32 %v477, 0.5
      %v599 = vmul.f32 %v478, 0.5
      %v600 = vmul.f32 %v479, 0.5
      %v601 = vmul.f32 %v598, 1.442695
      %v602 = vpow.pop %v601
      %v603 = vmul.f32 %v599, 1.442695
      %v604 = vpow.pop %v603
      %v605 = vmul.f32 %v600, 1.442695
      %v606 = vpow.pop %v605
      %v607 = vmul.f32 %v595, %v602
      %v608 = vmul.f32 %v596, %v604
      %v609 = vmul.f32 %v597, %v606
      %v610 = vadd.f32 %v553, %v607
      %v611 = vadd.f32 %v554, %v608
      %v612 = vadd.f32 %v555, %v609
      %s613 = scalar_lea.vmem %s5, 48
      %v614 = vld [vmem:[%s613] sm:$0xff]
      %v615 = vld [vmem:[%s613 + $0x8] sm:$0xff]
      %v616 = vld [vmem:[%s613 + $0x10] sm:$0xff]
      %v617 = vmul.f32 %v498, 0.5
      %v618 = vmul.f32 %v499, 0.5
      %v619 = vmul.f32 %v500, 0.5
      %v620 = vmul.f32 %v617, 1.442695
      %v621 = vpow.pop %v620
      %v622 = vmul.f32 %v618, 1.442695
      %v623 = vpow.pop %v622
      %v624 = vmul.f32 %v619, 1.442695
      %v625 = vpow.pop %v624
      %v626 = vmul.f32 %v614, %v621
      %v627 = vmul.f32 %v615, %v623
      %v628 = vmul.f32 %v616, %v625
      %v629 = vadd.f32 %v572, %v626
      %v630 = vadd.f32 %v573, %v627
      %v631 = vadd.f32 %v574, %v628
      %s632 = scalar_lea.vmem %s6, 48
      %v633 = vld [vmem:[%s632] sm:$0xff]
      %v634 = vld [vmem:[%s632 + $0x8] sm:$0xff]
      %v635 = vld [vmem:[%s632 + $0x10] sm:$0xff]
      %v636 = vmul.f32 %v519, 0.5
      %v637 = vmul.f32 %v520, 0.5
      %v638 = vmul.f32 %v521, 0.5
      %v639 = vmul.f32 %v636, 1.442695
      %v640 = vpow.pop %v639
      %v641 = vmul.f32 %v637, 1.442695
      %v642 = vpow.pop %v641
      %v643 = vmul.f32 %v638, 1.442695
      %v644 = vpow.pop %v643
      %v645 = vmul.f32 %v633, %v640
      %v646 = vmul.f32 %v634, %v642
      %v647 = vmul.f32 %v635, %v644
      %v648 = vadd.f32 %v591, %v645
      %v649 = vadd.f32 %v592, %v646
      %v650 = vadd.f32 %v593, %v647
      %vm651 = vcmask 195584
      %652 = vst.msk [vmem:[%s395] sm:$0xff] %vm651, %v610
      %653 = vst.msk [vmem:[%s395 + $0x8] sm:$0xff] %vm651, %v611
      %654 = vst.msk [vmem:[%s395 + $0x10] sm:$0xff] %vm651, %v612
      %655 = vst.msk [vmem:[%s400] sm:$0xff] %vm651, %v629
      %656 = vst.msk [vmem:[%s400 + $0x8] sm:$0xff] %vm651, %v630
      %657 = vst.msk [vmem:[%s400 + $0x10] sm:$0xff] %vm651, %v631
      %658 = vst.msk [vmem:[%s405] sm:$0xff] %vm651, %v648
      %659 = vst.msk [vmem:[%s405 + $0x8] sm:$0xff] %vm651, %v649
      %660 = vst.msk [vmem:[%s405 + $0x10] sm:$0xff] %vm651, %v650
      %p661 = scmp.lt.s32.totalorder %s21, 1
      %s662 = scalar_select %p661, %s21, 1
      %s663 = smul.addr %s662, 3
      %s664 = smul.addr %s663, 8
      %s665 = scalar_lea.vmem %s7, %s664
      %p666 = scmp.lt.s32.totalorder %s21, 1
      %s667 = scalar_select %p666, %s21, 1
      %s668 = smul.addr %s667, 3
      %s669 = smul.addr %s668, 8
      %s670 = scalar_lea.vmem %s8, %s669
      %p671 = scmp.lt.s32.totalorder %s21, 1
      %s672 = scalar_select %p671, %s21, 1
      %s673 = smul.addr %s672, 3
      %s674 = smul.addr %s673, 8
      %s675 = scalar_lea.vmem %s9, %s674
      // Predicated region
      $region49: #{gp_baseline_forward.2} parent=47 // pred_check
        %p676 = pneg %p206
      $region50: #{gp_baseline_forward.2} parent=47 // pred_check_branch
        %678 = sbr.rel (%p676) target = $region52
      $region51: #{gp_baseline_forward.2} parent=47 // pred_region
        _
      $region52: #{gp_baseline_forward.2} parent=47 // pred_fallthru
        _
      // Predicated region
      $region53: #{gp_baseline_forward.2} parent=47 // pred_check
        %p679 = pneg %p232
      $region54: #{gp_baseline_forward.2} parent=47 // pred_check_branch
        %681 = sbr.rel (%p679) target = $region56
      $region55: #{gp_baseline_forward.2} parent=47 // pred_region
        _
      $region56: #{gp_baseline_forward.2} parent=47 // pred_fallthru
        _
      // Predicated region
      $region57: #{gp_baseline_forward.2} parent=47 // pred_check
        %p682 = pneg %p258
      $region58: #{gp_baseline_forward.2} parent=47 // pred_check_branch
        %684 = sbr.rel (%p682) target = $region60
      $region59: #{gp_baseline_forward.2} parent=47 // pred_region
        _
      $region60: #{gp_baseline_forward.2} parent=47 // pred_fallthru
        _
    $region48: #{gp_baseline_forward.2} parent=5 // pred_fallthru
      _
    %p685 = scmp.le.s32.totalorder 2, %s16
    // Predicated region
    $region61: #{gp_baseline_forward.2} parent=5 // pred_check
      %p686 = pneg %p685
    $region62: #{gp_baseline_forward.2} parent=5 // pred_check_branch
      %688 = sbr.rel (%p686) target = $region64
    $region63: #{gp_baseline_forward.2} parent=5 // pred_region
      %s689 = ssub.s32 %s16, 2
      // Predicated region
      $region65: #{gp_baseline_forward.2} parent=63 // pred_check
        %p690 = pneg %p212
      $region66: #{gp_baseline_forward.2} parent=63 // pred_check_branch
        %692 = sbr.rel (%p690) target = $region68
      $region67: #{gp_baseline_forward.2} parent=63 // pred_region
        %p693 = scmp.lt.s32.totalorder %s22, 1
        %s694 = scalar_select %p693, %s22, 1
        %s695 = smul.addr %s694, 3
        %s696 = smul.addr %s695, 8
        %s697 = scalar_lea.vmem %s7, %s696
      $region68: #{gp_baseline_forward.2} parent=63 // pred_fallthru
        _
      // Predicated region
      $region69: #{gp_baseline_forward.2} parent=63 // pred_check
        %p698 = pneg %p238
      $region70: #{gp_baseline_forward.2} parent=63 // pred_check_branch
        %700 = sbr.rel (%p698) target = $region72
      $region71: #{gp_baseline_forward.2} parent=63 // pred_region
        %p701 = scmp.lt.s32.totalorder %s22, 1
        %s702 = scalar_select %p701, %s22, 1
        %s703 = smul.addr %s702, 3
        %s704 = smul.addr %s703, 8
        %s705 = scalar_lea.vmem %s8, %s704
      $region72: #{gp_baseline_forward.2} parent=63 // pred_fallthru
        _
      // Predicated region
      $region73: #{gp_baseline_forward.2} parent=63 // pred_check
        %p706 = pneg %p264
      $region74: #{gp_baseline_forward.2} parent=63 // pred_check_branch
        %708 = sbr.rel (%p706) target = $region76
      $region75: #{gp_baseline_forward.2} parent=63 // pred_region
        %p709 = scmp.lt.s32.totalorder %s22, 1
        %s710 = scalar_select %p709, %s22, 1
        %s711 = smul.addr %s710, 3
        %s712 = smul.addr %s711, 8
        %s713 = scalar_lea.vmem %s9, %s712
      $region76: #{gp_baseline_forward.2} parent=63 // pred_fallthru
        _
    $region64: #{gp_baseline_forward.2} parent=5 // pred_fallthru
      _
  $region6: #{gp_baseline_forward.2} parent=0 // loop_footer
    %s20 = sadd.s32 1, %s16
  $region7: #{gp_baseline_forward.2} parent=0 // loop_footer_branch
    %15 = sbr.rel target = $region3
  $region8: #{gp_baseline_forward.2} parent=0 // loop_exit
    _

// kernel: gp_baseline_forward.3
$region0: #{gp_baseline_forward.3}
  #allocation0 [shape = 'u32[]', space=smem, size = 0x4, offset = 0x4, fixed_abs, tag = 'smem constant byte address 0x4 - core index']
  #allocation1 [shape = 'u32[144,128]{1,0:T(1,128)}', space=vmem, size = 0x12000, scoped, tag = 'internal scratch']
  %s0 = inlined_call_operand.vmem [shape: f32[2,24,24], index: 0, kind: input, shape index: {}]
  %s1 = inlined_call_operand.vmem [shape: f32[2,24,1], index: 1, kind: input, shape index: {}]
  %s2 = inlined_call_operand.vmem [shape: f32[2,24,24], index: 2, kind: input, shape index: {}]
  %s3 = inlined_call_operand.vmem [shape: f32[2,1,24], index: 3, kind: output, shape index: {0}]
  %s4 = inlined_call_operand.vmem [shape: f32[2,1,24], index: 4, kind: output, shape index: {1}]
  %s5 = inlined_call_operand.hbm [shape: f32[2,24,24], index: 5, kind: output, shape index: {2}]
  %6 = xla_tuple %s3, %s4, %s5
  %s7 = sld [smem:[#allocation0]]
  $region61: #{gp_baseline_forward.3} parent=0
    _
  %s9 = ssub.s32 1, %s7
  %s10 = scalar_select 0, %s9, %s7
  $region1: #{gp_baseline_forward.3} parent=0
    #allocation2 [shape = 'u8[24576]{0}', space=vmem, size = 0x6000, scoped, tag = 'output window, operand 2']
    #allocation3 [shape = 's32[2]{0}', space=sflag, size = 0x8, scoped, tag = 'scoped memory for gp_baseline_forward.3']
    %11 = vsyncpa [#allocation3], 0
    %s12 = scalar_lea.sflag [#allocation3], 1
    %13 = vsyncpa %s12, 0
    loop: start=0, step=1, limit=4
    $region2: #{gp_baseline_forward.3} parent=1 // loop_pre_header
      _
    $region3: #{gp_baseline_forward.3} parent=1 // loop_header
      %s15 = sphi 0, %s19
      %p16 = scmp.ge.s32.totalorder %s15, 4
      %s25 = sphi 0, %s27
      %s28 = sphi 0, %s25
      %s29 = sphi 0, %s28
      %s45 = sphi 0, %s29
      %s51 = sphi 0, %s53
      %s54 = sphi 0, %s51
      %s55 = sphi 0, %s54
      %s71 = sphi 0, %s55
      %s77 = sphi 0, %s79
      %s80 = sphi 0, %s77
      %s81 = sphi 0, %s80
      %s97 = sphi 0, %s81
      %s103 = sphi 0, %s105
      %s106 = sphi 0, %s103
      %s107 = sphi 0, %s106
      %s123 = sphi 0, %s107
      %s129 = sphi 0, %s131
      %s132 = sphi 0, %s129
      %s133 = sphi 0, %s132
      %s149 = sphi 0, %s133
      %s155 = sphi 0, %s157
      %s158 = sphi 0, %s155
      %s159 = sphi 0, %s158
      %s175 = sphi 0, %s159
    $region4: #{gp_baseline_forward.3} parent=1 // loop_header_branch
      %18 = sbr.rel (%p16) target = $region8
    $region5: #{gp_baseline_forward.3} parent=1 // loop_body
      %s20 = ssub.s32 %s15, 1
      %s21 = ssub.s32 %s15, 2
      %s22 = sadd.s32 %s15, 1
      %s23 = ssub.s32 %s15, %s22
      %p24 = scmp.eq.s32.totalorder %s23, 0
      %s26 = sadd.s32 %s25, 1
      %s27 = scalar_select %p24, %s25, %s26
      %p30 = pneg %p24
      %p31 = scmp.eq.s32.totalorder %s15, 1
      %p32 = por %p30, %p31
      %p33 = scmp.ne.s32.totalorder %s25, %s28
      %p34 = scmp.eq.s32.totalorder %s15, 0
      %p35 = por %p33, %p34
      %p36 = scmp.ne.s32.totalorder %s25, %s28
      %p37 = scmp.eq.s32.totalorder %s20, 1
      %p38 = por %p36, %p37
      %p39 = scmp.ne.s32.totalorder %s28, %s29
      %p40 = scmp.eq.s32.totalorder %s20, 0
      %p41 = por %p39, %p40
      %p42 = scmp.ne.s32.totalorder %s28, %s29
      %p43 = scmp.eq.s32.totalorder %s21, 1
      %p44 = por %p42, %p43
      %p46 = scmp.ne.s32.totalorder %s29, %s45
      %p47 = scmp.eq.s32.totalorder %s21, 0
      %p48 = por %p46, %p47
      %s49 = ssub.s32 %s15, %s22
      %p50 = scmp.eq.s32.totalorder %s49, 0
      %s52 = sadd.s32 %s51, 1
      %s53 = scalar_select %p50, %s51, %s52
      %p56 = pneg %p50
      %p57 = scmp.eq.s32.totalorder %s15, 1
      %p58 = por %p56, %p57
      %p59 = scmp.ne.s32.totalorder %s51, %s54
      %p60 = scmp.eq.s32.totalorder %s15, 0
      %p61 = por %p59, %p60
      %p62 = scmp.ne.s32.totalorder %s51, %s54
      %p63 = scmp.eq.s32.totalorder %s20, 1
      %p64 = por %p62, %p63
      %p65 = scmp.ne.s32.totalorder %s54, %s55
      %p66 = scmp.eq.s32.totalorder %s20, 0
      %p67 = por %p65, %p66
      %p68 = scmp.ne.s32.totalorder %s54, %s55
      %p69 = scmp.eq.s32.totalorder %s21, 1
      %p70 = por %p68, %p69
      %p72 = scmp.ne.s32.totalorder %s55, %s71
      %p73 = scmp.eq.s32.totalorder %s21, 0
      %p74 = por %p72, %p73
      %s75 = ssub.s32 %s15, %s22
      %p76 = scmp.eq.s32.totalorder %s75, 0
      %s78 = sadd.s32 %s77, 1
      %s79 = scalar_select %p76, %s77, %s78
      %p82 = pneg %p76
      %p83 = scmp.eq.s32.totalorder %s15, 1
      %p84 = por %p82, %p83
      %p85 = scmp.ne.s32.totalorder %s77, %s80
      %p86 = scmp.eq.s32.totalorder %s15, 0
      %p87 = por %p85, %p86
      %p88 = scmp.ne.s32.totalorder %s77, %s80
      %p89 = scmp.eq.s32.totalorder %s20, 1
      %p90 = por %p88, %p89
      %p91 = scmp.ne.s32.totalorder %s80, %s81
      %p92 = scmp.eq.s32.totalorder %s20, 0
      %p93 = por %p91, %p92
      %p94 = scmp.ne.s32.totalorder %s80, %s81
      %p95 = scmp.eq.s32.totalorder %s21, 1
      %p96 = por %p94, %p95
      %p98 = scmp.ne.s32.totalorder %s81, %s97
      %p99 = scmp.eq.s32.totalorder %s21, 0
      %p100 = por %p98, %p99
      %s101 = ssub.s32 %s15, %s22
      %p102 = scmp.eq.s32.totalorder %s101, 0
      %s104 = sadd.s32 %s103, 1
      %s105 = scalar_select %p102, %s103, %s104
      %p108 = pneg %p102
      %p109 = scmp.eq.s32.totalorder %s15, 1
      %p110 = por %p108, %p109
      %p111 = scmp.ne.s32.totalorder %s103, %s106
      %p112 = scmp.eq.s32.totalorder %s15, 0
      %p113 = por %p111, %p112
      %p114 = scmp.ne.s32.totalorder %s103, %s106
      %p115 = scmp.eq.s32.totalorder %s20, 1
      %p116 = por %p114, %p115
      %p117 = scmp.ne.s32.totalorder %s106, %s107
      %p118 = scmp.eq.s32.totalorder %s20, 0
      %p119 = por %p117, %p118
      %p120 = scmp.ne.s32.totalorder %s106, %s107
      %p121 = scmp.eq.s32.totalorder %s21, 1
      %p122 = por %p120, %p121
      %p124 = scmp.ne.s32.totalorder %s107, %s123
      %p125 = scmp.eq.s32.totalorder %s21, 0
      %p126 = por %p124, %p125
      %s127 = ssub.s32 %s15, %s22
      %p128 = scmp.eq.s32.totalorder %s127, 0
      %s130 = sadd.s32 %s129, 1
      %s131 = scalar_select %p128, %s129, %s130
      %p134 = pneg %p128
      %p135 = scmp.eq.s32.totalorder %s15, 1
      %p136 = por %p134, %p135
      %p137 = scmp.ne.s32.totalorder %s129, %s132
      %p138 = scmp.eq.s32.totalorder %s15, 0
      %p139 = por %p137, %p138
      %p140 = scmp.ne.s32.totalorder %s129, %s132
      %p141 = scmp.eq.s32.totalorder %s20, 1
      %p142 = por %p140, %p141
      %p143 = scmp.ne.s32.totalorder %s132, %s133
      %p144 = scmp.eq.s32.totalorder %s20, 0
      %p145 = por %p143, %p144
      %p146 = scmp.ne.s32.totalorder %s132, %s133
      %p147 = scmp.eq.s32.totalorder %s21, 1
      %p148 = por %p146, %p147
      %p150 = scmp.ne.s32.totalorder %s133, %s149
      %p151 = scmp.eq.s32.totalorder %s21, 0
      %p152 = por %p150, %p151
      %s153 = ssub.s32 %s15, %s22
      %p154 = scmp.eq.s32.totalorder %s153, 0
      %s156 = sadd.s32 %s155, 1
      %s157 = scalar_select %p154, %s155, %s156
      %p160 = pneg %p154
      %p161 = scmp.eq.s32.totalorder %s15, 1
      %p162 = por %p160, %p161
      %p163 = scmp.ne.s32.totalorder %s155, %s158
      %p164 = scmp.eq.s32.totalorder %s15, 0
      %p165 = por %p163, %p164
      %p166 = scmp.ne.s32.totalorder %s155, %s158
      %p167 = scmp.eq.s32.totalorder %s20, 1
      %p168 = por %p166, %p167
      %p169 = scmp.ne.s32.totalorder %s158, %s159
      %p170 = scmp.eq.s32.totalorder %s20, 0
      %p171 = por %p169, %p170
      %p172 = scmp.ne.s32.totalorder %s158, %s159
      %p173 = scmp.eq.s32.totalorder %s21, 1
      %p174 = por %p172, %p173
      %p176 = scmp.ne.s32.totalorder %s159, %s175
      %p177 = scmp.eq.s32.totalorder %s21, 0
      %p178 = por %p176, %p177
      %p179 = scmp.le.s32.totalorder 1, %s15
      %p180 = scmp.lt.s32.totalorder %s15, 3
      %p181 = pnand %p179, %p180
      %p182 = pneg %p181
      // Predicated region
      $region9: #{gp_baseline_forward.3} parent=5 // pred_check
        _
      $region10: #{gp_baseline_forward.3} parent=5 // pred_check_branch
        %184 = sbr.rel (%p181) target = $region12
      $region11: #{gp_baseline_forward.3} parent=5 // pred_region
        %s185 = ssub.s32 %s15, 1
      $region12: #{gp_baseline_forward.3} parent=5 // pred_fallthru
        _
      %p186 = scmp.lt.s32.totalorder %s15, 2
      // Predicated region
      $region13: #{gp_baseline_forward.3} parent=5 // pred_check
        %p187 = pneg %p186
      $region14: #{gp_baseline_forward.3} parent=5 // pred_check_branch
        %189 = sbr.rel (%p187) target = $region16
      $region15: #{gp_baseline_forward.3} parent=5 // pred_region
        // Predicated region
        $region17: #{gp_baseline_forward.3} parent=15 // pred_check
          %p190 = pneg %p35
        $region18: #{gp_baseline_forward.3} parent=15 // pred_check_branch
          %192 = sbr.rel (%p190) target = $region20
        $region19: #{gp_baseline_forward.3} parent=15 // pred_region
          %p193 = scmp.lt.s32.totalorder %s15, 1
          %s194 = scalar_select %p193, %s15, 1
          %s195 = smul.addr %s194, 3
          %s196 = smul.addr %s195, 8
          %s197 = scalar_lea.vmem %s0, %s196
        $region20: #{gp_baseline_forward.3} parent=15 // pred_fallthru
          _
        // Predicated region
        $region21: #{gp_baseline_forward.3} parent=15 // pred_check
          %p198 = pneg %p61
        $region22: #{gp_baseline_forward.3} parent=15 // pred_check_branch
          %200 = sbr.rel (%p198) target = $region24
        $region23: #{gp_baseline_forward.3} parent=15 // pred_region
          %p201 = scmp.lt.s32.totalorder %s15, 1
          %s202 = scalar_select %p201, %s15, 1
          %s203 = smul.addr %s202, 3
          %s204 = smul.addr %s203, 8
          %s205 = scalar_lea.vmem %s1, %s204
        $region24: #{gp_baseline_forward.3} parent=15 // pred_fallthru
          _
        // Predicated region
        $region25: #{gp_baseline_forward.3} parent=15 // pred_check
          %p206 = pneg %p87
        $region26: #{gp_baseline_forward.3} parent=15 // pred_check_branch
          %208 = sbr.rel (%p206) target = $region28
        $region27: #{gp_baseline_forward.3} parent=15 // pred_region
          %p209 = scmp.lt.s32.totalorder %s15, 1
          %s210 = scalar_select %p209, %s15, 1
          %s211 = smul.addr %s210, 3
          %s212 = smul.addr %s211, 8
          %s213 = scalar_lea.vmem %s2, %s212
        $region28: #{gp_baseline_forward.3} parent=15 // pred_fallthru
          _
      $region16: #{gp_baseline_forward.3} parent=5 // pred_fallthru
        _
      %p214 = scmp.le.s32.totalorder 1, %s15
      %p215 = scmp.lt.s32.totalorder %s15, 3
      %p216 = pnand %p214, %p215
      %p217 = pneg %p216
      // Predicated region
      $region29: #{gp_baseline_forward.3} parent=5 // pred_check
        _
      $region30: #{gp_baseline_forward.3} parent=5 // pred_check_branch
        %219 = sbr.rel (%p216) target = $region32
      $region31: #{gp_baseline_forward.3} parent=5 // pred_region
        %s220 = ssub.s32 %s15, 1
        %p221 = scmp.lt.s32.totalorder %s20, 1
        %s222 = scalar_select %p221, %s20, 1
        %s223 = smul.addr %s222, 3
        %s224 = smul.addr %s223, 8
        %s225 = scalar_lea.vmem %s0, %s224
        %p226 = pneg %p41
        %p227 = pneg %p38
        %p228 = scmp.lt.s32.totalorder %s20, 1
        %s229 = scalar_select %p228, %s20, 1
        %s230 = smul.addr %s229, 3
        %s231 = smul.addr %s230, 8
        %s232 = scalar_lea.vmem %s1, %s231
        %p233 = pneg %p67
        %p234 = pneg %p64
        %p235 = scmp.lt.s32.totalorder %s20, 1
        %s236 = scalar_select %p235, %s20, 1
        %s237 = smul.addr %s236, 3
        %s238 = smul.addr %s237, 8
        %s239 = scalar_lea.vmem %s2, %s238
        %p240 = pneg %p93
        %p241 = pneg %p90
        %p242 = pneg %p119
        %p243 = pneg %p116
        %p244 = scmp.lt.s32.totalorder %s20, 1
        %s245 = scalar_select %p244, %s20, 1
        %s246 = scalar_lea.vmem %s3, %s245
        %p247 = pneg %p145
        %p248 = pneg %p142
        %p249 = scmp.lt.s32.totalorder %s20, 1
        %s250 = scalar_select %p249, %s20, 1
        %s251 = scalar_lea.vmem %s4, %s250
        %p252 = pneg %p171
        %p253 = pneg %p168
        %s254 = sand.u32 %s158, 1
        %s255 = scalar_lea.sflag [#allocation3], %s254
        %s256 = sand.u32 %s158, 1
        %s257 = smul.addr %s256, 24
        %s258 = scalar_lea.vmem [#allocation2], %s257
        %p259 = scmp.lt.s32.totalorder %s20, 1
        %s260 = scalar_select %p259, %s20, 1
        %s261 = smul.addr %s260, 3
        %s262 = smul.addr %s261, 8
        %s263 = scalar_lea.vmem %s0, %s262
        %p264 = scmp.lt.s32.totalorder %s20, 1
        %s265 = scalar_select %p264, %s20, 1
        %s266 = smul.addr %s265, 3
        %s267 = smul.addr %s266, 8
        %s268 = scalar_lea.vmem %s1, %s267
        %p269 = scmp.lt.s32.totalorder %s20, 1
        %s270 = scalar_select %p269, %s20, 1
        %s271 = smul.addr %s270, 3
        %s272 = smul.addr %s271, 8
        %s273 = scalar_lea.vmem %s2, %s272
        %p274 = scmp.lt.s32.totalorder %s20, 1
        %s275 = scalar_select %p274, %s20, 1
        %s276 = scalar_lea.vmem %s3, %s275
        %p277 = scmp.lt.s32.totalorder %s20, 1
        %s278 = scalar_select %p277, %s20, 1
        %s279 = scalar_lea.vmem %s4, %s278
        %v280 = vld [vmem:[%s263] sm:$0xff]
        %v281 = vld [vmem:[%s263 + $0x8] sm:$0xff]
        %v282 = vld [vmem:[%s263 + $0x10] sm:$0xff]
        %v283 = vld [vmem:[%s268] sm:$0xff]
        %v284 = vld [vmem:[%s268 + $0x8] sm:$0xff]
        %v285 = vld [vmem:[%s268 + $0x10] sm:$0xff]
        %v286 = vld [vmem:[%s273] sm:$0xff]
        %v287 = vld [vmem:[%s273 + $0x8] sm:$0xff]
        %v288 = vld [vmem:[%s273 + $0x10] sm:$0xff]
        %290 = vset.pattern.permute.xlu0 0
        %291 = vperm.xlu0 %290, %v283
        %v292 = vpop.permute.xlu0 %291
        %295 = vset.pattern.permute.xlu0 0
        %296 = vperm.xlu0 %295, %v284
        %v297 = vpop.permute.xlu0 %296
        %300 = vset.pattern.permute.xlu0 0
        %301 = vperm.xlu0 %300, %v285
        %v302 = vpop.permute.xlu0 %301
        %v304 = vmul.f32 %v280, %v292
        %v305 = vmul.f32 %v281, %v297
        %v306 = vmul.f32 %v282, %v302
        %vm307 = vcmask 195584
        %v308 = vsel %vm307, %v304, 0.0
        %v309 = vsel %vm307, %v305, 0.0
        %v310 = vadd.f32 %v308, %v309
        %v311 = vsel %vm307, %v306, 0.0
        %v312 = vadd.f32 %v310, %v311
        %v313 = vrot.slane %v312, 4
        %v314 = vadd.f32 %v312, %v313
        %v315 = vrot.slane %v314, 2
        %v316 = vadd.f32 %v314, %v315
        %v317 = vrot.slane %v316, 1
        %v318 = vadd.f32 %v316, %v317
        %v319 = vmul.f32 %v280, %v280
        %v320 = vmul.f32 %v281, %v281
        %v321 = vmul.f32 %v282, %v282
        %v322 = vsel %vm307, %v319, 0.0
        %v323 = vsel %vm307, %v320, 0.0
        %v324 = vadd.f32 %v322, %v323
        %v325 = vsel %vm307, %v321, 0.0
        %v326 = vadd.f32 %v324, %v325
        %v327 = vrot.slane %v326, 4
        %v328 = vadd.f32 %v326, %v327
        %v329 = vrot.slane %v328, 2
        %v330 = vadd.f32 %v328, %v329
        %v331 = vrot.slane %v330, 1
        %v332 = vadd.f32 %v330, %v331
        %333 = vxpose.xlu0.b32.start [1/16] %v280, 128
        %334 = vxpose.xlu0.b32.cont [2/16] %v281, 128
        %335 = vxpose.xlu0.b32.cont [3/16] %v282, 128
        %336 = vxpose.xlu0.b32.cont [4/16] 0.0, 128
        %337 = vxpose.xlu0.b32.cont [5/16] 0.0, 128
        %338 = vxpose.xlu0.b32.cont [6/16] 0.0, 128
        %339 = vxpose.xlu0.b32.cont [7/16] 0.0, 128
        %340 = vxpose.xlu0.b32.cont [8/16] 0.0, 128
        %341 = vxpose.xlu0.b32.cont [9/16] 0.0, 128
        %342 = vxpose.xlu0.b32.cont [10/16] 0.0, 128
        %343 = vxpose.xlu0.b32.cont [11/16] 0.0, 128
        %344 = vxpose.xlu0.b32.cont [12/16] 0.0, 128
        %345 = vxpose.xlu0.b32.cont [13/16] 0.0, 128
        %346 = vxpose.xlu0.b32.cont [14/16] 0.0, 128
        %347 = vxpose.xlu0.b32.cont [15/16] 0.0, 128
        %348 = vxpose.xlu0.b32.end [16/16] 0.0, 128
        %v349 = vpop.trf.xlu0
        %v350 = vpop.trf.xlu0
        %v351 = vpop.trf.xlu0
        %v352 = vpop.trf.xlu0
        %v353 = vpop.trf.xlu0
        %v354 = vpop.trf.xlu0
        %v355 = vpop.trf.xlu0
        %v356 = vpop.trf.xlu0
        %v357 = vpop.trf.xlu0
        %v358 = vpop.trf.xlu0
        %v359 = vpop.trf.xlu0
        %v360 = vpop.trf.xlu0
        %v361 = vpop.trf.xlu0
        %v362 = vpop.trf.xlu0
        %v363 = vpop.trf.xlu0
        %v364 = vpop.trf.xlu0
        %v366 = vsel %vm307, %v349, 0
        %v369 = vsel %vm307, %v350, 0
        %v372 = vsel %vm307, %v351, 0
        %374 = vmatprep.subr.mxu0 0.0
        %375 = vmatpush1.msra.mxu0 0.0
        %376 = vmatprep.subr.mxu0 0.0
        %377 = vmatpush1.msra.mxu0 0.0
        %378 = vmatprep.subr.mxu0 0.0
        %379 = vmatpush1.msra.mxu0 0.0
        %380 = vmatprep.subr.mxu0 0.0
        %381 = vmatpush1.msra.mxu0 0.0
        %382 = vmatprep.subr.mxu0 0.0
        %383 = vmatpush1.msra.mxu0 0.0
        %384 = vmatprep.subr.mxu0 0.0
        %385 = vmatpush1.msra.mxu0 0.0
        %386 = vmatprep.subr.mxu0 0.0
        %387 = vmatpush1.msra.mxu0 0.0
        %388 = vmatprep.subr.mxu0 0.0
        %389 = vmatpush1.msra.mxu0 0.0
        %390 = vmatprep.subr.mxu0 0.0
        %391 = vmatpush1.msra.mxu0 0.0
        %392 = vmatprep.subr.mxu0 0.0
        %393 = vmatpush1.msra.mxu0 0.0
        %394 = vmatprep.subr.mxu0 0.0
        %395 = vmatpush1.msra.mxu0 0.0
        %396 = vmatprep.subr.mxu0 0.0
        %397 = vmatpush1.msra.mxu0 0.0
        %398 = vmatprep.subr.mxu0 0.0
        %399 = vmatpush1.msra.mxu0 0.0
        %400 = vmatprep.subr.mxu0 0.0
        %401 = vmatpush1.msra.mxu0 %v282
        %402 = vmatprep.subr.mxu0 0.0
        %403 = vmatpush1.msra.mxu0 %v281
        %404 = vmatprep.subr.mxu0 0.0
        %405 = vmatpush1.msra.mxu0 %v280
        %406 = vmatprep.subr.mxu0 0.0
        %407 = vmatpush2.msra.mxu0 0.0
        %408 = vmatprep.subr.mxu0 0.0
        %409 = vmatpush2.msra.mxu0 0.0
        %410 = vmatprep.subr.mxu0 0.0
        %411 = vmatpush2.msra.mxu0 0.0
        %412 = vmatprep.subr.mxu0 0.0
        %413 = vmatpush2.msra.mxu0 0.0
        %414 = vmatprep.subr.mxu0 0.0
        %415 = vmatpush2.msra.mxu0 0.0
        %416 = vmatprep.subr.mxu0 0.0
        %417 = vmatpush2.msra.mxu0 0.0
        %418 = vmatprep.subr.mxu0 0.0
        %419 = vmatpush2.msra.mxu0 0.0
        %420 = vmatprep.subr.mxu0 0.0
        %421 = vmatpush2.msra.mxu0 0.0
        %422 = vmatprep.subr.mxu0 0.0
        %423 = vmatpush2.msra.mxu0 0.0
        %424 = vmatprep.subr.mxu0 0.0
        %425 = vmatpush2.msra.mxu0 0.0
        %426 = vmatprep.subr.mxu0 0.0
        %427 = vmatpush2.msra.mxu0 0.0
        %428 = vmatprep.subr.mxu0 0.0
        %429 = vmatpush2.msra.mxu0 0.0
        %430 = vmatprep.subr.mxu0 0.0
        %431 = vmatpush2.msra.mxu0 0.0
        %432 = vmatprep.subr.mxu0 0.0
        %433 = vmatpush2.msra.mxu0 0.0
        %434 = vmatprep.subr.mxu0 0.0
        %435 = vmatpush2.msra.mxu0 0.0
        %436 = vmatprep.subr.mxu0 0.0
        %437 = vmatpush2.msra.mxu0 0.0
        %438 = vmatprep.mubr.f32.mxu0 0.0
        %439 = vmatmul.mubr.f32.gmra.mxu0 %v366
        %v440 = vpop.f32.mrf.mxu0
        %v441 = vadd.f32 0.0, %v440
        %v442 = vpop.f32.mrf.mxu0
        %443 = vmatprep.mubr.f32.mxu0 0.0
        %444 = vmatmul.mubr.f32.gmra.mxu0 %v369
        %v445 = vpop.f32.mrf.mxu0
        %v446 = vadd.f32 0.0, %v445
        %v447 = vpop.f32.mrf.mxu0
        %448 = vmatprep.mubr.f32.mxu0 0.0
        %449 = vmatmul.mubr.f32.gmra.mxu0 %v372
        %v450 = vpop.f32.mrf.mxu0
        %v451 = vadd.f32 0.0, %v450
        %v452 = vpop.f32.mrf.mxu0
        %453 = vdwg.mxu0
        %v454 = vlaneseq
        %v455 = vshrl.u32 %v454, 7
        %v456 = vadd.s32 %v455, 8
        %v457 = vadd.s32 %v455, 16
        %v458 = vlaneseq
        %v459 = vand.u32 %v458, 127
        %vm460 = vcmp.eq.s32.totalorder %v455, %v459
        %vm461 = vcmp.eq.s32.totalorder %v456, %v459
        %vm462 = vcmp.eq.s32.totalorder %v457, %v459
        %v463 = vsel %vm460, %v286, 0.0
        %v464 = vsel %vm461, %v287, 0.0
        %v465 = vsel %vm462, %v288, 0.0
        %v466 = vsel %vm307, %v463, 0.0
        %v467 = vsel %vm307, %v464, 0.0
        %v468 = vadd.f32 %v466, %v467
        %v469 = vsel %vm307, %v465, 0.0
        %v470 = vadd.f32 %v468, %v469
        %v471 = vrot.slane %v470, 4
        %v472 = vadd.f32 %v470, %v471
        %v473 = vrot.slane %v472, 2
        %v474 = vadd.f32 %v472, %v473
        %v475 = vrot.slane %v474, 1
        %v476 = vadd.f32 %v474, %v475
        %v477 = vsub.f32 %v476, %v332
        %v478 = vmax.f32 %v477, 1e-08
        %v479 = vrsqrt.pop %v478
        %v480 = vmul.f32 %v478, %v479
        %vm481 = vcmp.eq.f32.partialorder %v478, inf
        %v482 = vsel %vm481, %v478, %v480
        %vm483 = vcmp.eq.f32.partialorder %v478, 0.0
        %v484 = vand.u32 %v478, 2147483648
        %v485 = vsel %vm483, %v484, %v482
        %v486 = vadd.f32 %v485, 0.1
        %v487 = vsub.f32 %v286, %v441
        %v488 = vsub.f32 %v287, %v446
        %v489 = vsub.f32 %v288, %v451
        %v490 = vsel %vm460, 1, 0
        %v491 = vsel %vm461, 1, 0
        %v492 = vsel %vm462, 1, 0
        %v493 = vcvt.s32.f32 %v490
        %v494 = vcvt.s32.f32 %v491
        %v495 = vcvt.s32.f32 %v492
        %v496 = vmul.f32 %v493, 0.010001
        %v497 = vmul.f32 %v494, 0.010001
        %v498 = vmul.f32 %v495, 0.010001
        %v499 = vadd.f32 %v487, %v496
        %v500 = vadd.f32 %v488, %v497
        %v501 = vadd.f32 %v489, %v498
        %vm502 = vcmask 188416
        %503 = vst.msk [vmem:[%s276] sm:$0x1] %vm502, %v318
        %504 = vst.msk [vmem:[%s279] sm:$0x1] %vm502, %v486
        %505 = vst.msk [vmem:[%s258] sm:$0xff] %vm307, %v499
        %506 = vst.msk [vmem:[%s258 + $0x8] sm:$0xff] %vm307, %v500
        %507 = vst.msk [vmem:[%s258 + $0x10] sm:$0xff] %vm307, %v501
        %p508 = scmp.lt.s32.totalorder %s20, 1
        %s509 = scalar_select %p508, %s20, 1
        %s510 = scalar_lea.vmem %s3, %s509
        %p511 = scmp.lt.s32.totalorder %s20, 1
        %s512 = scalar_select %p511, %s20, 1
        %s513 = scalar_lea.vmem %s4, %s512
        %s514 = sand.u32 %s158, 1
        %s515 = scalar_lea.sflag [#allocation3], %s514
        %s516 = sand.u32 %s158, 1
        %s517 = smul.addr %s516, 24
        %s518 = scalar_lea.vmem [#allocation2], %s517
        // Predicated region
        $region33: #{gp_baseline_forward.3} parent=31 // pred_check
          %p519 = pneg %p116
        $region34: #{gp_baseline_forward.3} parent=31 // pred_check_branch
          %521 = sbr.rel (%p519) target = $region36
        $region35: #{gp_baseline_forward.3} parent=31 // pred_region
          _
        $region36: #{gp_baseline_forward.3} parent=31 // pred_fallthru
          _
        // Predicated region
        $region37: #{gp_baseline_forward.3} parent=31 // pred_check
          %p522 = pneg %p142
        $region38: #{gp_baseline_forward.3} parent=31 // pred_check_branch
          %524 = sbr.rel (%p522) target = $region40
        $region39: #{gp_baseline_forward.3} parent=31 // pred_region
          _
        $region40: #{gp_baseline_forward.3} parent=31 // pred_fallthru
          _
        // Predicated region
        $region41: #{gp_baseline_forward.3} parent=31 // pred_check
          %p525 = pneg %p168
        $region42: #{gp_baseline_forward.3} parent=31 // pred_check_branch
          %527 = sbr.rel (%p525) target = $region44
        $region43: #{gp_baseline_forward.3} parent=31 // pred_region
          %s529 = ssub.s32 384, 384
          %530 = vsyncadd %s515, %s529
          %s531 = smul.addr %s20, 3
          %s532 = smul.addr %s531, 128
          %s533 = scalar_lea.hbm %s5, %s532
          %s534 = sshll.u32 %s518, 4
          %s535 = int_to_ptr.vmem [resolvable:$true] %s534
          %540 = dma.vmem_to_hbm [thread:$0]  %s535, 384, %s533, %s515, 128, 128, 8
        $region44: #{gp_baseline_forward.3} parent=31 // pred_fallthru
          _
      $region32: #{gp_baseline_forward.3} parent=5 // pred_fallthru
        _
      %p541 = scmp.le.s32.totalorder 2, %s15
      // Predicated region
      $region45: #{gp_baseline_forward.3} parent=5 // pred_check
        %p542 = pneg %p541
      $region46: #{gp_baseline_forward.3} parent=5 // pred_check_branch
        %544 = sbr.rel (%p542) target = $region48
      $region47: #{gp_baseline_forward.3} parent=5 // pred_region
        %s545 = ssub.s32 %s15, 2
        // Predicated region
        $region49: #{gp_baseline_forward.3} parent=47 // pred_check
          %p546 = pneg %p122
        $region50: #{gp_baseline_forward.3} parent=47 // pred_check_branch
          %548 = sbr.rel (%p546) target = $region52
        $region51: #{gp_baseline_forward.3} parent=47 // pred_region
          %p549 = scmp.lt.s32.totalorder %s21, 1
          %s550 = scalar_select %p549, %s21, 1
          %s551 = scalar_lea.vmem %s3, %s550
        $region52: #{gp_baseline_forward.3} parent=47 // pred_fallthru
          _
        // Predicated region
        $region53: #{gp_baseline_forward.3} parent=47 // pred_check
          %p552 = pneg %p148
        $region54: #{gp_baseline_forward.3} parent=47 // pred_check_branch
          %554 = sbr.rel (%p552) target = $region56
        $region55: #{gp_baseline_forward.3} parent=47 // pred_region
          %p555 = scmp.lt.s32.totalorder %s21, 1
          %s556 = scalar_select %p555, %s21, 1
          %s557 = scalar_lea.vmem %s4, %s556
        $region56: #{gp_baseline_forward.3} parent=47 // pred_fallthru
          _
        // Predicated region
        $region57: #{gp_baseline_forward.3} parent=47 // pred_check
          %p558 = pneg %p174
        $region58: #{gp_baseline_forward.3} parent=47 // pred_check_branch
          %560 = sbr.rel (%p558) target = $region60
        $region59: #{gp_baseline_forward.3} parent=47 // pred_region
          %s561 = sand.u32 %s159, 1
          %s562 = scalar_lea.sflag [#allocation3], %s561
          %s563 = sand.u32 %s159, 1
          %s564 = smul.addr %s563, 24
          %s565 = scalar_lea.vmem [#allocation2], %s564
          %566 = dma.done %s562, 384
        $region60: #{gp_baseline_forward.3} parent=47 // pred_fallthru
          _
      $region48: #{gp_baseline_forward.3} parent=5 // pred_fallthru
        _
    $region6: #{gp_baseline_forward.3} parent=1 // loop_footer
      %s19 = sadd.s32 1, %s15
    $region7: #{gp_baseline_forward.3} parent=1 // loop_footer_branch
      %14 = sbr.rel target = $region3
    $region8: #{gp_baseline_forward.3} parent=1 // loop_exit
      _
    %567 = vsyncpa [#allocation3], 1
    %s568 = scalar_lea.sflag [#allocation3], 1
    %569 = vsyncpa %s568, 1

</llo_original>
